<compile_context>
chip_gen: v7x
topology: tpu7x:2x2x1
jax: 0.10.0
libtpu: 0.0.40
codegen_flags: <defaults>
</compile_context>

<pallas_src>
import functools

import jax
import jax.numpy as jnp
from jax import lax
from jax.experimental import pallas as pl
from jax.experimental.pallas import tpu as pltpu


# --------------------------------------------------------------------------
# Pallas kernel: fused conv3x3 -> BN -> ReLU -> conv3x3 -> BN -> ReLU
# --------------------------------------------------------------------------

def _basic_block2_kernel(x_ref, w1_ref, w2t_ref, g1_ref, b1_ref, g2_ref,
                         b2_ref, out_ref, hpad_ref, *, H, W, C):
    """One batch image per grid step.

    x_ref    : (1, H+2, W+2, C)  zero-padded NHWC input (halo included)
    w1_ref   : (9, C, C)         conv1 taps, [kh*3+kw, c_in, c_out]
    w2t_ref  : (9, C, C)         conv2 taps, [kh*3+kw, c_out, c_in] (pre-transposed)
    g1_ref/b1_ref : (1, C)       folded BN1 scale / shift (row-major layout)
    g2_ref/b2_ref : (C, 1)       folded BN2 scale / shift (channel-major layout)
    out_ref  : (1, C, H*W)       channel-major output (lane-dense writeback)
    hpad_ref : (H+2, W+2, C) f32 VMEM scratch: zero-padded intermediate
    """
    HW = H * W

    # ---- conv1: 9 shifted MXU dots, f32 accumulation (no HBM im2col) ----
    acc1 = jnp.zeros((HW, C), jnp.float32)
    for kh in range(3):
        for kw in range(3):
            t = kh * 3 + kw
            patch = x_ref[0, kh:kh + H, kw:kw + W, :].reshape(HW, C)
            acc1 = acc1 + jnp.dot(patch, w1_ref[t],
                                  preferred_element_type=jnp.float32)

    # ---- BN1 (folded per-channel scale/shift) + ReLU, fused in-kernel ----
    h1 = jnp.maximum(acc1 * g1_ref[...] + b1_ref[...], 0.0)        # (HW, C)

    # ---- re-pad the intermediate inside VMEM for conv2's halo ----
    hpad_ref[...] = jnp.zeros((H + 2, W + 2, C), jnp.float32)
    hpad_ref[1:H + 1, 1:W + 1, :] = h1.reshape(H, W, C)

    # ---- conv2: accumulated channel-major so the writeback is lane-dense ----
    acc2 = jnp.zeros((C, HW), jnp.float32)
    for kh in range(3):
        for kw in range(3):
            t = kh * 3 + kw
            patch = hpad_ref[kh:kh + H, kw:kw + W, :].reshape(HW, C)
            # (C_out, C_in) contracted with (HW, C_in) on C_in -> (C_out, HW)
            acc2 = acc2 + lax.dot_general(
                w2t_ref[t], patch,
                dimension_numbers=(((1,), (1,)), ((), ())),
                preferred_element_type=jnp.float32)

    # ---- BN2 + ReLU + store: (C, HW) has HW >= 128 lanes -> unmasked vst ----
    out_ref[0] = jnp.maximum(acc2 * g2_ref[...] + b2_ref[...], 0.0)


# --------------------------------------------------------------------------
# Jitted forward wrapper (layout glue + pallas_call)
# --------------------------------------------------------------------------

@jax.jit
def _forward(params, x_nchw):
    """relu(bn2(conv2(relu(bn1(conv1(x)))))) for NCHW input, returns NCHW."""
    N, C, H, W = x_nchw.shape
    x_nhwc = jnp.transpose(x_nchw, (0, 2, 3, 1)).astype(jnp.float32)
    x_pad = jnp.pad(x_nhwc, ((0, 0), (1, 1), (1, 1), (0, 0)))

    kernel = functools.partial(_basic_block2_kernel, H=H, W=W, C=C)
    flops = 2 * 2 * N * H * W * 9 * C * C                 # two 3x3 conv layers
    bytes_accessed = 4 * (x_pad.size + N * C * H * W + 2 * 9 * C * C + 4 * C)

    # TODO(synk): for images too large to fit one padded (H+2, W+2, C) tile in
    # VMEM, switch the grid to (N, H/tile) row-tiles with a 1-pixel halo.
    out_flat = pl.pallas_call(
        kernel,
        out_shape=jax.ShapeDtypeStruct((N, C, H * W), jnp.float32),
        grid_spec=pltpu.PrefetchScalarGridSpec(
            num_scalar_prefetch=0,
            grid=(N,),
            in_specs=[
                pl.BlockSpec((1, H + 2, W + 2, C), lambda n: (n, 0, 0, 0)),
                pl.BlockSpec((9, C, C), lambda n: (0, 0, 0)),
                pl.BlockSpec((9, C, C), lambda n: (0, 0, 0)),
                pl.BlockSpec((1, C), lambda n: (0, 0)),
                pl.BlockSpec((1, C), lambda n: (0, 0)),
                pl.BlockSpec((C, 1), lambda n: (0, 0)),
                pl.BlockSpec((C, 1), lambda n: (0, 0)),
            ],
            out_specs=pl.BlockSpec((1, C, H * W), lambda n: (n, 0, 0)),
            scratch_shapes=[pltpu.VMEM((H + 2, W + 2, C), jnp.float32)],
        ),
        compiler_params=pltpu.CompilerParams(
            dimension_semantics=("parallel",),   # batch -> both TCs on v7x
        ),
        cost_estimate=pl.CostEstimate(flops=flops, transcendentals=0,
                                      bytes_accessed=bytes_accessed),
    )(x_pad, params["w1"], params["w2t"], params["g1"], params["b1"],
      params["g2"], params["b2"])

    return out_flat.reshape(N, C, H, W)      # channel-major -> NCHW is free


# --------------------------------------------------------------------------
# Parameters (conv weights + inference-mode folded BatchNorm)
# --------------------------------------------------------------------------

def _init_params(dim, key):
    k1, k2, k3 = jax.random.split(key, 3)
    std = (2.0 / (9 * dim)) ** 0.5
    w1_hwio = std * jax.random.normal(k1, (3, 3, dim, dim), jnp.float32)
    w2_hwio = std * jax.random.normal(k2, (3, 3, dim, dim), jnp.float32)

    kb = jax.random.split(k3, 8)
    eps = 1e-5
    gamma1 = 1.0 + 0.1 * jax.random.normal(kb[0], (dim,), jnp.float32)
    beta1 = 0.1 * jax.random.normal(kb[1], (dim,), jnp.float32)
    mean1 = 0.1 * jax.random.normal(kb[2], (dim,), jnp.float32)
    var1 = 1.0 + 0.1 * jnp.abs(jax.random.normal(kb[3], (dim,), jnp.float32))
    gamma2 = 1.0 + 0.1 * jax.random.normal(kb[4], (dim,), jnp.float32)
    beta2 = 0.1 * jax.random.normal(kb[5], (dim,), jnp.float32)
    mean2 = 0.1 * jax.random.normal(kb[6], (dim,), jnp.float32)
    var2 = 1.0 + 0.1 * jnp.abs(jax.random.normal(kb[7], (dim,), jnp.float32))

    g1 = gamma1 / jnp.sqrt(var1 + eps)
    b1 = beta1 - mean1 * g1
    g2 = gamma2 / jnp.sqrt(var2 + eps)
    b2 = beta2 - mean2 * g2

    return {
        "w1": w1_hwio.reshape(9, dim, dim),                       # [tap, ci, co]
        "w2t": jnp.transpose(w2_hwio.reshape(9, dim, dim), (0, 2, 1)),  # [tap, co, ci]
        "g1": g1.reshape(1, dim), "b1": b1.reshape(1, dim),
        "g2": g2.reshape(dim, 1), "b2": b2.reshape(dim, 1),
    }


class BasicBlock2Pallas:
    """JAX/Pallas equivalent of PyTorch BasicBlock2 (inference-mode BatchNorm)."""
    expansion = 1

    def __init__(self, dim, key):
        self.dim = dim
        self.nfe = 0
        self.params = _init_params(dim, key)
        # TODO(synk): training-mode BatchNorm (batch statistics + running-stat
        # updates) is not computed in-kernel; BN is applied as a folded
        # inference-mode per-channel scale + shift.

    def __call__(self, t, x):
        # `t` is accepted and ignored, matching BasicBlock2.forward(t, x).
        self.nfe += 1           # host-side counter, outside the jitted trace
        return _forward(self.params, x)


# --------------------------------------------------------------------------
# Pure-JAX reference (lax.conv) for a numerical check
# --------------------------------------------------------------------------

def _reference_forward(params, x_nchw):
    C = x_nchw.shape[1]
    w1_hwio = params["w1"].reshape(3, 3, C, C)
    w2_hwio = jnp.transpose(params["w2t"], (0, 2, 1)).reshape(3, 3, C, C)
    dn = ("NCHW", "HWIO", "NCHW")
    h = lax.conv_general_dilated(x_nchw, w1_hwio, (1, 1), ((1, 1), (1, 1)),
                                 dimension_numbers=dn,
                                 precision=lax.Precision.HIGHEST)
    h = h * params["g1"].reshape(1, C, 1, 1) + params["b1"].reshape(1, C, 1, 1)
    h = jnp.maximum(h, 0.0)
    o = lax.conv_general_dilated(h, w2_hwio, (1, 1), ((1, 1), (1, 1)),
                                 dimension_numbers=dn,
                                 precision=lax.Precision.HIGHEST)
    o = o * params["g2"].reshape(1, C, 1, 1) + params["b2"].reshape(1, C, 1, 1)
    return jnp.maximum(o, 0.0)


# --------------------------------------------------------------------------
# Demo
# --------------------------------------------------------------------------

if __name__ == "__main__":
    key = jax.random.PRNGKey(0)
    kx, kp = jax.random.split(key)

    N, C, H, W = 2, 4, 16, 16                 # NCHW, matching PyTorch layout
    x = jax.random.normal(kx, (N, C, H, W), jnp.float32)
    t = jnp.zeros(())                         # unused time argument

    block = BasicBlock2Pallas(C, kp)
    out = jax.block_until_ready(block(t, x))

    assert out.shape == (N, C, H, W)
    assert out.dtype == jnp.float32
    assert bool(jnp.all(jnp.isfinite(out)))
    assert bool(jnp.all(out >= 0.0))          # final ReLU
    assert block.nfe == 1

    ref = jax.block_until_ready(_reference_forward(block.params, x))
    max_err = float(jnp.max(jnp.abs(out - ref)))
    assert max_err < 5e-2, f"mismatch vs lax.conv reference: {max_err}"

    print("KERNEL_OK")
</pallas_src>

<mosaic_0001>
module attributes {stable_mosaic.version = 11 : i64} {
  func.func @_basic_block2_kernel(%arg0: i32, %arg1: memref<1x18x18x4xf32, #tpu.memory_space<vmem>>, %arg2: memref<9x4x4xf32, #tpu.memory_space<vmem>>, %arg3: memref<9x4x4xf32, #tpu.memory_space<vmem>>, %arg4: memref<1x4xf32, #tpu.memory_space<vmem>>, %arg5: memref<1x4xf32, #tpu.memory_space<vmem>>, %arg6: memref<4x1xf32, #tpu.memory_space<vmem>>, %arg7: memref<4x1xf32, #tpu.memory_space<vmem>>, %arg8: memref<1x4x256xf32, #tpu.memory_space<vmem>>, %arg9: memref<18x18x4xf32, #tpu.memory_space<vmem>>) attributes {dimension_semantics = [#tpu.dimension_semantics<parallel>], iteration_bounds = array<i64: 2>, scalar_prefetch = 0 : i64, scratch_operands = 1 : i64, tpu.core_type = #tpu.core_type<tc>, window_params = [{transform_indices = @transform_0, window_bounds = array<i64: 1, 18, 18, 4>}, {pipeline_mode = #tpu.pipeline_mode<synchronous>, transform_indices = @transform_1, window_bounds = array<i64: 9, 4, 4>}, {pipeline_mode = #tpu.pipeline_mode<synchronous>, transform_indices = @transform_2, window_bounds = array<i64: 9, 4, 4>}, {pipeline_mode = #tpu.pipeline_mode<synchronous>, transform_indices = @transform_3, window_bounds = array<i64: 1, 4>}, {pipeline_mode = #tpu.pipeline_mode<synchronous>, transform_indices = @transform_4, window_bounds = array<i64: 1, 4>}, {pipeline_mode = #tpu.pipeline_mode<synchronous>, transform_indices = @transform_5, window_bounds = array<i64: 4, 1>}, {pipeline_mode = #tpu.pipeline_mode<synchronous>, transform_indices = @transform_6, window_bounds = array<i64: 4, 1>}, {transform_indices = @transform_7, window_bounds = array<i64: 1, 4, 256>}]} {
    %cst = arith.constant 0.000000e+00 : f32
    %0 = vector.broadcast %cst : f32 to vector<256x4xf32>
    %c0 = arith.constant 0 : index
    %c0_0 = arith.constant 0 : index
    %c0_1 = arith.constant 0 : index
    %c0_2 = arith.constant 0 : index
    %1 = vector.load %arg1[%c0, %c0_0, %c0_1, %c0_2] : memref<1x18x18x4xf32, #tpu.memory_space<vmem>>, vector<1x16x16x4xf32>
    %2 = vector.shape_cast %1 : vector<1x16x16x4xf32> to vector<16x16x4xf32>
    %3 = vector.shape_cast %2 : vector<16x16x4xf32> to vector<256x4xf32>
    %c0_3 = arith.constant 0 : index
    %c0_4 = arith.constant 0 : index
    %c0_5 = arith.constant 0 : index
    %4 = vector.load %arg2[%c0_3, %c0_4, %c0_5] : memref<9x4x4xf32, #tpu.memory_space<vmem>>, vector<1x4x4xf32>
    %5 = vector.shape_cast %4 : vector<1x4x4xf32> to vector<4x4xf32>
    %cst_6 = arith.constant dense<0.000000e+00> : vector<256x4xf32>
    %6 = tpu.matmul %3, %5, %cst_6 {dimension_numbers = #tpu.dot_dimension_numbers<[1], [0], [0], [1], [0, 0, 1, 1], [], []>} : vector<256x4xf32>, vector<4x4xf32>, vector<256x4xf32> -> vector<256x4xf32>
    %7 = arith.addf %0, %6 : vector<256x4xf32>
    %c0_7 = arith.constant 0 : index
    %c0_8 = arith.constant 0 : index
    %c1 = arith.constant 1 : index
    %c0_9 = arith.constant 0 : index
    %8 = vector.load %arg1[%c0_7, %c0_8, %c1, %c0_9] : memref<1x18x18x4xf32, #tpu.memory_space<vmem>>, vector<1x16x16x4xf32>
    %9 = vector.shape_cast %8 : vector<1x16x16x4xf32> to vector<16x16x4xf32>
    %10 = vector.shape_cast %9 : vector<16x16x4xf32> to vector<256x4xf32>
    %c1_10 = arith.constant 1 : index
    %c0_11 = arith.constant 0 : index
    %c0_12 = arith.constant 0 : index
    %11 = vector.load %arg2[%c1_10, %c0_11, %c0_12] : memref<9x4x4xf32, #tpu.memory_space<vmem>>, vector<1x4x4xf32>
    %12 = vector.shape_cast %11 : vector<1x4x4xf32> to vector<4x4xf32>
    %cst_13 = arith.constant dense<0.000000e+00> : vector<256x4xf32>
    %13 = tpu.matmul %10, %12, %cst_13 {dimension_numbers = #tpu.dot_dimension_numbers<[1], [0], [0], [1], [0, 0, 1, 1], [], []>} : vector<256x4xf32>, vector<4x4xf32>, vector<256x4xf32> -> vector<256x4xf32>
    %14 = arith.addf %7, %13 : vector<256x4xf32>
    %c0_14 = arith.constant 0 : index
    %c0_15 = arith.constant 0 : index
    %c2 = arith.constant 2 : index
    %c0_16 = arith.constant 0 : index
    %15 = vector.load %arg1[%c0_14, %c0_15, %c2, %c0_16] : memref<1x18x18x4xf32, #tpu.memory_space<vmem>>, vector<1x16x16x4xf32>
    %16 = vector.shape_cast %15 : vector<1x16x16x4xf32> to vector<16x16x4xf32>
    %17 = vector.shape_cast %16 : vector<16x16x4xf32> to vector<256x4xf32>
    %c2_17 = arith.constant 2 : index
    %c0_18 = arith.constant 0 : index
    %c0_19 = arith.constant 0 : index
    %18 = vector.load %arg2[%c2_17, %c0_18, %c0_19] : memref<9x4x4xf32, #tpu.memory_space<vmem>>, vector<1x4x4xf32>
    %19 = vector.shape_cast %18 : vector<1x4x4xf32> to vector<4x4xf32>
    %cst_20 = arith.constant dense<0.000000e+00> : vector<256x4xf32>
    %20 = tpu.matmul %17, %19, %cst_20 {dimension_numbers = #tpu.dot_dimension_numbers<[1], [0], [0], [1], [0, 0, 1, 1], [], []>} : vector<256x4xf32>, vector<4x4xf32>, vector<256x4xf32> -> vector<256x4xf32>
    %21 = arith.addf %14, %20 : vector<256x4xf32>
    %c0_21 = arith.constant 0 : index
    %c1_22 = arith.constant 1 : index
    %c0_23 = arith.constant 0 : index
    %c0_24 = arith.constant 0 : index
    %22 = vector.load %arg1[%c0_21, %c1_22, %c0_23, %c0_24] : memref<1x18x18x4xf32, #tpu.memory_space<vmem>>, vector<1x16x16x4xf32>
    %23 = vector.shape_cast %22 : vector<1x16x16x4xf32> to vector<16x16x4xf32>
    %24 = vector.shape_cast %23 : vector<16x16x4xf32> to vector<256x4xf32>
    %c3 = arith.constant 3 : index
    %c0_25 = arith.constant 0 : index
    %c0_26 = arith.constant 0 : index
    %25 = vector.load %arg2[%c3, %c0_25, %c0_26] : memref<9x4x4xf32, #tpu.memory_space<vmem>>, vector<1x4x4xf32>
    %26 = vector.shape_cast %25 : vector<1x4x4xf32> to vector<4x4xf32>
    %cst_27 = arith.constant dense<0.000000e+00> : vector<256x4xf32>
    %27 = tpu.matmul %24, %26, %cst_27 {dimension_numbers = #tpu.dot_dimension_numbers<[1], [0], [0], [1], [0, 0, 1, 1], [], []>} : vector<256x4xf32>, vector<4x4xf32>, vector<256x4xf32> -> vector<256x4xf32>
    %28 = arith.addf %21, %27 : vector<256x4xf32>
    %c0_28 = arith.constant 0 : index
    %c1_29 = arith.constant 1 : index
    %c1_30 = arith.constant 1 : index
    %c0_31 = arith.constant 0 : index
    %29 = vector.load %arg1[%c0_28, %c1_29, %c1_30, %c0_31] : memref<1x18x18x4xf32, #tpu.memory_space<vmem>>, vector<1x16x16x4xf32>
    %30 = vector.shape_cast %29 : vector<1x16x16x4xf32> to vector<16x16x4xf32>
    %31 = vector.shape_cast %30 : vector<16x16x4xf32> to vector<256x4xf32>
    %c4 = arith.constant 4 : index
    %c0_32 = arith.constant 0 : index
    %c0_33 = arith.constant 0 : index
    %32 = vector.load %arg2[%c4, %c0_32, %c0_33] : memref<9x4x4xf32, #tpu.memory_space<vmem>>, vector<1x4x4xf32>
    %33 = vector.shape_cast %32 : vector<1x4x4xf32> to vector<4x4xf32>
    %cst_34 = arith.constant dense<0.000000e+00> : vector<256x4xf32>
    %34 = tpu.matmul %31, %33, %cst_34 {dimension_numbers = #tpu.dot_dimension_numbers<[1], [0], [0], [1], [0, 0, 1, 1], [], []>} : vector<256x4xf32>, vector<4x4xf32>, vector<256x4xf32> -> vector<256x4xf32>
    %35 = arith.addf %28, %34 : vector<256x4xf32>
    %c0_35 = arith.constant 0 : index
    %c1_36 = arith.constant 1 : index
    %c2_37 = arith.constant 2 : index
    %c0_38 = arith.constant 0 : index
    %36 = vector.load %arg1[%c0_35, %c1_36, %c2_37, %c0_38] : memref<1x18x18x4xf32, #tpu.memory_space<vmem>>, vector<1x16x16x4xf32>
    %37 = vector.shape_cast %36 : vector<1x16x16x4xf32> to vector<16x16x4xf32>
    %38 = vector.shape_cast %37 : vector<16x16x4xf32> to vector<256x4xf32>
    %c5 = arith.constant 5 : index
    %c0_39 = arith.constant 0 : index
    %c0_40 = arith.constant 0 : index
    %39 = vector.load %arg2[%c5, %c0_39, %c0_40] : memref<9x4x4xf32, #tpu.memory_space<vmem>>, vector<1x4x4xf32>
    %40 = vector.shape_cast %39 : vector<1x4x4xf32> to vector<4x4xf32>
    %cst_41 = arith.constant dense<0.000000e+00> : vector<256x4xf32>
    %41 = tpu.matmul %38, %40, %cst_41 {dimension_numbers = #tpu.dot_dimension_numbers<[1], [0], [0], [1], [0, 0, 1, 1], [], []>} : vector<256x4xf32>, vector<4x4xf32>, vector<256x4xf32> -> vector<256x4xf32>
    %42 = arith.addf %35, %41 : vector<256x4xf32>
    %c0_42 = arith.constant 0 : index
    %c2_43 = arith.constant 2 : index
    %c0_44 = arith.constant 0 : index
    %c0_45 = arith.constant 0 : index
    %43 = vector.load %arg1[%c0_42, %c2_43, %c0_44, %c0_45] : memref<1x18x18x4xf32, #tpu.memory_space<vmem>>, vector<1x16x16x4xf32>
    %44 = vector.shape_cast %43 : vector<1x16x16x4xf32> to vector<16x16x4xf32>
    %45 = vector.shape_cast %44 : vector<16x16x4xf32> to vector<256x4xf32>
    %c6 = arith.constant 6 : index
    %c0_46 = arith.constant 0 : index
    %c0_47 = arith.constant 0 : index
    %46 = vector.load %arg2[%c6, %c0_46, %c0_47] : memref<9x4x4xf32, #tpu.memory_space<vmem>>, vector<1x4x4xf32>
    %47 = vector.shape_cast %46 : vector<1x4x4xf32> to vector<4x4xf32>
    %cst_48 = arith.constant dense<0.000000e+00> : vector<256x4xf32>
    %48 = tpu.matmul %45, %47, %cst_48 {dimension_numbers = #tpu.dot_dimension_numbers<[1], [0], [0], [1], [0, 0, 1, 1], [], []>} : vector<256x4xf32>, vector<4x4xf32>, vector<256x4xf32> -> vector<256x4xf32>
    %49 = arith.addf %42, %48 : vector<256x4xf32>
    %c0_49 = arith.constant 0 : index
    %c2_50 = arith.constant 2 : index
    %c1_51 = arith.constant 1 : index
    %c0_52 = arith.constant 0 : index
    %50 = vector.load %arg1[%c0_49, %c2_50, %c1_51, %c0_52] : memref<1x18x18x4xf32, #tpu.memory_space<vmem>>, vector<1x16x16x4xf32>
    %51 = vector.shape_cast %50 : vector<1x16x16x4xf32> to vector<16x16x4xf32>
    %52 = vector.shape_cast %51 : vector<16x16x4xf32> to vector<256x4xf32>
    %c7 = arith.constant 7 : index
    %c0_53 = arith.constant 0 : index
    %c0_54 = arith.constant 0 : index
    %53 = vector.load %arg2[%c7, %c0_53, %c0_54] : memref<9x4x4xf32, #tpu.memory_space<vmem>>, vector<1x4x4xf32>
    %54 = vector.shape_cast %53 : vector<1x4x4xf32> to vector<4x4xf32>
    %cst_55 = arith.constant dense<0.000000e+00> : vector<256x4xf32>
    %55 = tpu.matmul %52, %54, %cst_55 {dimension_numbers = #tpu.dot_dimension_numbers<[1], [0], [0], [1], [0, 0, 1, 1], [], []>} : vector<256x4xf32>, vector<4x4xf32>, vector<256x4xf32> -> vector<256x4xf32>
    %56 = arith.addf %49, %55 : vector<256x4xf32>
    %c0_56 = arith.constant 0 : index
    %c2_57 = arith.constant 2 : index
    %c2_58 = arith.constant 2 : index
    %c0_59 = arith.constant 0 : index
    %57 = vector.load %arg1[%c0_56, %c2_57, %c2_58, %c0_59] : memref<1x18x18x4xf32, #tpu.memory_space<vmem>>, vector<1x16x16x4xf32>
    %58 = vector.shape_cast %57 : vector<1x16x16x4xf32> to vector<16x16x4xf32>
    %59 = vector.shape_cast %58 : vector<16x16x4xf32> to vector<256x4xf32>
    %c8 = arith.constant 8 : index
    %c0_60 = arith.constant 0 : index
    %c0_61 = arith.constant 0 : index
    %60 = vector.load %arg2[%c8, %c0_60, %c0_61] : memref<9x4x4xf32, #tpu.memory_space<vmem>>, vector<1x4x4xf32>
    %61 = vector.shape_cast %60 : vector<1x4x4xf32> to vector<4x4xf32>
    %cst_62 = arith.constant dense<0.000000e+00> : vector<256x4xf32>
    %62 = tpu.matmul %59, %61, %cst_62 {dimension_numbers = #tpu.dot_dimension_numbers<[1], [0], [0], [1], [0, 0, 1, 1], [], []>} : vector<256x4xf32>, vector<4x4xf32>, vector<256x4xf32> -> vector<256x4xf32>
    %63 = arith.addf %56, %62 : vector<256x4xf32>
    %c0_63 = arith.constant 0 : index
    %c0_64 = arith.constant 0 : index
    %64 = vector.load %arg4[%c0_63, %c0_64] : memref<1x4xf32, #tpu.memory_space<vmem>>, vector<1x4xf32>
    %65 = vector.broadcast %64 : vector<1x4xf32> to vector<256x4xf32>
    %66 = arith.mulf %63, %65 : vector<256x4xf32>
    %c0_65 = arith.constant 0 : index
    %c0_66 = arith.constant 0 : index
    %67 = vector.load %arg5[%c0_65, %c0_66] : memref<1x4xf32, #tpu.memory_space<vmem>>, vector<1x4xf32>
    %68 = vector.broadcast %67 : vector<1x4xf32> to vector<256x4xf32>
    %69 = arith.addf %66, %68 : vector<256x4xf32>
    %cst_67 = arith.constant 0.000000e+00 : f32
    %70 = vector.broadcast %cst_67 : f32 to vector<256x4xf32>
    %71 = arith.maximumf %69, %70 : vector<256x4xf32>
    %cst_68 = arith.constant 0.000000e+00 : f32
    %72 = vector.broadcast %cst_68 : f32 to vector<18x18x4xf32>
    %c0_69 = arith.constant 0 : index
    %c0_70 = arith.constant 0 : index
    %c0_71 = arith.constant 0 : index
    %73 = vector.load %arg9[%c0_69, %c0_70, %c0_71] : memref<18x18x4xf32, #tpu.memory_space<vmem>>, vector<18x18x4xf32>
    tpu.vector_store %arg9[%c0_69, %c0_70, %c0_71], %72 {strides = array<i32>} : memref<18x18x4xf32, #tpu.memory_space<vmem>>, vector<18x18x4xf32>,
    %74 = vector.shape_cast %71 : vector<256x4xf32> to vector<16x16x4xf32>
    %c1_72 = arith.constant 1 : index
    %c1_73 = arith.constant 1 : index
    %c0_74 = arith.constant 0 : index
    %75 = vector.load %arg9[%c1_72, %c1_73, %c0_74] : memref<18x18x4xf32, #tpu.memory_space<vmem>>, vector<16x16x4xf32>
    tpu.vector_store %arg9[%c1_72, %c1_73, %c0_74], %74 {strides = array<i32>} : memref<18x18x4xf32, #tpu.memory_space<vmem>>, vector<16x16x4xf32>,
    %cst_75 = arith.constant 0.000000e+00 : f32
    %76 = vector.broadcast %cst_75 : f32 to vector<4x256xf32>
    %c0_76 = arith.constant 0 : index
    %c0_77 = arith.constant 0 : index
    %c0_78 = arith.constant 0 : index
    %77 = vector.load %arg9[%c0_76, %c0_77, %c0_78] : memref<18x18x4xf32, #tpu.memory_space<vmem>>, vector<16x16x4xf32>
    %78 = vector.shape_cast %77 : vector<16x16x4xf32> to vector<256x4xf32>
    %c0_79 = arith.constant 0 : index
    %c0_80 = arith.constant 0 : index
    %c0_81 = arith.constant 0 : index
    %79 = vector.load %arg3[%c0_79, %c0_80, %c0_81] : memref<9x4x4xf32, #tpu.memory_space<vmem>>, vector<1x4x4xf32>
    %80 = vector.shape_cast %79 : vector<1x4x4xf32> to vector<4x4xf32>
    %cst_82 = arith.constant dense<0.000000e+00> : vector<4x256xf32>
    %81 = tpu.matmul %80, %78, %cst_82 {dimension_numbers = #tpu.dot_dimension_numbers<[1], [1], [0], [0], [0, 0, 1, 0], [], []>} : vector<4x4xf32>, vector<256x4xf32>, vector<4x256xf32> -> vector<4x256xf32>
    %82 = arith.addf %76, %81 : vector<4x256xf32>
    %c0_83 = arith.constant 0 : index
    %c1_84 = arith.constant 1 : index
    %c0_85 = arith.constant 0 : index
    %83 = vector.load %arg9[%c0_83, %c1_84, %c0_85] : memref<18x18x4xf32, #tpu.memory_space<vmem>>, vector<16x16x4xf32>
    %84 = vector.shape_cast %83 : vector<16x16x4xf32> to vector<256x4xf32>
    %c1_86 = arith.constant 1 : index
    %c0_87 = arith.constant 0 : index
    %c0_88 = arith.constant 0 : index
    %85 = vector.load %arg3[%c1_86, %c0_87, %c0_88] : memref<9x4x4xf32, #tpu.memory_space<vmem>>, vector<1x4x4xf32>
    %86 = vector.shape_cast %85 : vector<1x4x4xf32> to vector<4x4xf32>
    %cst_89 = arith.constant dense<0.000000e+00> : vector<4x256xf32>
    %87 = tpu.matmul %86, %84, %cst_89 {dimension_numbers = #tpu.dot_dimension_numbers<[1], [1], [0], [0], [0, 0, 1, 0], [], []>} : vector<4x4xf32>, vector<256x4xf32>, vector<4x256xf32> -> vector<4x256xf32>
    %88 = arith.addf %82, %87 : vector<4x256xf32>
    %c0_90 = arith.constant 0 : index
    %c2_91 = arith.constant 2 : index
    %c0_92 = arith.constant 0 : index
    %89 = vector.load %arg9[%c0_90, %c2_91, %c0_92] : memref<18x18x4xf32, #tpu.memory_space<vmem>>, vector<16x16x4xf32>
    %90 = vector.shape_cast %89 : vector<16x16x4xf32> to vector<256x4xf32>
    %c2_93 = arith.constant 2 : index
    %c0_94 = arith.constant 0 : index
    %c0_95 = arith.constant 0 : index
    %91 = vector.load %arg3[%c2_93, %c0_94, %c0_95] : memref<9x4x4xf32, #tpu.memory_space<vmem>>, vector<1x4x4xf32>
    %92 = vector.shape_cast %91 : vector<1x4x4xf32> to vector<4x4xf32>
    %cst_96 = arith.constant dense<0.000000e+00> : vector<4x256xf32>
    %93 = tpu.matmul %92, %90, %cst_96 {dimension_numbers = #tpu.dot_dimension_numbers<[1], [1], [0], [0], [0, 0, 1, 0], [], []>} : vector<4x4xf32>, vector<256x4xf32>, vector<4x256xf32> -> vector<4x256xf32>
    %94 = arith.addf %88, %93 : vector<4x256xf32>
    %c1_97 = arith.constant 1 : index
    %c0_98 = arith.constant 0 : index
    %c0_99 = arith.constant 0 : index
    %95 = vector.load %arg9[%c1_97, %c0_98, %c0_99] : memref<18x18x4xf32, #tpu.memory_space<vmem>>, vector<16x16x4xf32>
    %96 = vector.shape_cast %95 : vector<16x16x4xf32> to vector<256x4xf32>
    %c3_100 = arith.constant 3 : index
    %c0_101 = arith.constant 0 : index
    %c0_102 = arith.constant 0 : index
    %97 = vector.load %arg3[%c3_100, %c0_101, %c0_102] : memref<9x4x4xf32, #tpu.memory_space<vmem>>, vector<1x4x4xf32>
    %98 = vector.shape_cast %97 : vector<1x4x4xf32> to vector<4x4xf32>
    %cst_103 = arith.constant dense<0.000000e+00> : vector<4x256xf32>
    %99 = tpu.matmul %98, %96, %cst_103 {dimension_numbers = #tpu.dot_dimension_numbers<[1], [1], [0], [0], [0, 0, 1, 0], [], []>} : vector<4x4xf32>, vector<256x4xf32>, vector<4x256xf32> -> vector<4x256xf32>
    %100 = arith.addf %94, %99 : vector<4x256xf32>
    %c1_104 = arith.constant 1 : index
    %c1_105 = arith.constant 1 : index
    %c0_106 = arith.constant 0 : index
    %101 = vector.load %arg9[%c1_104, %c1_105, %c0_106] : memref<18x18x4xf32, #tpu.memory_space<vmem>>, vector<16x16x4xf32>
    %102 = vector.shape_cast %101 : vector<16x16x4xf32> to vector<256x4xf32>
    %c4_107 = arith.constant 4 : index
    %c0_108 = arith.constant 0 : index
    %c0_109 = arith.constant 0 : index
    %103 = vector.load %arg3[%c4_107, %c0_108, %c0_109] : memref<9x4x4xf32, #tpu.memory_space<vmem>>, vector<1x4x4xf32>
    %104 = vector.shape_cast %103 : vector<1x4x4xf32> to vector<4x4xf32>
    %cst_110 = arith.constant dense<0.000000e+00> : vector<4x256xf32>
    %105 = tpu.matmul %104, %102, %cst_110 {dimension_numbers = #tpu.dot_dimension_numbers<[1], [1], [0], [0], [0, 0, 1, 0], [], []>} : vector<4x4xf32>, vector<256x4xf32>, vector<4x256xf32> -> vector<4x256xf32>
    %106 = arith.addf %100, %105 : vector<4x256xf32>
    %c1_111 = arith.constant 1 : index
    %c2_112 = arith.constant 2 : index
    %c0_113 = arith.constant 0 : index
    %107 = vector.load %arg9[%c1_111, %c2_112, %c0_113] : memref<18x18x4xf32, #tpu.memory_space<vmem>>, vector<16x16x4xf32>
    %108 = vector.shape_cast %107 : vector<16x16x4xf32> to vector<256x4xf32>
    %c5_114 = arith.constant 5 : index
    %c0_115 = arith.constant 0 : index
    %c0_116 = arith.constant 0 : index
    %109 = vector.load %arg3[%c5_114, %c0_115, %c0_116] : memref<9x4x4xf32, #tpu.memory_space<vmem>>, vector<1x4x4xf32>
    %110 = vector.shape_cast %109 : vector<1x4x4xf32> to vector<4x4xf32>
    %cst_117 = arith.constant dense<0.000000e+00> : vector<4x256xf32>
    %111 = tpu.matmul %110, %108, %cst_117 {dimension_numbers = #tpu.dot_dimension_numbers<[1], [1], [0], [0], [0, 0, 1, 0], [], []>} : vector<4x4xf32>, vector<256x4xf32>, vector<4x256xf32> -> vector<4x256xf32>
    %112 = arith.addf %106, %111 : vector<4x256xf32>
    %c2_118 = arith.constant 2 : index
    %c0_119 = arith.constant 0 : index
    %c0_120 = arith.constant 0 : index
    %113 = vector.load %arg9[%c2_118, %c0_119, %c0_120] : memref<18x18x4xf32, #tpu.memory_space<vmem>>, vector<16x16x4xf32>
    %114 = vector.shape_cast %113 : vector<16x16x4xf32> to vector<256x4xf32>
    %c6_121 = arith.constant 6 : index
    %c0_122 = arith.constant 0 : index
    %c0_123 = arith.constant 0 : index
    %115 = vector.load %arg3[%c6_121, %c0_122, %c0_123] : memref<9x4x4xf32, #tpu.memory_space<vmem>>, vector<1x4x4xf32>
    %116 = vector.shape_cast %115 : vector<1x4x4xf32> to vector<4x4xf32>
    %cst_124 = arith.constant dense<0.000000e+00> : vector<4x256xf32>
    %117 = tpu.matmul %116, %114, %cst_124 {dimension_numbers = #tpu.dot_dimension_numbers<[1], [1], [0], [0], [0, 0, 1, 0], [], []>} : vector<4x4xf32>, vector<256x4xf32>, vector<4x256xf32> -> vector<4x256xf32>
    %118 = arith.addf %112, %117 : vector<4x256xf32>
    %c2_125 = arith.constant 2 : index
    %c1_126 = arith.constant 1 : index
    %c0_127 = arith.constant 0 : index
    %119 = vector.load %arg9[%c2_125, %c1_126, %c0_127] : memref<18x18x4xf32, #tpu.memory_space<vmem>>, vector<16x16x4xf32>
    %120 = vector.shape_cast %119 : vector<16x16x4xf32> to vector<256x4xf32>
    %c7_128 = arith.constant 7 : index
    %c0_129 = arith.constant 0 : index
    %c0_130 = arith.constant 0 : index
    %121 = vector.load %arg3[%c7_128, %c0_129, %c0_130] : memref<9x4x4xf32, #tpu.memory_space<vmem>>, vector<1x4x4xf32>
    %122 = vector.shape_cast %121 : vector<1x4x4xf32> to vector<4x4xf32>
    %cst_131 = arith.constant dense<0.000000e+00> : vector<4x256xf32>
    %123 = tpu.matmul %122, %120, %cst_131 {dimension_numbers = #tpu.dot_dimension_numbers<[1], [1], [0], [0], [0, 0, 1, 0], [], []>} : vector<4x4xf32>, vector<256x4xf32>, vector<4x256xf32> -> vector<4x256xf32>
    %124 = arith.addf %118, %123 : vector<4x256xf32>
    %c2_132 = arith.constant 2 : index
    %c2_133 = arith.constant 2 : index
    %c0_134 = arith.constant 0 : index
    %125 = vector.load %arg9[%c2_132, %c2_133, %c0_134] : memref<18x18x4xf32, #tpu.memory_space<vmem>>, vector<16x16x4xf32>
    %126 = vector.shape_cast %125 : vector<16x16x4xf32> to vector<256x4xf32>
    %c8_135 = arith.constant 8 : index
    %c0_136 = arith.constant 0 : index
    %c0_137 = arith.constant 0 : index
    %127 = vector.load %arg3[%c8_135, %c0_136, %c0_137] : memref<9x4x4xf32, #tpu.memory_space<vmem>>, vector<1x4x4xf32>
    %128 = vector.shape_cast %127 : vector<1x4x4xf32> to vector<4x4xf32>
    %cst_138 = arith.constant dense<0.000000e+00> : vector<4x256xf32>
    %129 = tpu.matmul %128, %126, %cst_138 {dimension_numbers = #tpu.dot_dimension_numbers<[1], [1], [0], [0], [0, 0, 1, 0], [], []>} : vector<4x4xf32>, vector<256x4xf32>, vector<4x256xf32> -> vector<4x256xf32>
    %130 = arith.addf %124, %129 : vector<4x256xf32>
    %c0_139 = arith.constant 0 : index
    %c0_140 = arith.constant 0 : index
    %131 = vector.load %arg6[%c0_139, %c0_140] : memref<4x1xf32, #tpu.memory_space<vmem>>, vector<4x1xf32>
    %132 = vector.broadcast %131 : vector<4x1xf32> to vector<4x256xf32>
    %133 = arith.mulf %130, %132 : vector<4x256xf32>
    %c0_141 = arith.constant 0 : index
    %c0_142 = arith.constant 0 : index
    %134 = vector.load %arg7[%c0_141, %c0_142] : memref<4x1xf32, #tpu.memory_space<vmem>>, vector<4x1xf32>
    %135 = vector.broadcast %134 : vector<4x1xf32> to vector<4x256xf32>
    %136 = arith.addf %133, %135 : vector<4x256xf32>
    %cst_143 = arith.constant 0.000000e+00 : f32
    %137 = vector.broadcast %cst_143 : f32 to vector<4x256xf32>
    %138 = arith.maximumf %136, %137 : vector<4x256xf32>
    %c0_144 = arith.constant 0 : index
    %c0_145 = arith.constant 0 : index
    %c0_146 = arith.constant 0 : index
    %139 = vector.load %arg8[%c0_144, %c0_145, %c0_146] : memref<1x4x256xf32, #tpu.memory_space<vmem>>, vector<1x4x256xf32>
    %140 = vector.shape_cast %139 : vector<1x4x256xf32> to vector<4x256xf32>
    %141 = vector.shape_cast %138 : vector<4x256xf32> to vector<1x4x256xf32>
    tpu.vector_store %arg8[%c0_144, %c0_145, %c0_146], %141 {strides = array<i32>} : memref<1x4x256xf32, #tpu.memory_space<vmem>>, vector<1x4x256xf32>,
    return
  }
  func.func @transform_0(%arg0: i32) -> (i32, i32, i32, i32) {
    %c0_i32 = arith.constant 0 : i32
    %c0_i32_0 = arith.constant 0 : i32
    %c0_i32_1 = arith.constant 0 : i32
    %c0_i32_2 = arith.constant 0 : i32
    return %arg0, %c0_i32, %c0_i32_0, %c0_i32_1 : i32, i32, i32, i32
  }
  func.func @transform_1(%arg0: i32) -> (i32, i32, i32) {
    %c0_i32 = arith.constant 0 : i32
    %c0_i32_0 = arith.constant 0 : i32
    %c0_i32_1 = arith.constant 0 : i32
    %c0_i32_2 = arith.constant 0 : i32
    return %c0_i32, %c0_i32_0, %c0_i32_1 : i32, i32, i32
  }
  func.func @transform_2(%arg0: i32) -> (i32, i32, i32) {
    %c0_i32 = arith.constant 0 : i32
    %c0_i32_0 = arith.constant 0 : i32
    %c0_i32_1 = arith.constant 0 : i32
    %c0_i32_2 = arith.constant 0 : i32
    return %c0_i32, %c0_i32_0, %c0_i32_1 : i32, i32, i32
  }
  func.func @transform_3(%arg0: i32) -> (i32, i32) {
    %c0_i32 = arith.constant 0 : i32
    %c0_i32_0 = arith.constant 0 : i32
    %c0_i32_1 = arith.constant 0 : i32
    return %c0_i32, %c0_i32_0 : i32, i32
  }
  func.func @transform_4(%arg0: i32) -> (i32, i32) {
    %c0_i32 = arith.constant 0 : i32
    %c0_i32_0 = arith.constant 0 : i32
    %c0_i32_1 = arith.constant 0 : i32
    return %c0_i32, %c0_i32_0 : i32, i32
  }
  func.func @transform_5(%arg0: i32) -> (i32, i32) {
    %c0_i32 = arith.constant 0 : i32
    %c0_i32_0 = arith.constant 0 : i32
    %c0_i32_1 = arith.constant 0 : i32
    return %c0_i32, %c0_i32_0 : i32, i32
  }
  func.func @transform_6(%arg0: i32) -> (i32, i32) {
    %c0_i32 = arith.constant 0 : i32
    %c0_i32_0 = arith.constant 0 : i32
    %c0_i32_1 = arith.constant 0 : i32
    return %c0_i32, %c0_i32_0 : i32, i32
  }
  func.func @transform_7(%arg0: i32) -> (i32, i32, i32) {
    %c0_i32 = arith.constant 0 : i32
    %c0_i32_0 = arith.constant 0 : i32
    %c0_i32_1 = arith.constant 0 : i32
    return %arg0, %c0_i32, %c0_i32_0 : i32, i32, i32
  }
}

</mosaic_0001>

<llo_original>
// kernel: _forward.1
$region0: #{_forward.1}
  #allocation0 [shape = 'u32[]', space=smem, size = 0x4, offset = 0x4, fixed_abs, tag = 'smem constant byte address 0x4 - core index']
  #allocation1 [shape = 'u32[144,128]{1,0:T(1,128)}', space=vmem, size = 0x12000, scoped, tag = 'internal scratch']
  #allocation2 [shape = 'f32[18,18,4]{2,1,0:T(8,128)}', space=vmem, size = 0x36000, scoped, tag = 'scratch operand']
  %s0 = inlined_call_operand.vmem [shape: f32[2,18,18,4], index: 0, kind: input, shape index: {}]
  %s1 = inlined_call_operand.vmem [shape: f32[9,4,4], index: 1, kind: input, shape index: {}]
  %s2 = inlined_call_operand.vmem [shape: f32[9,4,4], index: 2, kind: input, shape index: {}]
  %s3 = inlined_call_operand.vmem [shape: f32[1,4], index: 3, kind: input, shape index: {}]
  %s4 = inlined_call_operand.vmem [shape: f32[1,4], index: 4, kind: input, shape index: {}]
  %s5 = inlined_call_operand.vmem [shape: f32[4,1], index: 5, kind: input, shape index: {}]
  %s6 = inlined_call_operand.vmem [shape: f32[4,1], index: 6, kind: input, shape index: {}]
  %s7 = inlined_call_operand.vmem [shape: f32[2,4,256], index: 7, kind: output, shape index: {}]
  %s8 = sld [smem:[#allocation0]]
  $region61: #{_forward.1} parent=0
    _
  %s10 = ssub.s32 1, %s8
  %s11 = scalar_select 0, %s10, %s8
  loop: start=0, step=1, limit=4
  $region2: #{_forward.1} parent=0 // loop_pre_header
    _
  $region3: #{_forward.1} parent=0 // loop_header
    %s13 = sphi 0, %s17
    %p14 = scmp.ge.s32.totalorder %s13, 4
    %s23 = sphi 0, %s25
    %s26 = sphi 0, %s23
    %s27 = sphi 0, %s26
    %s43 = sphi 0, %s27
    %s47 = sphi 0, %s47
    %s49 = sphi 0, %s47
    %s50 = sphi 0, %s49
    %s64 = sphi 0, %s50
    %s68 = sphi 0, %s68
    %s70 = sphi 0, %s68
    %s71 = sphi 0, %s70
    %s85 = sphi 0, %s71
    %s89 = sphi 0, %s89
    %s91 = sphi 0, %s89
    %s92 = sphi 0, %s91
    %s106 = sphi 0, %s92
    %s110 = sphi 0, %s110
    %s112 = sphi 0, %s110
    %s113 = sphi 0, %s112
    %s127 = sphi 0, %s113
    %s131 = sphi 0, %s131
    %s133 = sphi 0, %s131
    %s134 = sphi 0, %s133
    %s148 = sphi 0, %s134
    %s152 = sphi 0, %s152
    %s154 = sphi 0, %s152
    %s155 = sphi 0, %s154
    %s169 = sphi 0, %s155
    %s175 = sphi 0, %s177
    %s178 = sphi 0, %s175
    %s179 = sphi 0, %s178
    %s195 = sphi 0, %s179
  $region4: #{_forward.1} parent=0 // loop_header_branch
    %16 = sbr.rel (%p14) target = $region8
  $region5: #{_forward.1} parent=0 // loop_body
    %s18 = ssub.s32 %s13, 1
    %s19 = ssub.s32 %s13, 2
    %s20 = sadd.s32 %s13, 1
    %s21 = ssub.s32 %s13, %s20
    %p22 = scmp.eq.s32.totalorder %s21, 0
    %s24 = sadd.s32 %s23, 1
    %s25 = scalar_select %p22, %s23, %s24
    %p28 = pneg %p22
    %p29 = scmp.eq.s32.totalorder %s13, 1
    %p30 = por %p28, %p29
    %p31 = scmp.ne.s32.totalorder %s23, %s26
    %p32 = scmp.eq.s32.totalorder %s13, 0
    %p33 = por %p31, %p32
    %p34 = scmp.ne.s32.totalorder %s23, %s26
    %p35 = scmp.eq.s32.totalorder %s18, 1
    %p36 = por %p34, %p35
    %p37 = scmp.ne.s32.totalorder %s26, %s27
    %p38 = scmp.eq.s32.totalorder %s18, 0
    %p39 = por %p37, %p38
    %p40 = scmp.ne.s32.totalorder %s26, %s27
    %p41 = scmp.eq.s32.totalorder %s19, 1
    %p42 = por %p40, %p41
    %p44 = scmp.ne.s32.totalorder %s27, %s43
    %p45 = scmp.eq.s32.totalorder %s19, 0
    %p46 = por %p44, %p45
    %s48 = sadd.s32 %s47, 1
    %p51 = scmp.eq.s32.totalorder %s13, 1
    %p52 = scmp.ne.s32.totalorder %s47, %s49
    %p53 = scmp.eq.s32.totalorder %s13, 0
    %p54 = por %p52, %p53
    %p55 = scmp.ne.s32.totalorder %s47, %s49
    %p56 = scmp.eq.s32.totalorder %s18, 1
    %p57 = por %p55, %p56
    %p58 = scmp.ne.s32.totalorder %s49, %s50
    %p59 = scmp.eq.s32.totalorder %s18, 0
    %p60 = por %p58, %p59
    %p61 = scmp.ne.s32.totalorder %s49, %s50
    %p62 = scmp.eq.s32.totalorder %s19, 1
    %p63 = por %p61, %p62
    %p65 = scmp.ne.s32.totalorder %s50, %s64
    %p66 = scmp.eq.s32.totalorder %s19, 0
    %p67 = por %p65, %p66
    %s69 = sadd.s32 %s68, 1
    %p72 = scmp.eq.s32.totalorder %s13, 1
    %p73 = scmp.ne.s32.totalorder %s68, %s70
    %p74 = scmp.eq.s32.totalorder %s13, 0
    %p75 = por %p73, %p74
    %p76 = scmp.ne.s32.totalorder %s68, %s70
    %p77 = scmp.eq.s32.totalorder %s18, 1
    %p78 = por %p76, %p77
    %p79 = scmp.ne.s32.totalorder %s70, %s71
    %p80 = scmp.eq.s32.totalorder %s18, 0
    %p81 = por %p79, %p80
    %p82 = scmp.ne.s32.totalorder %s70, %s71
    %p83 = scmp.eq.s32.totalorder %s19, 1
    %p84 = por %p82, %p83
    %p86 = scmp.ne.s32.totalorder %s71, %s85
    %p87 = scmp.eq.s32.totalorder %s19, 0
    %p88 = por %p86, %p87
    %s90 = sadd.s32 %s89, 1
    %p93 = scmp.eq.s32.totalorder %s13, 1
    %p94 = scmp.ne.s32.totalorder %s89, %s91
    %p95 = scmp.eq.s32.totalorder %s13, 0
    %p96 = por %p94, %p95
    %p97 = scmp.ne.s32.totalorder %s89, %s91
    %p98 = scmp.eq.s32.totalorder %s18, 1
    %p99 = por %p97, %p98
    %p100 = scmp.ne.s32.totalorder %s91, %s92
    %p101 = scmp.eq.s32.totalorder %s18, 0
    %p102 = por %p100, %p101
    %p103 = scmp.ne.s32.totalorder %s91, %s92
    %p104 = scmp.eq.s32.totalorder %s19, 1
    %p105 = por %p103, %p104
    %p107 = scmp.ne.s32.totalorder %s92, %s106
    %p108 = scmp.eq.s32.totalorder %s19, 0
    %p109 = por %p107, %p108
    %s111 = sadd.s32 %s110, 1
    %p114 = scmp.eq.s32.totalorder %s13, 1
    %p115 = scmp.ne.s32.totalorder %s110, %s112
    %p116 = scmp.eq.s32.totalorder %s13, 0
    %p117 = por %p115, %p116
    %p118 = scmp.ne.s32.totalorder %s110, %s112
    %p119 = scmp.eq.s32.totalorder %s18, 1
    %p120 = por %p118, %p119
    %p121 = scmp.ne.s32.totalorder %s112, %s113
    %p122 = scmp.eq.s32.totalorder %s18, 0
    %p123 = por %p121, %p122
    %p124 = scmp.ne.s32.totalorder %s112, %s113
    %p125 = scmp.eq.s32.totalorder %s19, 1
    %p126 = por %p124, %p125
    %p128 = scmp.ne.s32.totalorder %s113, %s127
    %p129 = scmp.eq.s32.totalorder %s19, 0
    %p130 = por %p128, %p129
    %s132 = sadd.s32 %s131, 1
    %p135 = scmp.eq.s32.totalorder %s13, 1
    %p136 = scmp.ne.s32.totalorder %s131, %s133
    %p137 = scmp.eq.s32.totalorder %s13, 0
    %p138 = por %p136, %p137
    %p139 = scmp.ne.s32.totalorder %s131, %s133
    %p140 = scmp.eq.s32.totalorder %s18, 1
    %p141 = por %p139, %p140
    %p142 = scmp.ne.s32.totalorder %s133, %s134
    %p143 = scmp.eq.s32.totalorder %s18, 0
    %p144 = por %p142, %p143
    %p145 = scmp.ne.s32.totalorder %s133, %s134
    %p146 = scmp.eq.s32.totalorder %s19, 1
    %p147 = por %p145, %p146
    %p149 = scmp.ne.s32.totalorder %s134, %s148
    %p150 = scmp.eq.s32.totalorder %s19, 0
    %p151 = por %p149, %p150
    %s153 = sadd.s32 %s152, 1
    %p156 = scmp.eq.s32.totalorder %s13, 1
    %p157 = scmp.ne.s32.totalorder %s152, %s154
    %p158 = scmp.eq.s32.totalorder %s13, 0
    %p159 = por %p157, %p158
    %p160 = scmp.ne.s32.totalorder %s152, %s154
    %p161 = scmp.eq.s32.totalorder %s18, 1
    %p162 = por %p160, %p161
    %p163 = scmp.ne.s32.totalorder %s154, %s155
    %p164 = scmp.eq.s32.totalorder %s18, 0
    %p165 = por %p163, %p164
    %p166 = scmp.ne.s32.totalorder %s154, %s155
    %p167 = scmp.eq.s32.totalorder %s19, 1
    %p168 = por %p166, %p167
    %p170 = scmp.ne.s32.totalorder %s155, %s169
    %p171 = scmp.eq.s32.totalorder %s19, 0
    %p172 = por %p170, %p171
    %s173 = ssub.s32 %s13, %s20
    %p174 = scmp.eq.s32.totalorder %s173, 0
    %s176 = sadd.s32 %s175, 1
    %s177 = scalar_select %p174, %s175, %s176
    %p180 = pneg %p174
    %p181 = scmp.eq.s32.totalorder %s13, 1
    %p182 = por %p180, %p181
    %p183 = scmp.ne.s32.totalorder %s175, %s178
    %p184 = scmp.eq.s32.totalorder %s13, 0
    %p185 = por %p183, %p184
    %p186 = scmp.ne.s32.totalorder %s175, %s178
    %p187 = scmp.eq.s32.totalorder %s18, 1
    %p188 = por %p186, %p187
    %p189 = scmp.ne.s32.totalorder %s178, %s179
    %p190 = scmp.eq.s32.totalorder %s18, 0
    %p191 = por %p189, %p190
    %p192 = scmp.ne.s32.totalorder %s178, %s179
    %p193 = scmp.eq.s32.totalorder %s19, 1
    %p194 = por %p192, %p193
    %p196 = scmp.ne.s32.totalorder %s179, %s195
    %p197 = scmp.eq.s32.totalorder %s19, 0
    %p198 = por %p196, %p197
    %p199 = scmp.le.s32.totalorder 1, %s13
    %p200 = scmp.lt.s32.totalorder %s13, 3
    %p201 = pnand %p199, %p200
    %p202 = pneg %p201
    // Predicated region
    $region9: #{_forward.1} parent=5 // pred_check
      _
    $region10: #{_forward.1} parent=5 // pred_check_branch
      %204 = sbr.rel (%p201) target = $region12
    $region11: #{_forward.1} parent=5 // pred_region
      %s205 = ssub.s32 %s13, 1
      // Predicated region
      $region13: #{_forward.1} parent=11 // pred_check
        %p206 = pneg %p60
      $region14: #{_forward.1} parent=11 // pred_check_branch
        %208 = sbr.rel (%p206) target = $region16
      $region15: #{_forward.1} parent=11 // pred_region
        _
      $region16: #{_forward.1} parent=11 // pred_fallthru
        _
      // Predicated region
      $region17: #{_forward.1} parent=11 // pred_check
        %p209 = pneg %p81
      $region18: #{_forward.1} parent=11 // pred_check_branch
        %211 = sbr.rel (%p209) target = $region20
      $region19: #{_forward.1} parent=11 // pred_region
        _
      $region20: #{_forward.1} parent=11 // pred_fallthru
        _
      // Predicated region
      $region21: #{_forward.1} parent=11 // pred_check
        %p212 = pneg %p102
      $region22: #{_forward.1} parent=11 // pred_check_branch
        %214 = sbr.rel (%p212) target = $region24
      $region23: #{_forward.1} parent=11 // pred_region
        _
      $region24: #{_forward.1} parent=11 // pred_fallthru
        _
      // Predicated region
      $region25: #{_forward.1} parent=11 // pred_check
        %p215 = pneg %p123
      $region26: #{_forward.1} parent=11 // pred_check_branch
        %217 = sbr.rel (%p215) target = $region28
      $region27: #{_forward.1} parent=11 // pred_region
        _
      $region28: #{_forward.1} parent=11 // pred_fallthru
        _
      // Predicated region
      $region29: #{_forward.1} parent=11 // pred_check
        %p218 = pneg %p144
      $region30: #{_forward.1} parent=11 // pred_check_branch
        %220 = sbr.rel (%p218) target = $region32
      $region31: #{_forward.1} parent=11 // pred_region
        _
      $region32: #{_forward.1} parent=11 // pred_fallthru
        _
      // Predicated region
      $region33: #{_forward.1} parent=11 // pred_check
        %p221 = pneg %p165
      $region34: #{_forward.1} parent=11 // pred_check_branch
        %223 = sbr.rel (%p221) target = $region36
      $region35: #{_forward.1} parent=11 // pred_region
        _
      $region36: #{_forward.1} parent=11 // pred_fallthru
        _
    $region12: #{_forward.1} parent=5 // pred_fallthru
      _
    %p224 = scmp.lt.s32.totalorder %s13, 2
    // Predicated region
    $region37: #{_forward.1} parent=5 // pred_check
      %p225 = pneg %p224
    $region38: #{_forward.1} parent=5 // pred_check_branch
      %227 = sbr.rel (%p225) target = $region40
    $region39: #{_forward.1} parent=5 // pred_region
      // Predicated region
      $region41: #{_forward.1} parent=39 // pred_check
        %p228 = pneg %p33
      $region42: #{_forward.1} parent=39 // pred_check_branch
        %230 = sbr.rel (%p228) target = $region44
      $region43: #{_forward.1} parent=39 // pred_region
        %p231 = scmp.lt.s32.totalorder %s13, 1
        %s232 = scalar_select %p231, %s13, 1
        %s233 = smul.addr %s232, 54
        %s234 = smul.addr %s233, 8
        %s235 = scalar_lea.vmem %s0, %s234
      $region44: #{_forward.1} parent=39 // pred_fallthru
        _
    $region40: #{_forward.1} parent=5 // pred_fallthru
      _
    %p236 = scmp.le.s32.totalorder 1, %s13
    %p237 = scmp.lt.s32.totalorder %s13, 3
    %p238 = pnand %p236, %p237
    %p239 = pneg %p238
    // Predicated region
    $region45: #{_forward.1} parent=5 // pred_check
      _
    $region46: #{_forward.1} parent=5 // pred_check_branch
      %241 = sbr.rel (%p238) target = $region48
    $region47: #{_forward.1} parent=5 // pred_region
      %s242 = ssub.s32 %s13, 1
      %p243 = scmp.lt.s32.totalorder %s18, 1
      %s244 = scalar_select %p243, %s18, 1
      %s245 = smul.addr %s244, 54
      %s246 = smul.addr %s245, 8
      %s247 = scalar_lea.vmem %s0, %s246
      %p248 = pneg %p39
      %p249 = pneg %p36
      %p250 = pneg %p60
      %p251 = pneg %p57
      %p252 = pneg %p81
      %p253 = pneg %p78
      %p254 = pneg %p102
      %p255 = pneg %p99
      %p256 = pneg %p123
      %p257 = pneg %p120
      %p258 = pneg %p144
      %p259 = pneg %p141
      %p260 = pneg %p165
      %p261 = pneg %p162
      %p262 = pneg %p191
      %p263 = pneg %p188
      %p264 = scmp.lt.s32.totalorder %s18, 1
      %s265 = scalar_select %p264, %s18, 1
      %s266 = smul.addr %s265, 2
      %s267 = smul.addr %s266, 4
      %s268 = scalar_lea.vmem %s7, %s267
      %p269 = scmp.lt.s32.totalorder %s18, 1
      %s270 = scalar_select %p269, %s18, 1
      %s271 = smul.addr %s270, 54
      %s272 = smul.addr %s271, 8
      %s273 = scalar_lea.vmem %s0, %s272
      %p274 = scmp.lt.s32.totalorder %s18, 1
      %s275 = scalar_select %p274, %s18, 1
      %s276 = smul.addr %s275, 2
      %s277 = smul.addr %s276, 4
      %s278 = scalar_lea.vmem %s7, %s277
      %v279 = vld [vmem:[%s273] sm:$0xff]
      %v280 = vld [vmem:[%s273 + $0x8] sm:$0xff]
      %v281 = vld [vmem:[%s273 + $0x18] sm:$0xff]
      %v282 = vld [vmem:[%s273 + $0x20] sm:$0xff]
      %v283 = vld [vmem:[%s273 + $0x30] sm:$0xff]
      %v284 = vld [vmem:[%s273 + $0x38] sm:$0xff]
      %v285 = vld [vmem:[%s273 + $0x48] sm:$0xff]
      %v286 = vld [vmem:[%s273 + $0x50] sm:$0xff]
      %v287 = vld [vmem:[%s273 + $0x60] sm:$0xff]
      %v288 = vld [vmem:[%s273 + $0x68] sm:$0xff]
      %v289 = vld [vmem:[%s273 + $0x78] sm:$0xff]
      %v290 = vld [vmem:[%s273 + $0x80] sm:$0xff]
      %v291 = vld [vmem:[%s273 + $0x90] sm:$0xff]
      %v292 = vld [vmem:[%s273 + $0x98] sm:$0xff]
      %v293 = vld [vmem:[%s273 + $0xa8] sm:$0xff]
      %v294 = vld [vmem:[%s273 + $0xb0] sm:$0xff]
      %v295 = vld [vmem:[%s273 + $0xc0] sm:$0xff]
      %v296 = vld [vmem:[%s273 + $0xc8] sm:$0xff]
      %v297 = vld [vmem:[%s273 + $0xd8] sm:$0xff]
      %v298 = vld [vmem:[%s273 + $0xe0] sm:$0xff]
      %v299 = vld [vmem:[%s273 + $0xf0] sm:$0xff]
      %v300 = vld [vmem:[%s273 + $0xf8] sm:$0xff]
      %v301 = vld [vmem:[%s273 + $0x108] sm:$0xff]
      %v302 = vld [vmem:[%s273 + $0x110] sm:$0xff]
      %v303 = vld [vmem:[%s273 + $0x120] sm:$0xff]
      %v304 = vld [vmem:[%s273 + $0x128] sm:$0xff]
      %v305 = vld [vmem:[%s273 + $0x138] sm:$0xff]
      %v306 = vld [vmem:[%s273 + $0x140] sm:$0xff]
      %v307 = vld [vmem:[%s273 + $0x150] sm:$0xff]
      %v308 = vld [vmem:[%s273 + $0x158] sm:$0xff]
      %v309 = vld [vmem:[%s273 + $0x168] sm:$0xff]
      %v310 = vld [vmem:[%s273 + $0x170] sm:$0xff]
      %v311 = vld [vmem:[%s1] sm:$0xf]
      %v312 = vld [vmem:[%s273 + $0x1] sm:$0xff]
      %v313 = vld [vmem:[%s273 + $0x9] sm:$0xff]
      %v314 = vld [vmem:[%s273 + $0x19] sm:$0xff]
      %v315 = vld [vmem:[%s273 + $0x21] sm:$0xff]
      %v316 = vld [vmem:[%s273 + $0x31] sm:$0xff]
      %v317 = vld [vmem:[%s273 + $0x39] sm:$0xff]
      %v318 = vld [vmem:[%s273 + $0x49] sm:$0xff]
      %v319 = vld [vmem:[%s273 + $0x51] sm:$0xff]
      %v320 = vld [vmem:[%s273 + $0x61] sm:$0xff]
      %v321 = vld [vmem:[%s273 + $0x69] sm:$0xff]
      %v322 = vld [vmem:[%s273 + $0x79] sm:$0xff]
      %v323 = vld [vmem:[%s273 + $0x81] sm:$0xff]
      %v324 = vld [vmem:[%s273 + $0x91] sm:$0xff]
      %v325 = vld [vmem:[%s273 + $0x99] sm:$0xff]
      %v326 = vld [vmem:[%s273 + $0xa9] sm:$0xff]
      %v327 = vld [vmem:[%s273 + $0xb1] sm:$0xff]
      %v328 = vld [vmem:[%s273 + $0xc1] sm:$0xff]
      %v329 = vld [vmem:[%s273 + $0xc9] sm:$0xff]
      %v330 = vld [vmem:[%s273 + $0xd9] sm:$0xff]
      %v331 = vld [vmem:[%s273 + $0xe1] sm:$0xff]
      %v332 = vld [vmem:[%s273 + $0xf1] sm:$0xff]
      %v333 = vld [vmem:[%s273 + $0xf9] sm:$0xff]
      %v334 = vld [vmem:[%s273 + $0x109] sm:$0xff]
      %v335 = vld [vmem:[%s273 + $0x111] sm:$0xff]
      %v336 = vld [vmem:[%s273 + $0x121] sm:$0xff]
      %v337 = vld [vmem:[%s273 + $0x129] sm:$0xff]
      %v338 = vld [vmem:[%s273 + $0x139] sm:$0xff]
      %v339 = vld [vmem:[%s273 + $0x141] sm:$0xff]
      %v340 = vld [vmem:[%s273 + $0x151] sm:$0xff]
      %v341 = vld [vmem:[%s273 + $0x159] sm:$0xff]
      %v342 = vld [vmem:[%s273 + $0x169] sm:$0xff]
      %v343 = vld [vmem:[%s273 + $0x171] sm:$0xff]
      %s344 = scalar_lea.vmem %s1, 4
      %v345 = vld [vmem:[%s344] sm:$0xf]
      %vm346 = vcmask 31744
      %v348 = vsel %vm346, %v312, 0
      %v351 = vsel %vm346, %v313, 0
      %v354 = vsel %vm346, %v314, 0
      %v357 = vsel %vm346, %v315, 0
      %v360 = vsel %vm346, %v316, 0
      %v363 = vsel %vm346, %v317, 0
      %v366 = vsel %vm346, %v318, 0
      %v369 = vsel %vm346, %v319, 0
      %v372 = vsel %vm346, %v320, 0
      %v375 = vsel %vm346, %v321, 0
      %v378 = vsel %vm346, %v322, 0
      %v381 = vsel %vm346, %v323, 0
      %v384 = vsel %vm346, %v324, 0
      %v387 = vsel %vm346, %v325, 0
      %v390 = vsel %vm346, %v326, 0
      %v393 = vsel %vm346, %v327, 0
      %v396 = vsel %vm346, %v328, 0
      %v399 = vsel %vm346, %v329, 0
      %v402 = vsel %vm346, %v330, 0
      %v405 = vsel %vm346, %v331, 0
      %v408 = vsel %vm346, %v332, 0
      %v411 = vsel %vm346, %v333, 0
      %v414 = vsel %vm346, %v334, 0
      %v417 = vsel %vm346, %v335, 0
      %v420 = vsel %vm346, %v336, 0
      %v423 = vsel %vm346, %v337, 0
      %v426 = vsel %vm346, %v338, 0
      %v429 = vsel %vm346, %v339, 0
      %v432 = vsel %vm346, %v340, 0
      %v435 = vsel %vm346, %v341, 0
      %v438 = vsel %vm346, %v342, 0
      %v441 = vsel %vm346, %v343, 0
      %vm443 = vcmask 1043456
      %v445 = vsel %vm443, %v345, 0
      %447 = vmatprep.subr.mxu0 0.0
      %448 = vmatpush1.msra.mxu0 %v445
      %449 = vmatprep.subr.mxu0 0.0
      %450 = vmatpush1.msra.mxu0 0.0
      %451 = vmatprep.subr.mxu0 0.0
      %452 = vmatpush1.msra.mxu0 0.0
      %453 = vmatprep.subr.mxu0 0.0
      %454 = vmatpush1.msra.mxu0 0.0
      %455 = vmatprep.subr.mxu0 0.0
      %456 = vmatpush1.msra.mxu0 0.0
      %457 = vmatprep.subr.mxu0 0.0
      %458 = vmatpush1.msra.mxu0 0.0
      %459 = vmatprep.subr.mxu0 0.0
      %460 = vmatpush1.msra.mxu0 0.0
      %461 = vmatprep.subr.mxu0 0.0
      %462 = vmatpush1.msra.mxu0 0.0
      %463 = vmatprep.subr.mxu0 0.0
      %464 = vmatpush1.msra.mxu0 0.0
      %465 = vmatprep.subr.mxu0 0.0
      %466 = vmatpush1.msra.mxu0 0.0
      %467 = vmatprep.subr.mxu0 0.0
      %468 = vmatpush1.msra.mxu0 0.0
      %469 = vmatprep.subr.mxu0 0.0
      %470 = vmatpush1.msra.mxu0 0.0
      %471 = vmatprep.subr.mxu0 0.0
      %472 = vmatpush1.msra.mxu0 0.0
      %473 = vmatprep.subr.mxu0 0.0
      %474 = vmatpush1.msra.mxu0 0.0
      %475 = vmatprep.subr.mxu0 0.0
      %476 = vmatpush1.msra.mxu0 0.0
      %477 = vmatprep.subr.mxu0 0.0
      %478 = vmatpush1.msra.mxu0 0.0
      %479 = vmatprep.subr.mxu0 0.0
      %480 = vmatpush1.msra.mxu0 0.0
      %481 = vmatprep.subr.mxu0 0.0
      %482 = vmatpush1.msra.mxu0 0.0
      %483 = vmatprep.subr.mxu0 0.0
      %484 = vmatpush1.msra.mxu0 0.0
      %485 = vmatprep.subr.mxu0 0.0
      %486 = vmatpush1.msra.mxu0 0.0
      %487 = vmatprep.subr.mxu0 0.0
      %488 = vmatpush1.msra.mxu0 0.0
      %489 = vmatprep.subr.mxu0 0.0
      %490 = vmatpush1.msra.mxu0 0.0
      %491 = vmatprep.subr.mxu0 0.0
      %492 = vmatpush1.msra.mxu0 0.0
      %493 = vmatprep.subr.mxu0 0.0
      %494 = vmatpush1.msra.mxu0 0.0
      %495 = vmatprep.subr.mxu0 0.0
      %496 = vmatpush1.msra.mxu0 0.0
      %497 = vmatprep.subr.mxu0 0.0
      %498 = vmatpush1.msra.mxu0 0.0
      %499 = vmatprep.subr.mxu0 0.0
      %500 = vmatpush1.msra.mxu0 0.0
      %501 = vmatprep.subr.mxu0 0.0
      %502 = vmatpush1.msra.mxu0 0.0
      %503 = vmatprep.subr.mxu0 0.0
      %504 = vmatpush1.msra.mxu0 0.0
      %505 = vmatprep.subr.mxu0 0.0
      %506 = vmatpush1.msra.mxu0 0.0
      %507 = vmatprep.subr.mxu0 0.0
      %508 = vmatpush1.msra.mxu0 0.0
      %509 = vmatprep.subr.mxu0 0.0
      %510 = vmatpush1.msra.mxu0 0.0
      %511 = vmatprep.mubr.f32.mxu0 0.0
      %512 = vmatmul.mubr.f32.gmra.mrb[0].mxu0 %v348
      %v513 = vpop.f32.mrb[0].mxu0
      %v514 = vadd.f32 0.0, %v513
      %v515 = vpop.f32.mrb[0].mxu0
      %516 = vmatprep.mubr.f32.mxu0 0.0
      %517 = vmatmul.mubr.f32.gmra.mrb[0].mxu0 %v351
      %v518 = vpop.f32.mrb[0].mxu0
      %v519 = vadd.f32 0.0, %v518
      %v520 = vpop.f32.mrb[0].mxu0
      %521 = vmatprep.mubr.f32.mxu0 0.0
      %522 = vmatmul.mubr.f32.gmra.mrb[0].mxu0 %v354
      %v523 = vpop.f32.mrb[0].mxu0
      %v524 = vadd.f32 0.0, %v523
      %v525 = vpop.f32.mrb[0].mxu0
      %526 = vmatprep.mubr.f32.mxu0 0.0
      %527 = vmatmul.mubr.f32.gmra.mrb[0].mxu0 %v357
      %v528 = vpop.f32.mrb[0].mxu0
      %v529 = vadd.f32 0.0, %v528
      %v530 = vpop.f32.mrb[0].mxu0
      %531 = vmatprep.mubr.f32.mxu0 0.0
      %532 = vmatmul.mubr.f32.gmra.mrb[0].mxu0 %v360
      %v533 = vpop.f32.mrb[0].mxu0
      %v534 = vadd.f32 0.0, %v533
      %v535 = vpop.f32.mrb[0].mxu0
      %536 = vmatprep.mubr.f32.mxu0 0.0
      %537 = vmatmul.mubr.f32.gmra.mrb[0].mxu0 %v363
      %v538 = vpop.f32.mrb[0].mxu0
      %v539 = vadd.f32 0.0, %v538
      %v540 = vpop.f32.mrb[0].mxu0
      %541 = vmatprep.mubr.f32.mxu0 0.0
      %542 = vmatmul.mubr.f32.gmra.mrb[0].mxu0 %v366
      %v543 = vpop.f32.mrb[0].mxu0
      %v544 = vadd.f32 0.0, %v543
      %v545 = vpop.f32.mrb[0].mxu0
      %546 = vmatprep.mubr.f32.mxu0 0.0
      %547 = vmatmul.mubr.f32.gmra.mrb[0].mxu0 %v369
      %v548 = vpop.f32.mrb[0].mxu0
      %v549 = vadd.f32 0.0, %v548
      %v550 = vpop.f32.mrb[0].mxu0
      %551 = vmatprep.mubr.f32.mxu0 0.0
      %552 = vmatmul.mubr.f32.gmra.mrb[0].mxu0 %v372
      %v553 = vpop.f32.mrb[0].mxu0
      %v554 = vadd.f32 0.0, %v553
      %v555 = vpop.f32.mrb[0].mxu0
      %556 = vmatprep.mubr.f32.mxu0 0.0
      %557 = vmatmul.mubr.f32.gmra.mrb[0].mxu0 %v375
      %v558 = vpop.f32.mrb[0].mxu0
      %v559 = vadd.f32 0.0, %v558
      %v560 = vpop.f32.mrb[0].mxu0
      %561 = vmatprep.mubr.f32.mxu0 0.0
      %562 = vmatmul.mubr.f32.gmra.mrb[0].mxu0 %v378
      %v563 = vpop.f32.mrb[0].mxu0
      %v564 = vadd.f32 0.0, %v563
      %v565 = vpop.f32.mrb[0].mxu0
      %566 = vmatprep.mubr.f32.mxu0 0.0
      %567 = vmatmul.mubr.f32.gmra.mrb[0].mxu0 %v381
      %v568 = vpop.f32.mrb[0].mxu0
      %v569 = vadd.f32 0.0, %v568
      %v570 = vpop.f32.mrb[0].mxu0
      %571 = vmatprep.mubr.f32.mxu0 0.0
      %572 = vmatmul.mubr.f32.gmra.mrb[0].mxu0 %v384
      %v573 = vpop.f32.mrb[0].mxu0
      %v574 = vadd.f32 0.0, %v573
      %v575 = vpop.f32.mrb[0].mxu0
      %576 = vmatprep.mubr.f32.mxu0 0.0
      %577 = vmatmul.mubr.f32.gmra.mrb[0].mxu0 %v387
      %v578 = vpop.f32.mrb[0].mxu0
      %v579 = vadd.f32 0.0, %v578
      %v580 = vpop.f32.mrb[0].mxu0
      %581 = vmatprep.mubr.f32.mxu0 0.0
      %582 = vmatmul.mubr.f32.gmra.mrb[0].mxu0 %v390
      %v583 = vpop.f32.mrb[0].mxu0
      %v584 = vadd.f32 0.0, %v583
      %v585 = vpop.f32.mrb[0].mxu0
      %586 = vmatprep.mubr.f32.mxu0 0.0
      %587 = vmatmul.mubr.f32.gmra.mrb[0].mxu0 %v393
      %v588 = vpop.f32.mrb[0].mxu0
      %v589 = vadd.f32 0.0, %v588
      %v590 = vpop.f32.mrb[0].mxu0
      %591 = vmatprep.mubr.f32.mxu0 0.0
      %592 = vmatmul.mubr.f32.gmra.mrb[0].mxu0 %v396
      %v593 = vpop.f32.mrb[0].mxu0
      %v594 = vadd.f32 0.0, %v593
      %v595 = vpop.f32.mrb[0].mxu0
      %596 = vmatprep.mubr.f32.mxu0 0.0
      %597 = vmatmul.mubr.f32.gmra.mrb[0].mxu0 %v399
      %v598 = vpop.f32.mrb[0].mxu0
      %v599 = vadd.f32 0.0, %v598
      %v600 = vpop.f32.mrb[0].mxu0
      %601 = vmatprep.mubr.f32.mxu0 0.0
      %602 = vmatmul.mubr.f32.gmra.mrb[0].mxu0 %v402
      %v603 = vpop.f32.mrb[0].mxu0
      %v604 = vadd.f32 0.0, %v603
      %v605 = vpop.f32.mrb[0].mxu0
      %606 = vmatprep.mubr.f32.mxu0 0.0
      %607 = vmatmul.mubr.f32.gmra.mrb[0].mxu0 %v405
      %v608 = vpop.f32.mrb[0].mxu0
      %v609 = vadd.f32 0.0, %v608
      %v610 = vpop.f32.mrb[0].mxu0
      %611 = vmatprep.mubr.f32.mxu0 0.0
      %612 = vmatmul.mubr.f32.gmra.mrb[0].mxu0 %v408
      %v613 = vpop.f32.mrb[0].mxu0
      %v614 = vadd.f32 0.0, %v613
      %v615 = vpop.f32.mrb[0].mxu0
      %616 = vmatprep.mubr.f32.mxu0 0.0
      %617 = vmatmul.mubr.f32.gmra.mrb[0].mxu0 %v411
      %v618 = vpop.f32.mrb[0].mxu0
      %v619 = vadd.f32 0.0, %v618
      %v620 = vpop.f32.mrb[0].mxu0
      %621 = vmatprep.mubr.f32.mxu0 0.0
      %622 = vmatmul.mubr.f32.gmra.mrb[0].mxu0 %v414
      %v623 = vpop.f32.mrb[0].mxu0
      %v624 = vadd.f32 0.0, %v623
      %v625 = vpop.f32.mrb[0].mxu0
      %626 = vmatprep.mubr.f32.mxu0 0.0
      %627 = vmatmul.mubr.f32.gmra.mrb[0].mxu0 %v417
      %v628 = vpop.f32.mrb[0].mxu0
      %v629 = vadd.f32 0.0, %v628
      %v630 = vpop.f32.mrb[0].mxu0
      %631 = vmatprep.mubr.f32.mxu0 0.0
      %632 = vmatmul.mubr.f32.gmra.mrb[0].mxu0 %v420
      %v633 = vpop.f32.mrb[0].mxu0
      %v634 = vadd.f32 0.0, %v633
      %v635 = vpop.f32.mrb[0].mxu0
      %636 = vmatprep.mubr.f32.mxu0 0.0
      %637 = vmatmul.mubr.f32.gmra.mrb[0].mxu0 %v423
      %v638 = vpop.f32.mrb[0].mxu0
      %v639 = vadd.f32 0.0, %v638
      %v640 = vpop.f32.mrb[0].mxu0
      %641 = vmatprep.mubr.f32.mxu0 0.0
      %642 = vmatmul.mubr.f32.gmra.mrb[0].mxu0 %v426
      %v643 = vpop.f32.mrb[0].mxu0
      %v644 = vadd.f32 0.0, %v643
      %v645 = vpop.f32.mrb[0].mxu0
      %646 = vmatprep.mubr.f32.mxu0 0.0
      %647 = vmatmul.mubr.f32.gmra.mrb[0].mxu0 %v429
      %v648 = vpop.f32.mrb[0].mxu0
      %v649 = vadd.f32 0.0, %v648
      %v650 = vpop.f32.mrb[0].mxu0
      %651 = vmatprep.mubr.f32.mxu0 0.0
      %652 = vmatmul.mubr.f32.gmra.mrb[0].mxu0 %v432
      %v653 = vpop.f32.mrb[0].mxu0
      %v654 = vadd.f32 0.0, %v653
      %v655 = vpop.f32.mrb[0].mxu0
      %656 = vmatprep.mubr.f32.mxu0 0.0
      %657 = vmatmul.mubr.f32.gmra.mrb[0].mxu0 %v435
      %v658 = vpop.f32.mrb[0].mxu0
      %v659 = vadd.f32 0.0, %v658
      %v660 = vpop.f32.mrb[0].mxu0
      %661 = vmatprep.mubr.f32.mxu0 0.0
      %662 = vmatmul.mubr.f32.gmra.mrb[0].mxu0 %v438
      %v663 = vpop.f32.mrb[0].mxu0
      %v664 = vadd.f32 0.0, %v663
      %v665 = vpop.f32.mrb[0].mxu0
      %666 = vmatprep.mubr.f32.mxu0 0.0
      %667 = vmatmul.mubr.f32.gmra.mrb[0].mxu0 %v441
      %v668 = vpop.f32.mrb[0].mxu0
      %v669 = vadd.f32 0.0, %v668
      %v670 = vpop.f32.mrb[0].mxu0
      %671 = vdwg.mxu0
      %v673 = vsel %vm346, %v279, 0
      %v676 = vsel %vm346, %v280, 0
      %v679 = vsel %vm346, %v281, 0
      %v682 = vsel %vm346, %v282, 0
      %v685 = vsel %vm346, %v283, 0
      %v688 = vsel %vm346, %v284, 0
      %v691 = vsel %vm346, %v285, 0
      %v694 = vsel %vm346, %v286, 0
      %v697 = vsel %vm346, %v287, 0
      %v700 = vsel %vm346, %v288, 0
      %v703 = vsel %vm346, %v289, 0
      %v706 = vsel %vm346, %v290, 0
      %v709 = vsel %vm346, %v291, 0
      %v712 = vsel %vm346, %v292, 0
      %v715 = vsel %vm346, %v293, 0
      %v718 = vsel %vm346, %v294, 0
      %v721 = vsel %vm346, %v295, 0
      %v724 = vsel %vm346, %v296, 0
      %v727 = vsel %vm346, %v297, 0
      %v730 = vsel %vm346, %v298, 0
      %v733 = vsel %vm346, %v299, 0
      %v736 = vsel %vm346, %v300, 0
      %v739 = vsel %vm346, %v301, 0
      %v742 = vsel %vm346, %v302, 0
      %v745 = vsel %vm346, %v303, 0
      %v748 = vsel %vm346, %v304, 0
      %v751 = vsel %vm346, %v305, 0
      %v754 = vsel %vm346, %v306, 0
      %v757 = vsel %vm346, %v307, 0
      %v760 = vsel %vm346, %v308, 0
      %v763 = vsel %vm346, %v309, 0
      %v766 = vsel %vm346, %v310, 0
      %v769 = vsel %vm443, %v311, 0
      %771 = vmatprep.subr.mxu0 0.0
      %772 = vmatpush1.msra.mxu0 %v769
      %773 = vmatprep.subr.mxu0 0.0
      %774 = vmatpush1.msra.mxu0 0.0
      %775 = vmatprep.subr.mxu0 0.0
      %776 = vmatpush1.msra.mxu0 0.0
      %777 = vmatprep.subr.mxu0 0.0
      %778 = vmatpush1.msra.mxu0 0.0
      %779 = vmatprep.subr.mxu0 0.0
      %780 = vmatpush1.msra.mxu0 0.0
      %781 = vmatprep.subr.mxu0 0.0
      %782 = vmatpush1.msra.mxu0 0.0
      %783 = vmatprep.subr.mxu0 0.0
      %784 = vmatpush1.msra.mxu0 0.0
      %785 = vmatprep.subr.mxu0 0.0
      %786 = vmatpush1.msra.mxu0 0.0
      %787 = vmatprep.subr.mxu0 0.0
      %788 = vmatpush1.msra.mxu0 0.0
      %789 = vmatprep.subr.mxu0 0.0
      %790 = vmatpush1.msra.mxu0 0.0
      %791 = vmatprep.subr.mxu0 0.0
      %792 = vmatpush1.msra.mxu0 0.0
      %793 = vmatprep.subr.mxu0 0.0
      %794 = vmatpush1.msra.mxu0 0.0
      %795 = vmatprep.subr.mxu0 0.0
      %796 = vmatpush1.msra.mxu0 0.0
      %797 = vmatprep.subr.mxu0 0.0
      %798 = vmatpush1.msra.mxu0 0.0
      %799 = vmatprep.subr.mxu0 0.0
      %800 = vmatpush1.msra.mxu0 0.0
      %801 = vmatprep.subr.mxu0 0.0
      %802 = vmatpush1.msra.mxu0 0.0
      %803 = vmatprep.subr.mxu0 0.0
      %804 = vmatpush1.msra.mxu0 0.0
      %805 = vmatprep.subr.mxu0 0.0
      %806 = vmatpush1.msra.mxu0 0.0
      %807 = vmatprep.subr.mxu0 0.0
      %808 = vmatpush1.msra.mxu0 0.0
      %809 = vmatprep.subr.mxu0 0.0
      %810 = vmatpush1.msra.mxu0 0.0
      %811 = vmatprep.subr.mxu0 0.0
      %812 = vmatpush1.msra.mxu0 0.0
      %813 = vmatprep.subr.mxu0 0.0
      %814 = vmatpush1.msra.mxu0 0.0
      %815 = vmatprep.subr.mxu0 0.0
      %816 = vmatpush1.msra.mxu0 0.0
      %817 = vmatprep.subr.mxu0 0.0
      %818 = vmatpush1.msra.mxu0 0.0
      %819 = vmatprep.subr.mxu0 0.0
      %820 = vmatpush1.msra.mxu0 0.0
      %821 = vmatprep.subr.mxu0 0.0
      %822 = vmatpush1.msra.mxu0 0.0
      %823 = vmatprep.subr.mxu0 0.0
      %824 = vmatpush1.msra.mxu0 0.0
      %825 = vmatprep.subr.mxu0 0.0
      %826 = vmatpush1.msra.mxu0 0.0
      %827 = vmatprep.subr.mxu0 0.0
      %828 = vmatpush1.msra.mxu0 0.0
      %829 = vmatprep.subr.mxu0 0.0
      %830 = vmatpush1.msra.mxu0 0.0
      %831 = vmatprep.subr.mxu0 0.0
      %832 = vmatpush1.msra.mxu0 0.0
      %833 = vmatprep.subr.mxu0 0.0
      %834 = vmatpush1.msra.mxu0 0.0
      %835 = vmatprep.mubr.f32.mxu0 0.0
      %836 = vmatmul.mubr.f32.gmra.mrb[0].mxu0 %v673
      %v837 = vpop.f32.mrb[0].mxu0
      %v838 = vadd.f32 %v514, %v837
      %v839 = vpop.f32.mrb[0].mxu0
      %840 = vmatprep.mubr.f32.mxu0 0.0
      %841 = vmatmul.mubr.f32.gmra.mrb[0].mxu0 %v676
      %v842 = vpop.f32.mrb[0].mxu0
      %v843 = vadd.f32 %v519, %v842
      %v844 = vpop.f32.mrb[0].mxu0
      %845 = vmatprep.mubr.f32.mxu0 0.0
      %846 = vmatmul.mubr.f32.gmra.mrb[0].mxu0 %v679
      %v847 = vpop.f32.mrb[0].mxu0
      %v848 = vadd.f32 %v524, %v847
      %v849 = vpop.f32.mrb[0].mxu0
      %850 = vmatprep.mubr.f32.mxu0 0.0
      %851 = vmatmul.mubr.f32.gmra.mrb[0].mxu0 %v682
      %v852 = vpop.f32.mrb[0].mxu0
      %v853 = vadd.f32 %v529, %v852
      %v854 = vpop.f32.mrb[0].mxu0
      %855 = vmatprep.mubr.f32.mxu0 0.0
      %856 = vmatmul.mubr.f32.gmra.mrb[0].mxu0 %v685
      %v857 = vpop.f32.mrb[0].mxu0
      %v858 = vadd.f32 %v534, %v857
      %v859 = vpop.f32.mrb[0].mxu0
      %860 = vmatprep.mubr.f32.mxu0 0.0
      %861 = vmatmul.mubr.f32.gmra.mrb[0].mxu0 %v688
      %v862 = vpop.f32.mrb[0].mxu0
      %v863 = vadd.f32 %v539, %v862
      %v864 = vpop.f32.mrb[0].mxu0
      %865 = vmatprep.mubr.f32.mxu0 0.0
      %866 = vmatmul.mubr.f32.gmra.mrb[0].mxu0 %v691
      %v867 = vpop.f32.mrb[0].mxu0
      %v868 = vadd.f32 %v544, %v867
      %v869 = vpop.f32.mrb[0].mxu0
      %870 = vmatprep.mubr.f32.mxu0 0.0
      %871 = vmatmul.mubr.f32.gmra.mrb[0].mxu0 %v694
      %v872 = vpop.f32.mrb[0].mxu0
      %v873 = vadd.f32 %v549, %v872
      %v874 = vpop.f32.mrb[0].mxu0
      %875 = vmatprep.mubr.f32.mxu0 0.0
      %876 = vmatmul.mubr.f32.gmra.mrb[0].mxu0 %v697
      %v877 = vpop.f32.mrb[0].mxu0
      %v878 = vadd.f32 %v554, %v877
      %v879 = vpop.f32.mrb[0].mxu0
      %880 = vmatprep.mubr.f32.mxu0 0.0
      %881 = vmatmul.mubr.f32.gmra.mrb[0].mxu0 %v700
      %v882 = vpop.f32.mrb[0].mxu0
      %v883 = vadd.f32 %v559, %v882
      %v884 = vpop.f32.mrb[0].mxu0
      %885 = vmatprep.mubr.f32.mxu0 0.0
      %886 = vmatmul.mubr.f32.gmra.mrb[0].mxu0 %v703
      %v887 = vpop.f32.mrb[0].mxu0
      %v888 = vadd.f32 %v564, %v887
      %v889 = vpop.f32.mrb[0].mxu0
      %890 = vmatprep.mubr.f32.mxu0 0.0
      %891 = vmatmul.mubr.f32.gmra.mrb[0].mxu0 %v706
      %v892 = vpop.f32.mrb[0].mxu0
      %v893 = vadd.f32 %v569, %v892
      %v894 = vpop.f32.mrb[0].mxu0
      %895 = vmatprep.mubr.f32.mxu0 0.0
      %896 = vmatmul.mubr.f32.gmra.mrb[0].mxu0 %v709
      %v897 = vpop.f32.mrb[0].mxu0
      %v898 = vadd.f32 %v574, %v897
      %v899 = vpop.f32.mrb[0].mxu0
      %900 = vmatprep.mubr.f32.mxu0 0.0
      %901 = vmatmul.mubr.f32.gmra.mrb[0].mxu0 %v712
      %v902 = vpop.f32.mrb[0].mxu0
      %v903 = vadd.f32 %v579, %v902
      %v904 = vpop.f32.mrb[0].mxu0
      %905 = vmatprep.mubr.f32.mxu0 0.0
      %906 = vmatmul.mubr.f32.gmra.mrb[0].mxu0 %v715
      %v907 = vpop.f32.mrb[0].mxu0
      %v908 = vadd.f32 %v584, %v907
      %v909 = vpop.f32.mrb[0].mxu0
      %910 = vmatprep.mubr.f32.mxu0 0.0
      %911 = vmatmul.mubr.f32.gmra.mrb[0].mxu0 %v718
      %v912 = vpop.f32.mrb[0].mxu0
      %v913 = vadd.f32 %v589, %v912
      %v914 = vpop.f32.mrb[0].mxu0
      %915 = vmatprep.mubr.f32.mxu0 0.0
      %916 = vmatmul.mubr.f32.gmra.mrb[0].mxu0 %v721
      %v917 = vpop.f32.mrb[0].mxu0
      %v918 = vadd.f32 %v594, %v917
      %v919 = vpop.f32.mrb[0].mxu0
      %920 = vmatprep.mubr.f32.mxu0 0.0
      %921 = vmatmul.mubr.f32.gmra.mrb[0].mxu0 %v724
      %v922 = vpop.f32.mrb[0].mxu0
      %v923 = vadd.f32 %v599, %v922
      %v924 = vpop.f32.mrb[0].mxu0
      %925 = vmatprep.mubr.f32.mxu0 0.0
      %926 = vmatmul.mubr.f32.gmra.mrb[0].mxu0 %v727
      %v927 = vpop.f32.mrb[0].mxu0
      %v928 = vadd.f32 %v604, %v927
      %v929 = vpop.f32.mrb[0].mxu0
      %930 = vmatprep.mubr.f32.mxu0 0.0
      %931 = vmatmul.mubr.f32.gmra.mrb[0].mxu0 %v730
      %v932 = vpop.f32.mrb[0].mxu0
      %v933 = vadd.f32 %v609, %v932
      %v934 = vpop.f32.mrb[0].mxu0
      %935 = vmatprep.mubr.f32.mxu0 0.0
      %936 = vmatmul.mubr.f32.gmra.mrb[0].mxu0 %v733
      %v937 = vpop.f32.mrb[0].mxu0
      %v938 = vadd.f32 %v614, %v937
      %v939 = vpop.f32.mrb[0].mxu0
      %940 = vmatprep.mubr.f32.mxu0 0.0
      %941 = vmatmul.mubr.f32.gmra.mrb[0].mxu0 %v736
      %v942 = vpop.f32.mrb[0].mxu0
      %v943 = vadd.f32 %v619, %v942
      %v944 = vpop.f32.mrb[0].mxu0
      %945 = vmatprep.mubr.f32.mxu0 0.0
      %946 = vmatmul.mubr.f32.gmra.mrb[0].mxu0 %v739
      %v947 = vpop.f32.mrb[0].mxu0
      %v948 = vadd.f32 %v624, %v947
      %v949 = vpop.f32.mrb[0].mxu0
      %950 = vmatprep.mubr.f32.mxu0 0.0
      %951 = vmatmul.mubr.f32.gmra.mrb[0].mxu0 %v742
      %v952 = vpop.f32.mrb[0].mxu0
      %v953 = vadd.f32 %v629, %v952
      %v954 = vpop.f32.mrb[0].mxu0
      %955 = vmatprep.mubr.f32.mxu0 0.0
      %956 = vmatmul.mubr.f32.gmra.mrb[0].mxu0 %v745
      %v957 = vpop.f32.mrb[0].mxu0
      %v958 = vadd.f32 %v634, %v957
      %v959 = vpop.f32.mrb[0].mxu0
      %960 = vmatprep.mubr.f32.mxu0 0.0
      %961 = vmatmul.mubr.f32.gmra.mrb[0].mxu0 %v748
      %v962 = vpop.f32.mrb[0].mxu0
      %v963 = vadd.f32 %v639, %v962
      %v964 = vpop.f32.mrb[0].mxu0
      %965 = vmatprep.mubr.f32.mxu0 0.0
      %966 = vmatmul.mubr.f32.gmra.mrb[0].mxu0 %v751
      %v967 = vpop.f32.mrb[0].mxu0
      %v968 = vadd.f32 %v644, %v967
      %v969 = vpop.f32.mrb[0].mxu0
      %970 = vmatprep.mubr.f32.mxu0 0.0
      %971 = vmatmul.mubr.f32.gmra.mrb[0].mxu0 %v754
      %v972 = vpop.f32.mrb[0].mxu0
      %v973 = vadd.f32 %v649, %v972
      %v974 = vpop.f32.mrb[0].mxu0
      %975 = vmatprep.mubr.f32.mxu0 0.0
      %976 = vmatmul.mubr.f32.gmra.mrb[0].mxu0 %v757
      %v977 = vpop.f32.mrb[0].mxu0
      %v978 = vadd.f32 %v654, %v977
      %v979 = vpop.f32.mrb[0].mxu0
      %980 = vmatprep.mubr.f32.mxu0 0.0
      %981 = vmatmul.mubr.f32.gmra.mrb[0].mxu0 %v760
      %v982 = vpop.f32.mrb[0].mxu0
      %v983 = vadd.f32 %v659, %v982
      %v984 = vpop.f32.mrb[0].mxu0
      %985 = vmatprep.mubr.f32.mxu0 0.0
      %986 = vmatmul.mubr.f32.gmra.mrb[0].mxu0 %v763
      %v987 = vpop.f32.mrb[0].mxu0
      %v988 = vadd.f32 %v664, %v987
      %v989 = vpop.f32.mrb[0].mxu0
      %990 = vmatprep.mubr.f32.mxu0 0.0
      %991 = vmatmul.mubr.f32.gmra.mrb[0].mxu0 %v766
      %v992 = vpop.f32.mrb[0].mxu0
      %v993 = vadd.f32 %v669, %v992
      %v994 = vpop.f32.mrb[0].mxu0
      %995 = vdwg.mxu0
      %v996 = vld [vmem:[%s273 + $0x2] sm:$0xff]
      %v997 = vld [vmem:[%s273 + $0xa] sm:$0xff]
      %v998 = vld [vmem:[%s273 + $0x1a] sm:$0xff]
      %v999 = vld [vmem:[%s273 + $0x22] sm:$0xff]
      %v1000 = vld [vmem:[%s273 + $0x32] sm:$0xff]
      %v1001 = vld [vmem:[%s273 + $0x3a] sm:$0xff]
      %v1002 = vld [vmem:[%s273 + $0x4a] sm:$0xff]
      %v1003 = vld [vmem:[%s273 + $0x52] sm:$0xff]
      %v1004 = vld [vmem:[%s273 + $0x62] sm:$0xff]
      %v1005 = vld [vmem:[%s273 + $0x6a] sm:$0xff]
      %v1006 = vld [vmem:[%s273 + $0x7a] sm:$0xff]
      %v1007 = vld [vmem:[%s273 + $0x82] sm:$0xff]
      %v1008 = vld [vmem:[%s273 + $0x92] sm:$0xff]
      %v1009 = vld [vmem:[%s273 + $0x9a] sm:$0xff]
      %v1010 = vld [vmem:[%s273 + $0xaa] sm:$0xff]
      %v1011 = vld [vmem:[%s273 + $0xb2] sm:$0xff]
      %v1012 = vld [vmem:[%s273 + $0xc2] sm:$0xff]
      %v1013 = vld [vmem:[%s273 + $0xca] sm:$0xff]
      %v1014 = vld [vmem:[%s273 + $0xda] sm:$0xff]
      %v1015 = vld [vmem:[%s273 + $0xe2] sm:$0xff]
      %v1016 = vld [vmem:[%s273 + $0xf2] sm:$0xff]
      %v1017 = vld [vmem:[%s273 + $0xfa] sm:$0xff]
      %v1018 = vld [vmem:[%s273 + $0x10a] sm:$0xff]
      %v1019 = vld [vmem:[%s273 + $0x112] sm:$0xff]
      %v1020 = vld [vmem:[%s273 + $0x122] sm:$0xff]
      %v1021 = vld [vmem:[%s273 + $0x12a] sm:$0xff]
      %v1022 = vld [vmem:[%s273 + $0x13a] sm:$0xff]
      %v1023 = vld [vmem:[%s273 + $0x142] sm:$0xff]
      %v1024 = vld [vmem:[%s273 + $0x152] sm:$0xff]
      %v1025 = vld [vmem:[%s273 + $0x15a] sm:$0xff]
      %v1026 = vld [vmem:[%s273 + $0x16a] sm:$0xff]
      %v1027 = vld [vmem:[%s273 + $0x172] sm:$0xff]
      %s1028 = scalar_lea.vmem %s1, 8
      %v1029 = vld [vmem:[%s1028] sm:$0xf]
      %v1031 = vsel %vm346, %v996, 0
      %v1034 = vsel %vm346, %v997, 0
      %v1037 = vsel %vm346, %v998, 0
      %v1040 = vsel %vm346, %v999, 0
      %v1043 = vsel %vm346, %v1000, 0
      %v1046 = vsel %vm346, %v1001, 0
      %v1049 = vsel %vm346, %v1002, 0
      %v1052 = vsel %vm346, %v1003, 0
      %v1055 = vsel %vm346, %v1004, 0
      %v1058 = vsel %vm346, %v1005, 0
      %v1061 = vsel %vm346, %v1006, 0
      %v1064 = vsel %vm346, %v1007, 0
      %v1067 = vsel %vm346, %v1008, 0
      %v1070 = vsel %vm346, %v1009, 0
      %v1073 = vsel %vm346, %v1010, 0
      %v1076 = vsel %vm346, %v1011, 0
      %v1079 = vsel %vm346, %v1012, 0
      %v1082 = vsel %vm346, %v1013, 0
      %v1085 = vsel %vm346, %v1014, 0
      %v1088 = vsel %vm346, %v1015, 0
      %v1091 = vsel %vm346, %v1016, 0
      %v1094 = vsel %vm346, %v1017, 0
      %v1097 = vsel %vm346, %v1018, 0
      %v1100 = vsel %vm346, %v1019, 0
      %v1103 = vsel %vm346, %v1020, 0
      %v1106 = vsel %vm346, %v1021, 0
      %v1109 = vsel %vm346, %v1022, 0
      %v1112 = vsel %vm346, %v1023, 0
      %v1115 = vsel %vm346, %v1024, 0
      %v1118 = vsel %vm346, %v1025, 0
      %v1121 = vsel %vm346, %v1026, 0
      %v1124 = vsel %vm346, %v1027, 0
      %v1127 = vsel %vm443, %v1029, 0
      %1129 = vmatprep.subr.mxu0 0.0
      %1130 = vmatpush1.msra.mxu0 %v1127
      %1131 = vmatprep.subr.mxu0 0.0
      %1132 = vmatpush1.msra.mxu0 0.0
      %1133 = vmatprep.subr.mxu0 0.0
      %1134 = vmatpush1.msra.mxu0 0.0
      %1135 = vmatprep.subr.mxu0 0.0
      %1136 = vmatpush1.msra.mxu0 0.0
      %1137 = vmatprep.subr.mxu0 0.0
      %1138 = vmatpush1.msra.mxu0 0.0
      %1139 = vmatprep.subr.mxu0 0.0
      %1140 = vmatpush1.msra.mxu0 0.0
      %1141 = vmatprep.subr.mxu0 0.0
      %1142 = vmatpush1.msra.mxu0 0.0
      %1143 = vmatprep.subr.mxu0 0.0
      %1144 = vmatpush1.msra.mxu0 0.0
      %1145 = vmatprep.subr.mxu0 0.0
      %1146 = vmatpush1.msra.mxu0 0.0
      %1147 = vmatprep.subr.mxu0 0.0
      %1148 = vmatpush1.msra.mxu0 0.0
      %1149 = vmatprep.subr.mxu0 0.0
      %1150 = vmatpush1.msra.mxu0 0.0
      %1151 = vmatprep.subr.mxu0 0.0
      %1152 = vmatpush1.msra.mxu0 0.0
      %1153 = vmatprep.subr.mxu0 0.0
      %1154 = vmatpush1.msra.mxu0 0.0
      %1155 = vmatprep.subr.mxu0 0.0
      %1156 = vmatpush1.msra.mxu0 0.0
      %1157 = vmatprep.subr.mxu0 0.0
      %1158 = vmatpush1.msra.mxu0 0.0
      %1159 = vmatprep.subr.mxu0 0.0
      %1160 = vmatpush1.msra.mxu0 0.0
      %1161 = vmatprep.subr.mxu0 0.0
      %1162 = vmatpush1.msra.mxu0 0.0
      %1163 = vmatprep.subr.mxu0 0.0
      %1164 = vmatpush1.msra.mxu0 0.0
      %1165 = vmatprep.subr.mxu0 0.0
      %1166 = vmatpush1.msra.mxu0 0.0
      %1167 = vmatprep.subr.mxu0 0.0
      %1168 = vmatpush1.msra.mxu0 0.0
      %1169 = vmatprep.subr.mxu0 0.0
      %1170 = vmatpush1.msra.mxu0 0.0
      %1171 = vmatprep.subr.mxu0 0.0
      %1172 = vmatpush1.msra.mxu0 0.0
      %1173 = vmatprep.subr.mxu0 0.0
      %1174 = vmatpush1.msra.mxu0 0.0
      %1175 = vmatprep.subr.mxu0 0.0
      %1176 = vmatpush1.msra.mxu0 0.0
      %1177 = vmatprep.subr.mxu0 0.0
      %1178 = vmatpush1.msra.mxu0 0.0
      %1179 = vmatprep.subr.mxu0 0.0
      %1180 = vmatpush1.msra.mxu0 0.0
      %1181 = vmatprep.subr.mxu0 0.0
      %1182 = vmatpush1.msra.mxu0 0.0
      %1183 = vmatprep.subr.mxu0 0.0
      %1184 = vmatpush1.msra.mxu0 0.0
      %1185 = vmatprep.subr.mxu0 0.0
      %1186 = vmatpush1.msra.mxu0 0.0
      %1187 = vmatprep.subr.mxu0 0.0
      %1188 = vmatpush1.msra.mxu0 0.0
      %1189 = vmatprep.subr.mxu0 0.0
      %1190 = vmatpush1.msra.mxu0 0.0
      %1191 = vmatprep.subr.mxu0 0.0
      %1192 = vmatpush1.msra.mxu0 0.0
      %1193 = vmatprep.mubr.f32.mxu0 0.0
      %1194 = vmatmul.mubr.f32.gmra.mrb[0].mxu0 %v1031
      %v1195 = vpop.f32.mrb[0].mxu0
      %v1196 = vadd.f32 0.0, %v1195
      %v1197 = vpop.f32.mrb[0].mxu0
      %1198 = vmatprep.mubr.f32.mxu0 0.0
      %1199 = vmatmul.mubr.f32.gmra.mrb[0].mxu0 %v1034
      %v1200 = vpop.f32.mrb[0].mxu0
      %v1201 = vadd.f32 0.0, %v1200
      %v1202 = vpop.f32.mrb[0].mxu0
      %1203 = vmatprep.mubr.f32.mxu0 0.0
      %1204 = vmatmul.mubr.f32.gmra.mrb[0].mxu0 %v1037
      %v1205 = vpop.f32.mrb[0].mxu0
      %v1206 = vadd.f32 0.0, %v1205
      %v1207 = vpop.f32.mrb[0].mxu0
      %1208 = vmatprep.mubr.f32.mxu0 0.0
      %1209 = vmatmul.mubr.f32.gmra.mrb[0].mxu0 %v1040
      %v1210 = vpop.f32.mrb[0].mxu0
      %v1211 = vadd.f32 0.0, %v1210
      %v1212 = vpop.f32.mrb[0].mxu0
      %1213 = vmatprep.mubr.f32.mxu0 0.0
      %1214 = vmatmul.mubr.f32.gmra.mrb[0].mxu0 %v1043
      %v1215 = vpop.f32.mrb[0].mxu0
      %v1216 = vadd.f32 0.0, %v1215
      %v1217 = vpop.f32.mrb[0].mxu0
      %1218 = vmatprep.mubr.f32.mxu0 0.0
      %1219 = vmatmul.mubr.f32.gmra.mrb[0].mxu0 %v1046
      %v1220 = vpop.f32.mrb[0].mxu0
      %v1221 = vadd.f32 0.0, %v1220
      %v1222 = vpop.f32.mrb[0].mxu0
      %1223 = vmatprep.mubr.f32.mxu0 0.0
      %1224 = vmatmul.mubr.f32.gmra.mrb[0].mxu0 %v1049
      %v1225 = vpop.f32.mrb[0].mxu0
      %v1226 = vadd.f32 0.0, %v1225
      %v1227 = vpop.f32.mrb[0].mxu0
      %1228 = vmatprep.mubr.f32.mxu0 0.0
      %1229 = vmatmul.mubr.f32.gmra.mrb[0].mxu0 %v1052
      %v1230 = vpop.f32.mrb[0].mxu0
      %v1231 = vadd.f32 0.0, %v1230
      %v1232 = vpop.f32.mrb[0].mxu0
      %1233 = vmatprep.mubr.f32.mxu0 0.0
      %1234 = vmatmul.mubr.f32.gmra.mrb[0].mxu0 %v1055
      %v1235 = vpop.f32.mrb[0].mxu0
      %v1236 = vadd.f32 0.0, %v1235
      %v1237 = vpop.f32.mrb[0].mxu0
      %1238 = vmatprep.mubr.f32.mxu0 0.0
      %1239 = vmatmul.mubr.f32.gmra.mrb[0].mxu0 %v1058
      %v1240 = vpop.f32.mrb[0].mxu0
      %v1241 = vadd.f32 0.0, %v1240
      %v1242 = vpop.f32.mrb[0].mxu0
      %1243 = vmatprep.mubr.f32.mxu0 0.0
      %1244 = vmatmul.mubr.f32.gmra.mrb[0].mxu0 %v1061
      %v1245 = vpop.f32.mrb[0].mxu0
      %v1246 = vadd.f32 0.0, %v1245
      %v1247 = vpop.f32.mrb[0].mxu0
      %1248 = vmatprep.mubr.f32.mxu0 0.0
      %1249 = vmatmul.mubr.f32.gmra.mrb[0].mxu0 %v1064
      %v1250 = vpop.f32.mrb[0].mxu0
      %v1251 = vadd.f32 0.0, %v1250
      %v1252 = vpop.f32.mrb[0].mxu0
      %1253 = vmatprep.mubr.f32.mxu0 0.0
      %1254 = vmatmul.mubr.f32.gmra.mrb[0].mxu0 %v1067
      %v1255 = vpop.f32.mrb[0].mxu0
      %v1256 = vadd.f32 0.0, %v1255
      %v1257 = vpop.f32.mrb[0].mxu0
      %1258 = vmatprep.mubr.f32.mxu0 0.0
      %1259 = vmatmul.mubr.f32.gmra.mrb[0].mxu0 %v1070
      %v1260 = vpop.f32.mrb[0].mxu0
      %v1261 = vadd.f32 0.0, %v1260
      %v1262 = vpop.f32.mrb[0].mxu0
      %1263 = vmatprep.mubr.f32.mxu0 0.0
      %1264 = vmatmul.mubr.f32.gmra.mrb[0].mxu0 %v1073
      %v1265 = vpop.f32.mrb[0].mxu0
      %v1266 = vadd.f32 0.0, %v1265
      %v1267 = vpop.f32.mrb[0].mxu0
      %1268 = vmatprep.mubr.f32.mxu0 0.0
      %1269 = vmatmul.mubr.f32.gmra.mrb[0].mxu0 %v1076
      %v1270 = vpop.f32.mrb[0].mxu0
      %v1271 = vadd.f32 0.0, %v1270
      %v1272 = vpop.f32.mrb[0].mxu0
      %1273 = vmatprep.mubr.f32.mxu0 0.0
      %1274 = vmatmul.mubr.f32.gmra.mrb[0].mxu0 %v1079
      %v1275 = vpop.f32.mrb[0].mxu0
      %v1276 = vadd.f32 0.0, %v1275
      %v1277 = vpop.f32.mrb[0].mxu0
      %1278 = vmatprep.mubr.f32.mxu0 0.0
      %1279 = vmatmul.mubr.f32.gmra.mrb[0].mxu0 %v1082
      %v1280 = vpop.f32.mrb[0].mxu0
      %v1281 = vadd.f32 0.0, %v1280
      %v1282 = vpop.f32.mrb[0].mxu0
      %1283 = vmatprep.mubr.f32.mxu0 0.0
      %1284 = vmatmul.mubr.f32.gmra.mrb[0].mxu0 %v1085
      %v1285 = vpop.f32.mrb[0].mxu0
      %v1286 = vadd.f32 0.0, %v1285
      %v1287 = vpop.f32.mrb[0].mxu0
      %1288 = vmatprep.mubr.f32.mxu0 0.0
      %1289 = vmatmul.mubr.f32.gmra.mrb[0].mxu0 %v1088
      %v1290 = vpop.f32.mrb[0].mxu0
      %v1291 = vadd.f32 0.0, %v1290
      %v1292 = vpop.f32.mrb[0].mxu0
      %1293 = vmatprep.mubr.f32.mxu0 0.0
      %1294 = vmatmul.mubr.f32.gmra.mrb[0].mxu0 %v1091
      %v1295 = vpop.f32.mrb[0].mxu0
      %v1296 = vadd.f32 0.0, %v1295
      %v1297 = vpop.f32.mrb[0].mxu0
      %1298 = vmatprep.mubr.f32.mxu0 0.0
      %1299 = vmatmul.mubr.f32.gmra.mrb[0].mxu0 %v1094
      %v1300 = vpop.f32.mrb[0].mxu0
      %v1301 = vadd.f32 0.0, %v1300
      %v1302 = vpop.f32.mrb[0].mxu0
      %1303 = vmatprep.mubr.f32.mxu0 0.0
      %1304 = vmatmul.mubr.f32.gmra.mrb[0].mxu0 %v1097
      %v1305 = vpop.f32.mrb[0].mxu0
      %v1306 = vadd.f32 0.0, %v1305
      %v1307 = vpop.f32.mrb[0].mxu0
      %1308 = vmatprep.mubr.f32.mxu0 0.0
      %1309 = vmatmul.mubr.f32.gmra.mrb[0].mxu0 %v1100
      %v1310 = vpop.f32.mrb[0].mxu0
      %v1311 = vadd.f32 0.0, %v1310
      %v1312 = vpop.f32.mrb[0].mxu0
      %1313 = vmatprep.mubr.f32.mxu0 0.0
      %1314 = vmatmul.mubr.f32.gmra.mrb[0].mxu0 %v1103
      %v1315 = vpop.f32.mrb[0].mxu0
      %v1316 = vadd.f32 0.0, %v1315
      %v1317 = vpop.f32.mrb[0].mxu0
      %1318 = vmatprep.mubr.f32.mxu0 0.0
      %1319 = vmatmul.mubr.f32.gmra.mrb[0].mxu0 %v1106
      %v1320 = vpop.f32.mrb[0].mxu0
      %v1321 = vadd.f32 0.0, %v1320
      %v1322 = vpop.f32.mrb[0].mxu0
      %1323 = vmatprep.mubr.f32.mxu0 0.0
      %1324 = vmatmul.mubr.f32.gmra.mrb[0].mxu0 %v1109
      %v1325 = vpop.f32.mrb[0].mxu0
      %v1326 = vadd.f32 0.0, %v1325
      %v1327 = vpop.f32.mrb[0].mxu0
      %1328 = vmatprep.mubr.f32.mxu0 0.0
      %1329 = vmatmul.mubr.f32.gmra.mrb[0].mxu0 %v1112
      %v1330 = vpop.f32.mrb[0].mxu0
      %v1331 = vadd.f32 0.0, %v1330
      %v1332 = vpop.f32.mrb[0].mxu0
      %1333 = vmatprep.mubr.f32.mxu0 0.0
      %1334 = vmatmul.mubr.f32.gmra.mrb[0].mxu0 %v1115
      %v1335 = vpop.f32.mrb[0].mxu0
      %v1336 = vadd.f32 0.0, %v1335
      %v1337 = vpop.f32.mrb[0].mxu0
      %1338 = vmatprep.mubr.f32.mxu0 0.0
      %1339 = vmatmul.mubr.f32.gmra.mrb[0].mxu0 %v1118
      %v1340 = vpop.f32.mrb[0].mxu0
      %v1341 = vadd.f32 0.0, %v1340
      %v1342 = vpop.f32.mrb[0].mxu0
      %1343 = vmatprep.mubr.f32.mxu0 0.0
      %1344 = vmatmul.mubr.f32.gmra.mrb[0].mxu0 %v1121
      %v1345 = vpop.f32.mrb[0].mxu0
      %v1346 = vadd.f32 0.0, %v1345
      %v1347 = vpop.f32.mrb[0].mxu0
      %1348 = vmatprep.mubr.f32.mxu0 0.0
      %1349 = vmatmul.mubr.f32.gmra.mrb[0].mxu0 %v1124
      %v1350 = vpop.f32.mrb[0].mxu0
      %v1351 = vadd.f32 0.0, %v1350
      %v1352 = vpop.f32.mrb[0].mxu0
      %1353 = vdwg.mxu0
      %v1354 = vadd.f32 %v838, %v1196
      %v1355 = vadd.f32 %v843, %v1201
      %v1356 = vadd.f32 %v848, %v1206
      %v1357 = vadd.f32 %v853, %v1211
      %v1358 = vadd.f32 %v858, %v1216
      %v1359 = vadd.f32 %v863, %v1221
      %v1360 = vadd.f32 %v868, %v1226
      %v1361 = vadd.f32 %v873, %v1231
      %v1362 = vadd.f32 %v878, %v1236
      %v1363 = vadd.f32 %v883, %v1241
      %v1364 = vadd.f32 %v888, %v1246
      %v1365 = vadd.f32 %v893, %v1251
      %v1366 = vadd.f32 %v898, %v1256
      %v1367 = vadd.f32 %v903, %v1261
      %v1368 = vadd.f32 %v908, %v1266
      %v1369 = vadd.f32 %v913, %v1271
      %v1370 = vadd.f32 %v918, %v1276
      %v1371 = vadd.f32 %v923, %v1281
      %v1372 = vadd.f32 %v928, %v1286
      %v1373 = vadd.f32 %v933, %v1291
      %v1374 = vadd.f32 %v938, %v1296
      %v1375 = vadd.f32 %v943, %v1301
      %v1376 = vadd.f32 %v948, %v1306
      %v1377 = vadd.f32 %v953, %v1311
      %v1378 = vadd.f32 %v958, %v1316
      %v1379 = vadd.f32 %v963, %v1321
      %v1380 = vadd.f32 %v968, %v1326
      %v1381 = vadd.f32 %v973, %v1331
      %v1382 = vadd.f32 %v978, %v1336
      %v1383 = vadd.f32 %v983, %v1341
      %v1384 = vadd.f32 %v988, %v1346
      %v1385 = vadd.f32 %v993, %v1351
      %s1386 = scalar_lea.vmem %s273, 24
      %v1387 = vld [vmem:[%s1386] sm:$0xff]
      %v1388 = vld [vmem:[%s1386 + $0x8] sm:$0xff]
      %v1389 = vld [vmem:[%s1386 + $0x18] sm:$0xff]
      %v1390 = vld [vmem:[%s1386 + $0x20] sm:$0xff]
      %v1391 = vld [vmem:[%s1386 + $0x30] sm:$0xff]
      %v1392 = vld [vmem:[%s1386 + $0x38] sm:$0xff]
      %v1393 = vld [vmem:[%s1386 + $0x48] sm:$0xff]
      %v1394 = vld [vmem:[%s1386 + $0x50] sm:$0xff]
      %v1395 = vld [vmem:[%s1386 + $0x60] sm:$0xff]
      %v1396 = vld [vmem:[%s1386 + $0x68] sm:$0xff]
      %v1397 = vld [vmem:[%s1386 + $0x78] sm:$0xff]
      %v1398 = vld [vmem:[%s1386 + $0x80] sm:$0xff]
      %v1399 = vld [vmem:[%s1386 + $0x90] sm:$0xff]
      %v1400 = vld [vmem:[%s1386 + $0x98] sm:$0xff]
      %v1401 = vld [vmem:[%s1386 + $0xa8] sm:$0xff]
      %v1402 = vld [vmem:[%s1386 + $0xb0] sm:$0xff]
      %v1403 = vld [vmem:[%s1386 + $0xc0] sm:$0xff]
      %v1404 = vld [vmem:[%s1386 + $0xc8] sm:$0xff]
      %v1405 = vld [vmem:[%s1386 + $0xd8] sm:$0xff]
      %v1406 = vld [vmem:[%s1386 + $0xe0] sm:$0xff]
      %v1407 = vld [vmem:[%s1386 + $0xf0] sm:$0xff]
      %v1408 = vld [vmem:[%s1386 + $0xf8] sm:$0xff]
      %v1409 = vld [vmem:[%s1386 + $0x108] sm:$0xff]
      %v1410 = vld [vmem:[%s1386 + $0x110] sm:$0xff]
      %v1411 = vld [vmem:[%s1386 + $0x120] sm:$0xff]
      %v1412 = vld [vmem:[%s1386 + $0x128] sm:$0xff]
      %v1413 = vld [vmem:[%s1386 + $0x138] sm:$0xff]
      %v1414 = vld [vmem:[%s1386 + $0x140] sm:$0xff]
      %v1415 = vld [vmem:[%s1386 + $0x150] sm:$0xff]
      %v1416 = vld [vmem:[%s1386 + $0x158] sm:$0xff]
      %v1417 = vld [vmem:[%s1386 + $0x168] sm:$0xff]
      %v1418 = vld [vmem:[%s1386 + $0x170] sm:$0xff]
      %s1419 = scalar_lea.vmem %s1, 12
      %v1420 = vld [vmem:[%s1419] sm:$0xf]
      %v1422 = vsel %vm346, %v1387, 0
      %v1425 = vsel %vm346, %v1388, 0
      %v1428 = vsel %vm346, %v1389, 0
      %v1431 = vsel %vm346, %v1390, 0
      %v1434 = vsel %vm346, %v1391, 0
      %v1437 = vsel %vm346, %v1392, 0
      %v1440 = vsel %vm346, %v1393, 0
      %v1443 = vsel %vm346, %v1394, 0
      %v1446 = vsel %vm346, %v1395, 0
      %v1449 = vsel %vm346, %v1396, 0
      %v1452 = vsel %vm346, %v1397, 0
      %v1455 = vsel %vm346, %v1398, 0
      %v1458 = vsel %vm346, %v1399, 0
      %v1461 = vsel %vm346, %v1400, 0
      %v1464 = vsel %vm346, %v1401, 0
      %v1467 = vsel %vm346, %v1402, 0
      %v1470 = vsel %vm346, %v1403, 0
      %v1473 = vsel %vm346, %v1404, 0
      %v1476 = vsel %vm346, %v1405, 0
      %v1479 = vsel %vm346, %v1406, 0
      %v1482 = vsel %vm346, %v1407, 0
      %v1485 = vsel %vm346, %v1408, 0
      %v1488 = vsel %vm346, %v1409, 0
      %v1491 = vsel %vm346, %v1410, 0
      %v1494 = vsel %vm346, %v1411, 0
      %v1497 = vsel %vm346, %v1412, 0
      %v1500 = vsel %vm346, %v1413, 0
      %v1503 = vsel %vm346, %v1414, 0
      %v1506 = vsel %vm346, %v1415, 0
      %v1509 = vsel %vm346, %v1416, 0
      %v1512 = vsel %vm346, %v1417, 0
      %v1515 = vsel %vm346, %v1418, 0
      %v1518 = vsel %vm443, %v1420, 0
      %1520 = vmatprep.subr.mxu0 0.0
      %1521 = vmatpush1.msra.mxu0 %v1518
      %1522 = vmatprep.subr.mxu0 0.0
      %1523 = vmatpush1.msra.mxu0 0.0
      %1524 = vmatprep.subr.mxu0 0.0
      %1525 = vmatpush1.msra.mxu0 0.0
      %1526 = vmatprep.subr.mxu0 0.0
      %1527 = vmatpush1.msra.mxu0 0.0
      %1528 = vmatprep.subr.mxu0 0.0
      %1529 = vmatpush1.msra.mxu0 0.0
      %1530 = vmatprep.subr.mxu0 0.0
      %1531 = vmatpush1.msra.mxu0 0.0
      %1532 = vmatprep.subr.mxu0 0.0
      %1533 = vmatpush1.msra.mxu0 0.0
      %1534 = vmatprep.subr.mxu0 0.0
      %1535 = vmatpush1.msra.mxu0 0.0
      %1536 = vmatprep.subr.mxu0 0.0
      %1537 = vmatpush1.msra.mxu0 0.0
      %1538 = vmatprep.subr.mxu0 0.0
      %1539 = vmatpush1.msra.mxu0 0.0
      %1540 = vmatprep.subr.mxu0 0.0
      %1541 = vmatpush1.msra.mxu0 0.0
      %1542 = vmatprep.subr.mxu0 0.0
      %1543 = vmatpush1.msra.mxu0 0.0
      %1544 = vmatprep.subr.mxu0 0.0
      %1545 = vmatpush1.msra.mxu0 0.0
      %1546 = vmatprep.subr.mxu0 0.0
      %1547 = vmatpush1.msra.mxu0 0.0
      %1548 = vmatprep.subr.mxu0 0.0
      %1549 = vmatpush1.msra.mxu0 0.0
      %1550 = vmatprep.subr.mxu0 0.0
      %1551 = vmatpush1.msra.mxu0 0.0
      %1552 = vmatprep.subr.mxu0 0.0
      %1553 = vmatpush1.msra.mxu0 0.0
      %1554 = vmatprep.subr.mxu0 0.0
      %1555 = vmatpush1.msra.mxu0 0.0
      %1556 = vmatprep.subr.mxu0 0.0
      %1557 = vmatpush1.msra.mxu0 0.0
      %1558 = vmatprep.subr.mxu0 0.0
      %1559 = vmatpush1.msra.mxu0 0.0
      %1560 = vmatprep.subr.mxu0 0.0
      %1561 = vmatpush1.msra.mxu0 0.0
      %1562 = vmatprep.subr.mxu0 0.0
      %1563 = vmatpush1.msra.mxu0 0.0
      %1564 = vmatprep.subr.mxu0 0.0
      %1565 = vmatpush1.msra.mxu0 0.0
      %1566 = vmatprep.subr.mxu0 0.0
      %1567 = vmatpush1.msra.mxu0 0.0
      %1568 = vmatprep.subr.mxu0 0.0
      %1569 = vmatpush1.msra.mxu0 0.0
      %1570 = vmatprep.subr.mxu0 0.0
      %1571 = vmatpush1.msra.mxu0 0.0
      %1572 = vmatprep.subr.mxu0 0.0
      %1573 = vmatpush1.msra.mxu0 0.0
      %1574 = vmatprep.subr.mxu0 0.0
      %1575 = vmatpush1.msra.mxu0 0.0
      %1576 = vmatprep.subr.mxu0 0.0
      %1577 = vmatpush1.msra.mxu0 0.0
      %1578 = vmatprep.subr.mxu0 0.0
      %1579 = vmatpush1.msra.mxu0 0.0
      %1580 = vmatprep.subr.mxu0 0.0
      %1581 = vmatpush1.msra.mxu0 0.0
      %1582 = vmatprep.subr.mxu0 0.0
      %1583 = vmatpush1.msra.mxu0 0.0
      %1584 = vmatprep.mubr.f32.mxu0 0.0
      %1585 = vmatmul.mubr.f32.gmra.mrb[0].mxu0 %v1422
      %v1586 = vpop.f32.mrb[0].mxu0
      %v1587 = vadd.f32 0.0, %v1586
      %v1588 = vpop.f32.mrb[0].mxu0
      %1589 = vmatprep.mubr.f32.mxu0 0.0
      %1590 = vmatmul.mubr.f32.gmra.mrb[0].mxu0 %v1425
      %v1591 = vpop.f32.mrb[0].mxu0
      %v1592 = vadd.f32 0.0, %v1591
      %v1593 = vpop.f32.mrb[0].mxu0
      %1594 = vmatprep.mubr.f32.mxu0 0.0
      %1595 = vmatmul.mubr.f32.gmra.mrb[0].mxu0 %v1428
      %v1596 = vpop.f32.mrb[0].mxu0
      %v1597 = vadd.f32 0.0, %v1596
      %v1598 = vpop.f32.mrb[0].mxu0
      %1599 = vmatprep.mubr.f32.mxu0 0.0
      %1600 = vmatmul.mubr.f32.gmra.mrb[0].mxu0 %v1431
      %v1601 = vpop.f32.mrb[0].mxu0
      %v1602 = vadd.f32 0.0, %v1601
      %v1603 = vpop.f32.mrb[0].mxu0
      %1604 = vmatprep.mubr.f32.mxu0 0.0
      %1605 = vmatmul.mubr.f32.gmra.mrb[0].mxu0 %v1434
      %v1606 = vpop.f32.mrb[0].mxu0
      %v1607 = vadd.f32 0.0, %v1606
      %v1608 = vpop.f32.mrb[0].mxu0
      %1609 = vmatprep.mubr.f32.mxu0 0.0
      %1610 = vmatmul.mubr.f32.gmra.mrb[0].mxu0 %v1437
      %v1611 = vpop.f32.mrb[0].mxu0
      %v1612 = vadd.f32 0.0, %v1611
      %v1613 = vpop.f32.mrb[0].mxu0
      %1614 = vmatprep.mubr.f32.mxu0 0.0
      %1615 = vmatmul.mubr.f32.gmra.mrb[0].mxu0 %v1440
      %v1616 = vpop.f32.mrb[0].mxu0
      %v1617 = vadd.f32 0.0, %v1616
      %v1618 = vpop.f32.mrb[0].mxu0
      %1619 = vmatprep.mubr.f32.mxu0 0.0
      %1620 = vmatmul.mubr.f32.gmra.mrb[0].mxu0 %v1443
      %v1621 = vpop.f32.mrb[0].mxu0
      %v1622 = vadd.f32 0.0, %v1621
      %v1623 = vpop.f32.mrb[0].mxu0
      %1624 = vmatprep.mubr.f32.mxu0 0.0
      %1625 = vmatmul.mubr.f32.gmra.mrb[0].mxu0 %v1446
      %v1626 = vpop.f32.mrb[0].mxu0
      %v1627 = vadd.f32 0.0, %v1626
      %v1628 = vpop.f32.mrb[0].mxu0
      %1629 = vmatprep.mubr.f32.mxu0 0.0
      %1630 = vmatmul.mubr.f32.gmra.mrb[0].mxu0 %v1449
      %v1631 = vpop.f32.mrb[0].mxu0
      %v1632 = vadd.f32 0.0, %v1631
      %v1633 = vpop.f32.mrb[0].mxu0
      %1634 = vmatprep.mubr.f32.mxu0 0.0
      %1635 = vmatmul.mubr.f32.gmra.mrb[0].mxu0 %v1452
      %v1636 = vpop.f32.mrb[0].mxu0
      %v1637 = vadd.f32 0.0, %v1636
      %v1638 = vpop.f32.mrb[0].mxu0
      %1639 = vmatprep.mubr.f32.mxu0 0.0
      %1640 = vmatmul.mubr.f32.gmra.mrb[0].mxu0 %v1455
      %v1641 = vpop.f32.mrb[0].mxu0
      %v1642 = vadd.f32 0.0, %v1641
      %v1643 = vpop.f32.mrb[0].mxu0
      %1644 = vmatprep.mubr.f32.mxu0 0.0
      %1645 = vmatmul.mubr.f32.gmra.mrb[0].mxu0 %v1458
      %v1646 = vpop.f32.mrb[0].mxu0
      %v1647 = vadd.f32 0.0, %v1646
      %v1648 = vpop.f32.mrb[0].mxu0
      %1649 = vmatprep.mubr.f32.mxu0 0.0
      %1650 = vmatmul.mubr.f32.gmra.mrb[0].mxu0 %v1461
      %v1651 = vpop.f32.mrb[0].mxu0
      %v1652 = vadd.f32 0.0, %v1651
      %v1653 = vpop.f32.mrb[0].mxu0
      %1654 = vmatprep.mubr.f32.mxu0 0.0
      %1655 = vmatmul.mubr.f32.gmra.mrb[0].mxu0 %v1464
      %v1656 = vpop.f32.mrb[0].mxu0
      %v1657 = vadd.f32 0.0, %v1656
      %v1658 = vpop.f32.mrb[0].mxu0
      %1659 = vmatprep.mubr.f32.mxu0 0.0
      %1660 = vmatmul.mubr.f32.gmra.mrb[0].mxu0 %v1467
      %v1661 = vpop.f32.mrb[0].mxu0
      %v1662 = vadd.f32 0.0, %v1661
      %v1663 = vpop.f32.mrb[0].mxu0
      %1664 = vmatprep.mubr.f32.mxu0 0.0
      %1665 = vmatmul.mubr.f32.gmra.mrb[0].mxu0 %v1470
      %v1666 = vpop.f32.mrb[0].mxu0
      %v1667 = vadd.f32 0.0, %v1666
      %v1668 = vpop.f32.mrb[0].mxu0
      %1669 = vmatprep.mubr.f32.mxu0 0.0
      %1670 = vmatmul.mubr.f32.gmra.mrb[0].mxu0 %v1473
      %v1671 = vpop.f32.mrb[0].mxu0
      %v1672 = vadd.f32 0.0, %v1671
      %v1673 = vpop.f32.mrb[0].mxu0
      %1674 = vmatprep.mubr.f32.mxu0 0.0
      %1675 = vmatmul.mubr.f32.gmra.mrb[0].mxu0 %v1476
      %v1676 = vpop.f32.mrb[0].mxu0
      %v1677 = vadd.f32 0.0, %v1676
      %v1678 = vpop.f32.mrb[0].mxu0
      %1679 = vmatprep.mubr.f32.mxu0 0.0
      %1680 = vmatmul.mubr.f32.gmra.mrb[0].mxu0 %v1479
      %v1681 = vpop.f32.mrb[0].mxu0
      %v1682 = vadd.f32 0.0, %v1681
      %v1683 = vpop.f32.mrb[0].mxu0
      %1684 = vmatprep.mubr.f32.mxu0 0.0
      %1685 = vmatmul.mubr.f32.gmra.mrb[0].mxu0 %v1482
      %v1686 = vpop.f32.mrb[0].mxu0
      %v1687 = vadd.f32 0.0, %v1686
      %v1688 = vpop.f32.mrb[0].mxu0
      %1689 = vmatprep.mubr.f32.mxu0 0.0
      %1690 = vmatmul.mubr.f32.gmra.mrb[0].mxu0 %v1485
      %v1691 = vpop.f32.mrb[0].mxu0
      %v1692 = vadd.f32 0.0, %v1691
      %v1693 = vpop.f32.mrb[0].mxu0
      %1694 = vmatprep.mubr.f32.mxu0 0.0
      %1695 = vmatmul.mubr.f32.gmra.mrb[0].mxu0 %v1488
      %v1696 = vpop.f32.mrb[0].mxu0
      %v1697 = vadd.f32 0.0, %v1696
      %v1698 = vpop.f32.mrb[0].mxu0
      %1699 = vmatprep.mubr.f32.mxu0 0.0
      %1700 = vmatmul.mubr.f32.gmra.mrb[0].mxu0 %v1491
      %v1701 = vpop.f32.mrb[0].mxu0
      %v1702 = vadd.f32 0.0, %v1701
      %v1703 = vpop.f32.mrb[0].mxu0
      %1704 = vmatprep.mubr.f32.mxu0 0.0
      %1705 = vmatmul.mubr.f32.gmra.mrb[0].mxu0 %v1494
      %v1706 = vpop.f32.mrb[0].mxu0
      %v1707 = vadd.f32 0.0, %v1706
      %v1708 = vpop.f32.mrb[0].mxu0
      %1709 = vmatprep.mubr.f32.mxu0 0.0
      %1710 = vmatmul.mubr.f32.gmra.mrb[0].mxu0 %v1497
      %v1711 = vpop.f32.mrb[0].mxu0
      %v1712 = vadd.f32 0.0, %v1711
      %v1713 = vpop.f32.mrb[0].mxu0
      %1714 = vmatprep.mubr.f32.mxu0 0.0
      %1715 = vmatmul.mubr.f32.gmra.mrb[0].mxu0 %v1500
      %v1716 = vpop.f32.mrb[0].mxu0
      %v1717 = vadd.f32 0.0, %v1716
      %v1718 = vpop.f32.mrb[0].mxu0
      %1719 = vmatprep.mubr.f32.mxu0 0.0
      %1720 = vmatmul.mubr.f32.gmra.mrb[0].mxu0 %v1503
      %v1721 = vpop.f32.mrb[0].mxu0
      %v1722 = vadd.f32 0.0, %v1721
      %v1723 = vpop.f32.mrb[0].mxu0
      %1724 = vmatprep.mubr.f32.mxu0 0.0
      %1725 = vmatmul.mubr.f32.gmra.mrb[0].mxu0 %v1506
      %v1726 = vpop.f32.mrb[0].mxu0
      %v1727 = vadd.f32 0.0, %v1726
      %v1728 = vpop.f32.mrb[0].mxu0
      %1729 = vmatprep.mubr.f32.mxu0 0.0
      %1730 = vmatmul.mubr.f32.gmra.mrb[0].mxu0 %v1509
      %v1731 = vpop.f32.mrb[0].mxu0
      %v1732 = vadd.f32 0.0, %v1731
      %v1733 = vpop.f32.mrb[0].mxu0
      %1734 = vmatprep.mubr.f32.mxu0 0.0
      %1735 = vmatmul.mubr.f32.gmra.mrb[0].mxu0 %v1512
      %v1736 = vpop.f32.mrb[0].mxu0
      %v1737 = vadd.f32 0.0, %v1736
      %v1738 = vpop.f32.mrb[0].mxu0
      %1739 = vmatprep.mubr.f32.mxu0 0.0
      %1740 = vmatmul.mubr.f32.gmra.mrb[0].mxu0 %v1515
      %v1741 = vpop.f32.mrb[0].mxu0
      %v1742 = vadd.f32 0.0, %v1741
      %v1743 = vpop.f32.mrb[0].mxu0
      %1744 = vdwg.mxu0
      %v1745 = vadd.f32 %v1354, %v1587
      %v1746 = vadd.f32 %v1355, %v1592
      %v1747 = vadd.f32 %v1356, %v1597
      %v1748 = vadd.f32 %v1357, %v1602
      %v1749 = vadd.f32 %v1358, %v1607
      %v1750 = vadd.f32 %v1359, %v1612
      %v1751 = vadd.f32 %v1360, %v1617
      %v1752 = vadd.f32 %v1361, %v1622
      %v1753 = vadd.f32 %v1362, %v1627
      %v1754 = vadd.f32 %v1363, %v1632
      %v1755 = vadd.f32 %v1364, %v1637
      %v1756 = vadd.f32 %v1365, %v1642
      %v1757 = vadd.f32 %v1366, %v1647
      %v1758 = vadd.f32 %v1367, %v1652
      %v1759 = vadd.f32 %v1368, %v1657
      %v1760 = vadd.f32 %v1369, %v1662
      %v1761 = vadd.f32 %v1370, %v1667
      %v1762 = vadd.f32 %v1371, %v1672
      %v1763 = vadd.f32 %v1372, %v1677
      %v1764 = vadd.f32 %v1373, %v1682
      %v1765 = vadd.f32 %v1374, %v1687
      %v1766 = vadd.f32 %v1375, %v1692
      %v1767 = vadd.f32 %v1376, %v1697
      %v1768 = vadd.f32 %v1377, %v1702
      %v1769 = vadd.f32 %v1378, %v1707
      %v1770 = vadd.f32 %v1379, %v1712
      %v1771 = vadd.f32 %v1380, %v1717
      %v1772 = vadd.f32 %v1381, %v1722
      %v1773 = vadd.f32 %v1382, %v1727
      %v1774 = vadd.f32 %v1383, %v1732
      %v1775 = vadd.f32 %v1384, %v1737
      %v1776 = vadd.f32 %v1385, %v1742
      %v1777 = vld [vmem:[%s1386 + $0x1] sm:$0xff]
      %v1778 = vld [vmem:[%s1386 + $0x9] sm:$0xff]
      %v1779 = vld [vmem:[%s1386 + $0x19] sm:$0xff]
      %v1780 = vld [vmem:[%s1386 + $0x21] sm:$0xff]
      %v1781 = vld [vmem:[%s1386 + $0x31] sm:$0xff]
      %v1782 = vld [vmem:[%s1386 + $0x39] sm:$0xff]
      %v1783 = vld [vmem:[%s1386 + $0x49] sm:$0xff]
      %v1784 = vld [vmem:[%s1386 + $0x51] sm:$0xff]
      %v1785 = vld [vmem:[%s1386 + $0x61] sm:$0xff]
      %v1786 = vld [vmem:[%s1386 + $0x69] sm:$0xff]
      %v1787 = vld [vmem:[%s1386 + $0x79] sm:$0xff]
      %v1788 = vld [vmem:[%s1386 + $0x81] sm:$0xff]
      %v1789 = vld [vmem:[%s1386 + $0x91] sm:$0xff]
      %v1790 = vld [vmem:[%s1386 + $0x99] sm:$0xff]
      %v1791 = vld [vmem:[%s1386 + $0xa9] sm:$0xff]
      %v1792 = vld [vmem:[%s1386 + $0xb1] sm:$0xff]
      %v1793 = vld [vmem:[%s1386 + $0xc1] sm:$0xff]
      %v1794 = vld [vmem:[%s1386 + $0xc9] sm:$0xff]
      %v1795 = vld [vmem:[%s1386 + $0xd9] sm:$0xff]
      %v1796 = vld [vmem:[%s1386 + $0xe1] sm:$0xff]
      %v1797 = vld [vmem:[%s1386 + $0xf1] sm:$0xff]
      %v1798 = vld [vmem:[%s1386 + $0xf9] sm:$0xff]
      %v1799 = vld [vmem:[%s1386 + $0x109] sm:$0xff]
      %v1800 = vld [vmem:[%s1386 + $0x111] sm:$0xff]
      %v1801 = vld [vmem:[%s1386 + $0x121] sm:$0xff]
      %v1802 = vld [vmem:[%s1386 + $0x129] sm:$0xff]
      %v1803 = vld [vmem:[%s1386 + $0x139] sm:$0xff]
      %v1804 = vld [vmem:[%s1386 + $0x141] sm:$0xff]
      %v1805 = vld [vmem:[%s1386 + $0x151] sm:$0xff]
      %v1806 = vld [vmem:[%s1386 + $0x159] sm:$0xff]
      %v1807 = vld [vmem:[%s1386 + $0x169] sm:$0xff]
      %v1808 = vld [vmem:[%s1386 + $0x171] sm:$0xff]
      %s1809 = scalar_lea.vmem %s1, 16
      %v1810 = vld [vmem:[%s1809] sm:$0xf]
      %v1812 = vsel %vm346, %v1777, 0
      %v1815 = vsel %vm346, %v1778, 0
      %v1818 = vsel %vm346, %v1779, 0
      %v1821 = vsel %vm346, %v1780, 0
      %v1824 = vsel %vm346, %v1781, 0
      %v1827 = vsel %vm346, %v1782, 0
      %v1830 = vsel %vm346, %v1783, 0
      %v1833 = vsel %vm346, %v1784, 0
      %v1836 = vsel %vm346, %v1785, 0
      %v1839 = vsel %vm346, %v1786, 0
      %v1842 = vsel %vm346, %v1787, 0
      %v1845 = vsel %vm346, %v1788, 0
      %v1848 = vsel %vm346, %v1789, 0
      %v1851 = vsel %vm346, %v1790, 0
      %v1854 = vsel %vm346, %v1791, 0
      %v1857 = vsel %vm346, %v1792, 0
      %v1860 = vsel %vm346, %v1793, 0
      %v1863 = vsel %vm346, %v1794, 0
      %v1866 = vsel %vm346, %v1795, 0
      %v1869 = vsel %vm346, %v1796, 0
      %v1872 = vsel %vm346, %v1797, 0
      %v1875 = vsel %vm346, %v1798, 0
      %v1878 = vsel %vm346, %v1799, 0
      %v1881 = vsel %vm346, %v1800, 0
      %v1884 = vsel %vm346, %v1801, 0
      %v1887 = vsel %vm346, %v1802, 0
      %v1890 = vsel %vm346, %v1803, 0
      %v1893 = vsel %vm346, %v1804, 0
      %v1896 = vsel %vm346, %v1805, 0
      %v1899 = vsel %vm346, %v1806, 0
      %v1902 = vsel %vm346, %v1807, 0
      %v1905 = vsel %vm346, %v1808, 0
      %v1908 = vsel %vm443, %v1810, 0
      %1910 = vmatprep.subr.mxu0 0.0
      %1911 = vmatpush1.msra.mxu0 %v1908
      %1912 = vmatprep.subr.mxu0 0.0
      %1913 = vmatpush1.msra.mxu0 0.0
      %1914 = vmatprep.subr.mxu0 0.0
      %1915 = vmatpush1.msra.mxu0 0.0
      %1916 = vmatprep.subr.mxu0 0.0
      %1917 = vmatpush1.msra.mxu0 0.0
      %1918 = vmatprep.subr.mxu0 0.0
      %1919 = vmatpush1.msra.mxu0 0.0
      %1920 = vmatprep.subr.mxu0 0.0
      %1921 = vmatpush1.msra.mxu0 0.0
      %1922 = vmatprep.subr.mxu0 0.0
      %1923 = vmatpush1.msra.mxu0 0.0
      %1924 = vmatprep.subr.mxu0 0.0
      %1925 = vmatpush1.msra.mxu0 0.0
      %1926 = vmatprep.subr.mxu0 0.0
      %1927 = vmatpush1.msra.mxu0 0.0
      %1928 = vmatprep.subr.mxu0 0.0
      %1929 = vmatpush1.msra.mxu0 0.0
      %1930 = vmatprep.subr.mxu0 0.0
      %1931 = vmatpush1.msra.mxu0 0.0
      %1932 = vmatprep.subr.mxu0 0.0
      %1933 = vmatpush1.msra.mxu0 0.0
      %1934 = vmatprep.subr.mxu0 0.0
      %1935 = vmatpush1.msra.mxu0 0.0
      %1936 = vmatprep.subr.mxu0 0.0
      %1937 = vmatpush1.msra.mxu0 0.0
      %1938 = vmatprep.subr.mxu0 0.0
      %1939 = vmatpush1.msra.mxu0 0.0
      %1940 = vmatprep.subr.mxu0 0.0
      %1941 = vmatpush1.msra.mxu0 0.0
      %1942 = vmatprep.subr.mxu0 0.0
      %1943 = vmatpush1.msra.mxu0 0.0
      %1944 = vmatprep.subr.mxu0 0.0
      %1945 = vmatpush1.msra.mxu0 0.0
      %1946 = vmatprep.subr.mxu0 0.0
      %1947 = vmatpush1.msra.mxu0 0.0
      %1948 = vmatprep.subr.mxu0 0.0
      %1949 = vmatpush1.msra.mxu0 0.0
      %1950 = vmatprep.subr.mxu0 0.0
      %1951 = vmatpush1.msra.mxu0 0.0
      %1952 = vmatprep.subr.mxu0 0.0
      %1953 = vmatpush1.msra.mxu0 0.0
      %1954 = vmatprep.subr.mxu0 0.0
      %1955 = vmatpush1.msra.mxu0 0.0
      %1956 = vmatprep.subr.mxu0 0.0
      %1957 = vmatpush1.msra.mxu0 0.0
      %1958 = vmatprep.subr.mxu0 0.0
      %1959 = vmatpush1.msra.mxu0 0.0
      %1960 = vmatprep.subr.mxu0 0.0
      %1961 = vmatpush1.msra.mxu0 0.0
      %1962 = vmatprep.subr.mxu0 0.0
      %1963 = vmatpush1.msra.mxu0 0.0
      %1964 = vmatprep.subr.mxu0 0.0
      %1965 = vmatpush1.msra.mxu0 0.0
      %1966 = vmatprep.subr.mxu0 0.0
      %1967 = vmatpush1.msra.mxu0 0.0
      %1968 = vmatprep.subr.mxu0 0.0
      %1969 = vmatpush1.msra.mxu0 0.0
      %1970 = vmatprep.subr.mxu0 0.0
      %1971 = vmatpush1.msra.mxu0 0.0
      %1972 = vmatprep.subr.mxu0 0.0
      %1973 = vmatpush1.msra.mxu0 0.0
      %1974 = vmatprep.mubr.f32.mxu0 0.0
      %1975 = vmatmul.mubr.f32.gmra.mrb[0].mxu0 %v1812
      %v1976 = vpop.f32.mrb[0].mxu0
      %v1977 = vadd.f32 0.0, %v1976
      %v1978 = vpop.f32.mrb[0].mxu0
      %1979 = vmatprep.mubr.f32.mxu0 0.0
      %1980 = vmatmul.mubr.f32.gmra.mrb[0].mxu0 %v1815
      %v1981 = vpop.f32.mrb[0].mxu0
      %v1982 = vadd.f32 0.0, %v1981
      %v1983 = vpop.f32.mrb[0].mxu0
      %1984 = vmatprep.mubr.f32.mxu0 0.0
      %1985 = vmatmul.mubr.f32.gmra.mrb[0].mxu0 %v1818
      %v1986 = vpop.f32.mrb[0].mxu0
      %v1987 = vadd.f32 0.0, %v1986
      %v1988 = vpop.f32.mrb[0].mxu0
      %1989 = vmatprep.mubr.f32.mxu0 0.0
      %1990 = vmatmul.mubr.f32.gmra.mrb[0].mxu0 %v1821
      %v1991 = vpop.f32.mrb[0].mxu0
      %v1992 = vadd.f32 0.0, %v1991
      %v1993 = vpop.f32.mrb[0].mxu0
      %1994 = vmatprep.mubr.f32.mxu0 0.0
      %1995 = vmatmul.mubr.f32.gmra.mrb[0].mxu0 %v1824
      %v1996 = vpop.f32.mrb[0].mxu0
      %v1997 = vadd.f32 0.0, %v1996
      %v1998 = vpop.f32.mrb[0].mxu0
      %1999 = vmatprep.mubr.f32.mxu0 0.0
      %2000 = vmatmul.mubr.f32.gmra.mrb[0].mxu0 %v1827
      %v2001 = vpop.f32.mrb[0].mxu0
      %v2002 = vadd.f32 0.0, %v2001
      %v2003 = vpop.f32.mrb[0].mxu0
      %2004 = vmatprep.mubr.f32.mxu0 0.0
      %2005 = vmatmul.mubr.f32.gmra.mrb[0].mxu0 %v1830
      %v2006 = vpop.f32.mrb[0].mxu0
      %v2007 = vadd.f32 0.0, %v2006
      %v2008 = vpop.f32.mrb[0].mxu0
      %2009 = vmatprep.mubr.f32.mxu0 0.0
      %2010 = vmatmul.mubr.f32.gmra.mrb[0].mxu0 %v1833
      %v2011 = vpop.f32.mrb[0].mxu0
      %v2012 = vadd.f32 0.0, %v2011
      %v2013 = vpop.f32.mrb[0].mxu0
      %2014 = vmatprep.mubr.f32.mxu0 0.0
      %2015 = vmatmul.mubr.f32.gmra.mrb[0].mxu0 %v1836
      %v2016 = vpop.f32.mrb[0].mxu0
      %v2017 = vadd.f32 0.0, %v2016
      %v2018 = vpop.f32.mrb[0].mxu0
      %2019 = vmatprep.mubr.f32.mxu0 0.0
      %2020 = vmatmul.mubr.f32.gmra.mrb[0].mxu0 %v1839
      %v2021 = vpop.f32.mrb[0].mxu0
      %v2022 = vadd.f32 0.0, %v2021
      %v2023 = vpop.f32.mrb[0].mxu0
      %2024 = vmatprep.mubr.f32.mxu0 0.0
      %2025 = vmatmul.mubr.f32.gmra.mrb[0].mxu0 %v1842
      %v2026 = vpop.f32.mrb[0].mxu0
      %v2027 = vadd.f32 0.0, %v2026
      %v2028 = vpop.f32.mrb[0].mxu0
      %2029 = vmatprep.mubr.f32.mxu0 0.0
      %2030 = vmatmul.mubr.f32.gmra.mrb[0].mxu0 %v1845
      %v2031 = vpop.f32.mrb[0].mxu0
      %v2032 = vadd.f32 0.0, %v2031
      %v2033 = vpop.f32.mrb[0].mxu0
      %2034 = vmatprep.mubr.f32.mxu0 0.0
      %2035 = vmatmul.mubr.f32.gmra.mrb[0].mxu0 %v1848
      %v2036 = vpop.f32.mrb[0].mxu0
      %v2037 = vadd.f32 0.0, %v2036
      %v2038 = vpop.f32.mrb[0].mxu0
      %2039 = vmatprep.mubr.f32.mxu0 0.0
      %2040 = vmatmul.mubr.f32.gmra.mrb[0].mxu0 %v1851
      %v2041 = vpop.f32.mrb[0].mxu0
      %v2042 = vadd.f32 0.0, %v2041
      %v2043 = vpop.f32.mrb[0].mxu0
      %2044 = vmatprep.mubr.f32.mxu0 0.0
      %2045 = vmatmul.mubr.f32.gmra.mrb[0].mxu0 %v1854
      %v2046 = vpop.f32.mrb[0].mxu0
      %v2047 = vadd.f32 0.0, %v2046
      %v2048 = vpop.f32.mrb[0].mxu0
      %2049 = vmatprep.mubr.f32.mxu0 0.0
      %2050 = vmatmul.mubr.f32.gmra.mrb[0].mxu0 %v1857
      %v2051 = vpop.f32.mrb[0].mxu0
      %v2052 = vadd.f32 0.0, %v2051
      %v2053 = vpop.f32.mrb[0].mxu0
      %2054 = vmatprep.mubr.f32.mxu0 0.0
      %2055 = vmatmul.mubr.f32.gmra.mrb[0].mxu0 %v1860
      %v2056 = vpop.f32.mrb[0].mxu0
      %v2057 = vadd.f32 0.0, %v2056
      %v2058 = vpop.f32.mrb[0].mxu0
      %2059 = vmatprep.mubr.f32.mxu0 0.0
      %2060 = vmatmul.mubr.f32.gmra.mrb[0].mxu0 %v1863
      %v2061 = vpop.f32.mrb[0].mxu0
      %v2062 = vadd.f32 0.0, %v2061
      %v2063 = vpop.f32.mrb[0].mxu0
      %2064 = vmatprep.mubr.f32.mxu0 0.0
      %2065 = vmatmul.mubr.f32.gmra.mrb[0].mxu0 %v1866
      %v2066 = vpop.f32.mrb[0].mxu0
      %v2067 = vadd.f32 0.0, %v2066
      %v2068 = vpop.f32.mrb[0].mxu0
      %2069 = vmatprep.mubr.f32.mxu0 0.0
      %2070 = vmatmul.mubr.f32.gmra.mrb[0].mxu0 %v1869
      %v2071 = vpop.f32.mrb[0].mxu0
      %v2072 = vadd.f32 0.0, %v2071
      %v2073 = vpop.f32.mrb[0].mxu0
      %2074 = vmatprep.mubr.f32.mxu0 0.0
      %2075 = vmatmul.mubr.f32.gmra.mrb[0].mxu0 %v1872
      %v2076 = vpop.f32.mrb[0].mxu0
      %v2077 = vadd.f32 0.0, %v2076
      %v2078 = vpop.f32.mrb[0].mxu0
      %2079 = vmatprep.mubr.f32.mxu0 0.0
      %2080 = vmatmul.mubr.f32.gmra.mrb[0].mxu0 %v1875
      %v2081 = vpop.f32.mrb[0].mxu0
      %v2082 = vadd.f32 0.0, %v2081
      %v2083 = vpop.f32.mrb[0].mxu0
      %2084 = vmatprep.mubr.f32.mxu0 0.0
      %2085 = vmatmul.mubr.f32.gmra.mrb[0].mxu0 %v1878
      %v2086 = vpop.f32.mrb[0].mxu0
      %v2087 = vadd.f32 0.0, %v2086
      %v2088 = vpop.f32.mrb[0].mxu0
      %2089 = vmatprep.mubr.f32.mxu0 0.0
      %2090 = vmatmul.mubr.f32.gmra.mrb[0].mxu0 %v1881
      %v2091 = vpop.f32.mrb[0].mxu0
      %v2092 = vadd.f32 0.0, %v2091
      %v2093 = vpop.f32.mrb[0].mxu0
      %2094 = vmatprep.mubr.f32.mxu0 0.0
      %2095 = vmatmul.mubr.f32.gmra.mrb[0].mxu0 %v1884
      %v2096 = vpop.f32.mrb[0].mxu0
      %v2097 = vadd.f32 0.0, %v2096
      %v2098 = vpop.f32.mrb[0].mxu0
      %2099 = vmatprep.mubr.f32.mxu0 0.0
      %2100 = vmatmul.mubr.f32.gmra.mrb[0].mxu0 %v1887
      %v2101 = vpop.f32.mrb[0].mxu0
      %v2102 = vadd.f32 0.0, %v2101
      %v2103 = vpop.f32.mrb[0].mxu0
      %2104 = vmatprep.mubr.f32.mxu0 0.0
      %2105 = vmatmul.mubr.f32.gmra.mrb[0].mxu0 %v1890
      %v2106 = vpop.f32.mrb[0].mxu0
      %v2107 = vadd.f32 0.0, %v2106
      %v2108 = vpop.f32.mrb[0].mxu0
      %2109 = vmatprep.mubr.f32.mxu0 0.0
      %2110 = vmatmul.mubr.f32.gmra.mrb[0].mxu0 %v1893
      %v2111 = vpop.f32.mrb[0].mxu0
      %v2112 = vadd.f32 0.0, %v2111
      %v2113 = vpop.f32.mrb[0].mxu0
      %2114 = vmatprep.mubr.f32.mxu0 0.0
      %2115 = vmatmul.mubr.f32.gmra.mrb[0].mxu0 %v1896
      %v2116 = vpop.f32.mrb[0].mxu0
      %v2117 = vadd.f32 0.0, %v2116
      %v2118 = vpop.f32.mrb[0].mxu0
      %2119 = vmatprep.mubr.f32.mxu0 0.0
      %2120 = vmatmul.mubr.f32.gmra.mrb[0].mxu0 %v1899
      %v2121 = vpop.f32.mrb[0].mxu0
      %v2122 = vadd.f32 0.0, %v2121
      %v2123 = vpop.f32.mrb[0].mxu0
      %2124 = vmatprep.mubr.f32.mxu0 0.0
      %2125 = vmatmul.mubr.f32.gmra.mrb[0].mxu0 %v1902
      %v2126 = vpop.f32.mrb[0].mxu0
      %v2127 = vadd.f32 0.0, %v2126
      %v2128 = vpop.f32.mrb[0].mxu0
      %2129 = vmatprep.mubr.f32.mxu0 0.0
      %2130 = vmatmul.mubr.f32.gmra.mrb[0].mxu0 %v1905
      %v2131 = vpop.f32.mrb[0].mxu0
      %v2132 = vadd.f32 0.0, %v2131
      %v2133 = vpop.f32.mrb[0].mxu0
      %2134 = vdwg.mxu0
      %v2135 = vadd.f32 %v1745, %v1977
      %v2136 = vadd.f32 %v1746, %v1982
      %v2137 = vadd.f32 %v1747, %v1987
      %v2138 = vadd.f32 %v1748, %v1992
      %v2139 = vadd.f32 %v1749, %v1997
      %v2140 = vadd.f32 %v1750, %v2002
      %v2141 = vadd.f32 %v1751, %v2007
      %v2142 = vadd.f32 %v1752, %v2012
      %v2143 = vadd.f32 %v1753, %v2017
      %v2144 = vadd.f32 %v1754, %v2022
      %v2145 = vadd.f32 %v1755, %v2027
      %v2146 = vadd.f32 %v1756, %v2032
      %v2147 = vadd.f32 %v1757, %v2037
      %v2148 = vadd.f32 %v1758, %v2042
      %v2149 = vadd.f32 %v1759, %v2047
      %v2150 = vadd.f32 %v1760, %v2052
      %v2151 = vadd.f32 %v1761, %v2057
      %v2152 = vadd.f32 %v1762, %v2062
      %v2153 = vadd.f32 %v1763, %v2067
      %v2154 = vadd.f32 %v1764, %v2072
      %v2155 = vadd.f32 %v1765, %v2077
      %v2156 = vadd.f32 %v1766, %v2082
      %v2157 = vadd.f32 %v1767, %v2087
      %v2158 = vadd.f32 %v1768, %v2092
      %v2159 = vadd.f32 %v1769, %v2097
      %v2160 = vadd.f32 %v1770, %v2102
      %v2161 = vadd.f32 %v1771, %v2107
      %v2162 = vadd.f32 %v1772, %v2112
      %v2163 = vadd.f32 %v1773, %v2117
      %v2164 = vadd.f32 %v1774, %v2122
      %v2165 = vadd.f32 %v1775, %v2127
      %v2166 = vadd.f32 %v1776, %v2132
      %v2167 = vld [vmem:[%s1386 + $0x2] sm:$0xff]
      %v2168 = vld [vmem:[%s1386 + $0xa] sm:$0xff]
      %v2169 = vld [vmem:[%s1386 + $0x1a] sm:$0xff]
      %v2170 = vld [vmem:[%s1386 + $0x22] sm:$0xff]
      %v2171 = vld [vmem:[%s1386 + $0x32] sm:$0xff]
      %v2172 = vld [vmem:[%s1386 + $0x3a] sm:$0xff]
      %v2173 = vld [vmem:[%s1386 + $0x4a] sm:$0xff]
      %v2174 = vld [vmem:[%s1386 + $0x52] sm:$0xff]
      %v2175 = vld [vmem:[%s1386 + $0x62] sm:$0xff]
      %v2176 = vld [vmem:[%s1386 + $0x6a] sm:$0xff]
      %v2177 = vld [vmem:[%s1386 + $0x7a] sm:$0xff]
      %v2178 = vld [vmem:[%s1386 + $0x82] sm:$0xff]
      %v2179 = vld [vmem:[%s1386 + $0x92] sm:$0xff]
      %v2180 = vld [vmem:[%s1386 + $0x9a] sm:$0xff]
      %v2181 = vld [vmem:[%s1386 + $0xaa] sm:$0xff]
      %v2182 = vld [vmem:[%s1386 + $0xb2] sm:$0xff]
      %v2183 = vld [vmem:[%s1386 + $0xc2] sm:$0xff]
      %v2184 = vld [vmem:[%s1386 + $0xca] sm:$0xff]
      %v2185 = vld [vmem:[%s1386 + $0xda] sm:$0xff]
      %v2186 = vld [vmem:[%s1386 + $0xe2] sm:$0xff]
      %v2187 = vld [vmem:[%s1386 + $0xf2] sm:$0xff]
      %v2188 = vld [vmem:[%s1386 + $0xfa] sm:$0xff]
      %v2189 = vld [vmem:[%s1386 + $0x10a] sm:$0xff]
      %v2190 = vld [vmem:[%s1386 + $0x112] sm:$0xff]
      %v2191 = vld [vmem:[%s1386 + $0x122] sm:$0xff]
      %v2192 = vld [vmem:[%s1386 + $0x12a] sm:$0xff]
      %v2193 = vld [vmem:[%s1386 + $0x13a] sm:$0xff]
      %v2194 = vld [vmem:[%s1386 + $0x142] sm:$0xff]
      %v2195 = vld [vmem:[%s1386 + $0x152] sm:$0xff]
      %v2196 = vld [vmem:[%s1386 + $0x15a] sm:$0xff]
      %v2197 = vld [vmem:[%s1386 + $0x16a] sm:$0xff]
      %v2198 = vld [vmem:[%s1386 + $0x172] sm:$0xff]
      %s2199 = scalar_lea.vmem %s1, 20
      %v2200 = vld [vmem:[%s2199] sm:$0xf]
      %v2202 = vsel %vm346, %v2167, 0
      %v2205 = vsel %vm346, %v2168, 0
      %v2208 = vsel %vm346, %v2169, 0
      %v2211 = vsel %vm346, %v2170, 0
      %v2214 = vsel %vm346, %v2171, 0
      %v2217 = vsel %vm346, %v2172, 0
      %v2220 = vsel %vm346, %v2173, 0
      %v2223 = vsel %vm346, %v2174, 0
      %v2226 = vsel %vm346, %v2175, 0
      %v2229 = vsel %vm346, %v2176, 0
      %v2232 = vsel %vm346, %v2177, 0
      %v2235 = vsel %vm346, %v2178, 0
      %v2238 = vsel %vm346, %v2179, 0
      %v2241 = vsel %vm346, %v2180, 0
      %v2244 = vsel %vm346, %v2181, 0
      %v2247 = vsel %vm346, %v2182, 0
      %v2250 = vsel %vm346, %v2183, 0
      %v2253 = vsel %vm346, %v2184, 0
      %v2256 = vsel %vm346, %v2185, 0
      %v2259 = vsel %vm346, %v2186, 0
      %v2262 = vsel %vm346, %v2187, 0
      %v2265 = vsel %vm346, %v2188, 0
      %v2268 = vsel %vm346, %v2189, 0
      %v2271 = vsel %vm346, %v2190, 0
      %v2274 = vsel %vm346, %v2191, 0
      %v2277 = vsel %vm346, %v2192, 0
      %v2280 = vsel %vm346, %v2193, 0
      %v2283 = vsel %vm346, %v2194, 0
      %v2286 = vsel %vm346, %v2195, 0
      %v2289 = vsel %vm346, %v2196, 0
      %v2292 = vsel %vm346, %v2197, 0
      %v2295 = vsel %vm346, %v2198, 0
      %v2298 = vsel %vm443, %v2200, 0
      %2300 = vmatprep.subr.mxu0 0.0
      %2301 = vmatpush1.msra.mxu0 %v2298
      %2302 = vmatprep.subr.mxu0 0.0
      %2303 = vmatpush1.msra.mxu0 0.0
      %2304 = vmatprep.subr.mxu0 0.0
      %2305 = vmatpush1.msra.mxu0 0.0
      %2306 = vmatprep.subr.mxu0 0.0
      %2307 = vmatpush1.msra.mxu0 0.0
      %2308 = vmatprep.subr.mxu0 0.0
      %2309 = vmatpush1.msra.mxu0 0.0
      %2310 = vmatprep.subr.mxu0 0.0
      %2311 = vmatpush1.msra.mxu0 0.0
      %2312 = vmatprep.subr.mxu0 0.0
      %2313 = vmatpush1.msra.mxu0 0.0
      %2314 = vmatprep.subr.mxu0 0.0
      %2315 = vmatpush1.msra.mxu0 0.0
      %2316 = vmatprep.subr.mxu0 0.0
      %2317 = vmatpush1.msra.mxu0 0.0
      %2318 = vmatprep.subr.mxu0 0.0
      %2319 = vmatpush1.msra.mxu0 0.0
      %2320 = vmatprep.subr.mxu0 0.0
      %2321 = vmatpush1.msra.mxu0 0.0
      %2322 = vmatprep.subr.mxu0 0.0
      %2323 = vmatpush1.msra.mxu0 0.0
      %2324 = vmatprep.subr.mxu0 0.0
      %2325 = vmatpush1.msra.mxu0 0.0
      %2326 = vmatprep.subr.mxu0 0.0
      %2327 = vmatpush1.msra.mxu0 0.0
      %2328 = vmatprep.subr.mxu0 0.0
      %2329 = vmatpush1.msra.mxu0 0.0
      %2330 = vmatprep.subr.mxu0 0.0
      %2331 = vmatpush1.msra.mxu0 0.0
      %2332 = vmatprep.subr.mxu0 0.0
      %2333 = vmatpush1.msra.mxu0 0.0
      %2334 = vmatprep.subr.mxu0 0.0
      %2335 = vmatpush1.msra.mxu0 0.0
      %2336 = vmatprep.subr.mxu0 0.0
      %2337 = vmatpush1.msra.mxu0 0.0
      %2338 = vmatprep.subr.mxu0 0.0
      %2339 = vmatpush1.msra.mxu0 0.0
      %2340 = vmatprep.subr.mxu0 0.0
      %2341 = vmatpush1.msra.mxu0 0.0
      %2342 = vmatprep.subr.mxu0 0.0
      %2343 = vmatpush1.msra.mxu0 0.0
      %2344 = vmatprep.subr.mxu0 0.0
      %2345 = vmatpush1.msra.mxu0 0.0
      %2346 = vmatprep.subr.mxu0 0.0
      %2347 = vmatpush1.msra.mxu0 0.0
      %2348 = vmatprep.subr.mxu0 0.0
      %2349 = vmatpush1.msra.mxu0 0.0
      %2350 = vmatprep.subr.mxu0 0.0
      %2351 = vmatpush1.msra.mxu0 0.0
      %2352 = vmatprep.subr.mxu0 0.0
      %2353 = vmatpush1.msra.mxu0 0.0
      %2354 = vmatprep.subr.mxu0 0.0
      %2355 = vmatpush1.msra.mxu0 0.0
      %2356 = vmatprep.subr.mxu0 0.0
      %2357 = vmatpush1.msra.mxu0 0.0
      %2358 = vmatprep.subr.mxu0 0.0
      %2359 = vmatpush1.msra.mxu0 0.0
      %2360 = vmatprep.subr.mxu0 0.0
      %2361 = vmatpush1.msra.mxu0 0.0
      %2362 = vmatprep.subr.mxu0 0.0
      %2363 = vmatpush1.msra.mxu0 0.0
      %2364 = vmatprep.mubr.f32.mxu0 0.0
      %2365 = vmatmul.mubr.f32.gmra.mrb[0].mxu0 %v2202
      %v2366 = vpop.f32.mrb[0].mxu0
      %v2367 = vadd.f32 0.0, %v2366
      %v2368 = vpop.f32.mrb[0].mxu0
      %2369 = vmatprep.mubr.f32.mxu0 0.0
      %2370 = vmatmul.mubr.f32.gmra.mrb[0].mxu0 %v2205
      %v2371 = vpop.f32.mrb[0].mxu0
      %v2372 = vadd.f32 0.0, %v2371
      %v2373 = vpop.f32.mrb[0].mxu0
      %2374 = vmatprep.mubr.f32.mxu0 0.0
      %2375 = vmatmul.mubr.f32.gmra.mrb[0].mxu0 %v2208
      %v2376 = vpop.f32.mrb[0].mxu0
      %v2377 = vadd.f32 0.0, %v2376
      %v2378 = vpop.f32.mrb[0].mxu0
      %2379 = vmatprep.mubr.f32.mxu0 0.0
      %2380 = vmatmul.mubr.f32.gmra.mrb[0].mxu0 %v2211
      %v2381 = vpop.f32.mrb[0].mxu0
      %v2382 = vadd.f32 0.0, %v2381
      %v2383 = vpop.f32.mrb[0].mxu0
      %2384 = vmatprep.mubr.f32.mxu0 0.0
      %2385 = vmatmul.mubr.f32.gmra.mrb[0].mxu0 %v2214
      %v2386 = vpop.f32.mrb[0].mxu0
      %v2387 = vadd.f32 0.0, %v2386
      %v2388 = vpop.f32.mrb[0].mxu0
      %2389 = vmatprep.mubr.f32.mxu0 0.0
      %2390 = vmatmul.mubr.f32.gmra.mrb[0].mxu0 %v2217
      %v2391 = vpop.f32.mrb[0].mxu0
      %v2392 = vadd.f32 0.0, %v2391
      %v2393 = vpop.f32.mrb[0].mxu0
      %2394 = vmatprep.mubr.f32.mxu0 0.0
      %2395 = vmatmul.mubr.f32.gmra.mrb[0].mxu0 %v2220
      %v2396 = vpop.f32.mrb[0].mxu0
      %v2397 = vadd.f32 0.0, %v2396
      %v2398 = vpop.f32.mrb[0].mxu0
      %2399 = vmatprep.mubr.f32.mxu0 0.0
      %2400 = vmatmul.mubr.f32.gmra.mrb[0].mxu0 %v2223
      %v2401 = vpop.f32.mrb[0].mxu0
      %v2402 = vadd.f32 0.0, %v2401
      %v2403 = vpop.f32.mrb[0].mxu0
      %2404 = vmatprep.mubr.f32.mxu0 0.0
      %2405 = vmatmul.mubr.f32.gmra.mrb[0].mxu0 %v2226
      %v2406 = vpop.f32.mrb[0].mxu0
      %v2407 = vadd.f32 0.0, %v2406
      %v2408 = vpop.f32.mrb[0].mxu0
      %2409 = vmatprep.mubr.f32.mxu0 0.0
      %2410 = vmatmul.mubr.f32.gmra.mrb[0].mxu0 %v2229
      %v2411 = vpop.f32.mrb[0].mxu0
      %v2412 = vadd.f32 0.0, %v2411
      %v2413 = vpop.f32.mrb[0].mxu0
      %2414 = vmatprep.mubr.f32.mxu0 0.0
      %2415 = vmatmul.mubr.f32.gmra.mrb[0].mxu0 %v2232
      %v2416 = vpop.f32.mrb[0].mxu0
      %v2417 = vadd.f32 0.0, %v2416
      %v2418 = vpop.f32.mrb[0].mxu0
      %2419 = vmatprep.mubr.f32.mxu0 0.0
      %2420 = vmatmul.mubr.f32.gmra.mrb[0].mxu0 %v2235
      %v2421 = vpop.f32.mrb[0].mxu0
      %v2422 = vadd.f32 0.0, %v2421
      %v2423 = vpop.f32.mrb[0].mxu0
      %2424 = vmatprep.mubr.f32.mxu0 0.0
      %2425 = vmatmul.mubr.f32.gmra.mrb[0].mxu0 %v2238
      %v2426 = vpop.f32.mrb[0].mxu0
      %v2427 = vadd.f32 0.0, %v2426
      %v2428 = vpop.f32.mrb[0].mxu0
      %2429 = vmatprep.mubr.f32.mxu0 0.0
      %2430 = vmatmul.mubr.f32.gmra.mrb[0].mxu0 %v2241
      %v2431 = vpop.f32.mrb[0].mxu0
      %v2432 = vadd.f32 0.0, %v2431
      %v2433 = vpop.f32.mrb[0].mxu0
      %2434 = vmatprep.mubr.f32.mxu0 0.0
      %2435 = vmatmul.mubr.f32.gmra.mrb[0].mxu0 %v2244
      %v2436 = vpop.f32.mrb[0].mxu0
      %v2437 = vadd.f32 0.0, %v2436
      %v2438 = vpop.f32.mrb[0].mxu0
      %2439 = vmatprep.mubr.f32.mxu0 0.0
      %2440 = vmatmul.mubr.f32.gmra.mrb[0].mxu0 %v2247
      %v2441 = vpop.f32.mrb[0].mxu0
      %v2442 = vadd.f32 0.0, %v2441
      %v2443 = vpop.f32.mrb[0].mxu0
      %2444 = vmatprep.mubr.f32.mxu0 0.0
      %2445 = vmatmul.mubr.f32.gmra.mrb[0].mxu0 %v2250
      %v2446 = vpop.f32.mrb[0].mxu0
      %v2447 = vadd.f32 0.0, %v2446
      %v2448 = vpop.f32.mrb[0].mxu0
      %2449 = vmatprep.mubr.f32.mxu0 0.0
      %2450 = vmatmul.mubr.f32.gmra.mrb[0].mxu0 %v2253
      %v2451 = vpop.f32.mrb[0].mxu0
      %v2452 = vadd.f32 0.0, %v2451
      %v2453 = vpop.f32.mrb[0].mxu0
      %2454 = vmatprep.mubr.f32.mxu0 0.0
      %2455 = vmatmul.mubr.f32.gmra.mrb[0].mxu0 %v2256
      %v2456 = vpop.f32.mrb[0].mxu0
      %v2457 = vadd.f32 0.0, %v2456
      %v2458 = vpop.f32.mrb[0].mxu0
      %2459 = vmatprep.mubr.f32.mxu0 0.0
      %2460 = vmatmul.mubr.f32.gmra.mrb[0].mxu0 %v2259
      %v2461 = vpop.f32.mrb[0].mxu0
      %v2462 = vadd.f32 0.0, %v2461
      %v2463 = vpop.f32.mrb[0].mxu0
      %2464 = vmatprep.mubr.f32.mxu0 0.0
      %2465 = vmatmul.mubr.f32.gmra.mrb[0].mxu0 %v2262
      %v2466 = vpop.f32.mrb[0].mxu0
      %v2467 = vadd.f32 0.0, %v2466
      %v2468 = vpop.f32.mrb[0].mxu0
      %2469 = vmatprep.mubr.f32.mxu0 0.0
      %2470 = vmatmul.mubr.f32.gmra.mrb[0].mxu0 %v2265
      %v2471 = vpop.f32.mrb[0].mxu0
      %v2472 = vadd.f32 0.0, %v2471
      %v2473 = vpop.f32.mrb[0].mxu0
      %2474 = vmatprep.mubr.f32.mxu0 0.0
      %2475 = vmatmul.mubr.f32.gmra.mrb[0].mxu0 %v2268
      %v2476 = vpop.f32.mrb[0].mxu0
      %v2477 = vadd.f32 0.0, %v2476
      %v2478 = vpop.f32.mrb[0].mxu0
      %2479 = vmatprep.mubr.f32.mxu0 0.0
      %2480 = vmatmul.mubr.f32.gmra.mrb[0].mxu0 %v2271
      %v2481 = vpop.f32.mrb[0].mxu0
      %v2482 = vadd.f32 0.0, %v2481
      %v2483 = vpop.f32.mrb[0].mxu0
      %2484 = vmatprep.mubr.f32.mxu0 0.0
      %2485 = vmatmul.mubr.f32.gmra.mrb[0].mxu0 %v2274
      %v2486 = vpop.f32.mrb[0].mxu0
      %v2487 = vadd.f32 0.0, %v2486
      %v2488 = vpop.f32.mrb[0].mxu0
      %2489 = vmatprep.mubr.f32.mxu0 0.0
      %2490 = vmatmul.mubr.f32.gmra.mrb[0].mxu0 %v2277
      %v2491 = vpop.f32.mrb[0].mxu0
      %v2492 = vadd.f32 0.0, %v2491
      %v2493 = vpop.f32.mrb[0].mxu0
      %2494 = vmatprep.mubr.f32.mxu0 0.0
      %2495 = vmatmul.mubr.f32.gmra.mrb[0].mxu0 %v2280
      %v2496 = vpop.f32.mrb[0].mxu0
      %v2497 = vadd.f32 0.0, %v2496
      %v2498 = vpop.f32.mrb[0].mxu0
      %2499 = vmatprep.mubr.f32.mxu0 0.0
      %2500 = vmatmul.mubr.f32.gmra.mrb[0].mxu0 %v2283
      %v2501 = vpop.f32.mrb[0].mxu0
      %v2502 = vadd.f32 0.0, %v2501
      %v2503 = vpop.f32.mrb[0].mxu0
      %2504 = vmatprep.mubr.f32.mxu0 0.0
      %2505 = vmatmul.mubr.f32.gmra.mrb[0].mxu0 %v2286
      %v2506 = vpop.f32.mrb[0].mxu0
      %v2507 = vadd.f32 0.0, %v2506
      %v2508 = vpop.f32.mrb[0].mxu0
      %2509 = vmatprep.mubr.f32.mxu0 0.0
      %2510 = vmatmul.mubr.f32.gmra.mrb[0].mxu0 %v2289
      %v2511 = vpop.f32.mrb[0].mxu0
      %v2512 = vadd.f32 0.0, %v2511
      %v2513 = vpop.f32.mrb[0].mxu0
      %2514 = vmatprep.mubr.f32.mxu0 0.0
      %2515 = vmatmul.mubr.f32.gmra.mrb[0].mxu0 %v2292
      %v2516 = vpop.f32.mrb[0].mxu0
      %v2517 = vadd.f32 0.0, %v2516
      %v2518 = vpop.f32.mrb[0].mxu0
      %2519 = vmatprep.mubr.f32.mxu0 0.0
      %2520 = vmatmul.mubr.f32.gmra.mrb[0].mxu0 %v2295
      %v2521 = vpop.f32.mrb[0].mxu0
      %v2522 = vadd.f32 0.0, %v2521
      %v2523 = vpop.f32.mrb[0].mxu0
      %2524 = vdwg.mxu0
      %v2525 = vadd.f32 %v2135, %v2367
      %v2526 = vadd.f32 %v2136, %v2372
      %v2527 = vadd.f32 %v2137, %v2377
      %v2528 = vadd.f32 %v2138, %v2382
      %v2529 = vadd.f32 %v2139, %v2387
      %v2530 = vadd.f32 %v2140, %v2392
      %v2531 = vadd.f32 %v2141, %v2397
      %v2532 = vadd.f32 %v2142, %v2402
      %v2533 = vadd.f32 %v2143, %v2407
      %v2534 = vadd.f32 %v2144, %v2412
      %v2535 = vadd.f32 %v2145, %v2417
      %v2536 = vadd.f32 %v2146, %v2422
      %v2537 = vadd.f32 %v2147, %v2427
      %v2538 = vadd.f32 %v2148, %v2432
      %v2539 = vadd.f32 %v2149, %v2437
      %v2540 = vadd.f32 %v2150, %v2442
      %v2541 = vadd.f32 %v2151, %v2447
      %v2542 = vadd.f32 %v2152, %v2452
      %v2543 = vadd.f32 %v2153, %v2457
      %v2544 = vadd.f32 %v2154, %v2462
      %v2545 = vadd.f32 %v2155, %v2467
      %v2546 = vadd.f32 %v2156, %v2472
      %v2547 = vadd.f32 %v2157, %v2477
      %v2548 = vadd.f32 %v2158, %v2482
      %v2549 = vadd.f32 %v2159, %v2487
      %v2550 = vadd.f32 %v2160, %v2492
      %v2551 = vadd.f32 %v2161, %v2497
      %v2552 = vadd.f32 %v2162, %v2502
      %v2553 = vadd.f32 %v2163, %v2507
      %v2554 = vadd.f32 %v2164, %v2512
      %v2555 = vadd.f32 %v2165, %v2517
      %v2556 = vadd.f32 %v2166, %v2522
      %s2557 = scalar_lea.vmem %s273, 48
      %v2558 = vld [vmem:[%s2557] sm:$0xff]
      %v2559 = vld [vmem:[%s2557 + $0x8] sm:$0xff]
      %v2560 = vld [vmem:[%s2557 + $0x18] sm:$0xff]
      %v2561 = vld [vmem:[%s2557 + $0x20] sm:$0xff]
      %v2562 = vld [vmem:[%s2557 + $0x30] sm:$0xff]
      %v2563 = vld [vmem:[%s2557 + $0x38] sm:$0xff]
      %v2564 = vld [vmem:[%s2557 + $0x48] sm:$0xff]
      %v2565 = vld [vmem:[%s2557 + $0x50] sm:$0xff]
      %v2566 = vld [vmem:[%s2557 + $0x60] sm:$0xff]
      %v2567 = vld [vmem:[%s2557 + $0x68] sm:$0xff]
      %v2568 = vld [vmem:[%s2557 + $0x78] sm:$0xff]
      %v2569 = vld [vmem:[%s2557 + $0x80] sm:$0xff]
      %v2570 = vld [vmem:[%s2557 + $0x90] sm:$0xff]
      %v2571 = vld [vmem:[%s2557 + $0x98] sm:$0xff]
      %v2572 = vld [vmem:[%s2557 + $0xa8] sm:$0xff]
      %v2573 = vld [vmem:[%s2557 + $0xb0] sm:$0xff]
      %v2574 = vld [vmem:[%s2557 + $0xc0] sm:$0xff]
      %v2575 = vld [vmem:[%s2557 + $0xc8] sm:$0xff]
      %v2576 = vld [vmem:[%s2557 + $0xd8] sm:$0xff]
      %v2577 = vld [vmem:[%s2557 + $0xe0] sm:$0xff]
      %v2578 = vld [vmem:[%s2557 + $0xf0] sm:$0xff]
      %v2579 = vld [vmem:[%s2557 + $0xf8] sm:$0xff]
      %v2580 = vld [vmem:[%s2557 + $0x108] sm:$0xff]
      %v2581 = vld [vmem:[%s2557 + $0x110] sm:$0xff]
      %v2582 = vld [vmem:[%s2557 + $0x120] sm:$0xff]
      %v2583 = vld [vmem:[%s2557 + $0x128] sm:$0xff]
      %v2584 = vld [vmem:[%s2557 + $0x138] sm:$0xff]
      %v2585 = vld [vmem:[%s2557 + $0x140] sm:$0xff]
      %v2586 = vld [vmem:[%s2557 + $0x150] sm:$0xff]
      %v2587 = vld [vmem:[%s2557 + $0x158] sm:$0xff]
      %v2588 = vld [vmem:[%s2557 + $0x168] sm:$0xff]
      %v2589 = vld [vmem:[%s2557 + $0x170] sm:$0xff]
      %s2590 = scalar_lea.vmem %s1, 24
      %v2591 = vld [vmem:[%s2590] sm:$0xf]
      %v2593 = vsel %vm346, %v2558, 0
      %v2596 = vsel %vm346, %v2559, 0
      %v2599 = vsel %vm346, %v2560, 0
      %v2602 = vsel %vm346, %v2561, 0
      %v2605 = vsel %vm346, %v2562, 0
      %v2608 = vsel %vm346, %v2563, 0
      %v2611 = vsel %vm346, %v2564, 0
      %v2614 = vsel %vm346, %v2565, 0
      %v2617 = vsel %vm346, %v2566, 0
      %v2620 = vsel %vm346, %v2567, 0
      %v2623 = vsel %vm346, %v2568, 0
      %v2626 = vsel %vm346, %v2569, 0
      %v2629 = vsel %vm346, %v2570, 0
      %v2632 = vsel %vm346, %v2571, 0
      %v2635 = vsel %vm346, %v2572, 0
      %v2638 = vsel %vm346, %v2573, 0
      %v2641 = vsel %vm346, %v2574, 0
      %v2644 = vsel %vm346, %v2575, 0
      %v2647 = vsel %vm346, %v2576, 0
      %v2650 = vsel %vm346, %v2577, 0
      %v2653 = vsel %vm346, %v2578, 0
      %v2656 = vsel %vm346, %v2579, 0
      %v2659 = vsel %vm346, %v2580, 0
      %v2662 = vsel %vm346, %v2581, 0
      %v2665 = vsel %vm346, %v2582, 0
      %v2668 = vsel %vm346, %v2583, 0
      %v2671 = vsel %vm346, %v2584, 0
      %v2674 = vsel %vm346, %v2585, 0
      %v2677 = vsel %vm346, %v2586, 0
      %v2680 = vsel %vm346, %v2587, 0
      %v2683 = vsel %vm346, %v2588, 0
      %v2686 = vsel %vm346, %v2589, 0
      %v2689 = vsel %vm443, %v2591, 0
      %2691 = vmatprep.subr.mxu0 0.0
      %2692 = vmatpush1.msra.mxu0 %v2689
      %2693 = vmatprep.subr.mxu0 0.0
      %2694 = vmatpush1.msra.mxu0 0.0
      %2695 = vmatprep.subr.mxu0 0.0
      %2696 = vmatpush1.msra.mxu0 0.0
      %2697 = vmatprep.subr.mxu0 0.0
      %2698 = vmatpush1.msra.mxu0 0.0
      %2699 = vmatprep.subr.mxu0 0.0
      %2700 = vmatpush1.msra.mxu0 0.0
      %2701 = vmatprep.subr.mxu0 0.0
      %2702 = vmatpush1.msra.mxu0 0.0
      %2703 = vmatprep.subr.mxu0 0.0
      %2704 = vmatpush1.msra.mxu0 0.0
      %2705 = vmatprep.subr.mxu0 0.0
      %2706 = vmatpush1.msra.mxu0 0.0
      %2707 = vmatprep.subr.mxu0 0.0
      %2708 = vmatpush1.msra.mxu0 0.0
      %2709 = vmatprep.subr.mxu0 0.0
      %2710 = vmatpush1.msra.mxu0 0.0
      %2711 = vmatprep.subr.mxu0 0.0
      %2712 = vmatpush1.msra.mxu0 0.0
      %2713 = vmatprep.subr.mxu0 0.0
      %2714 = vmatpush1.msra.mxu0 0.0
      %2715 = vmatprep.subr.mxu0 0.0
      %2716 = vmatpush1.msra.mxu0 0.0
      %2717 = vmatprep.subr.mxu0 0.0
      %2718 = vmatpush1.msra.mxu0 0.0
      %2719 = vmatprep.subr.mxu0 0.0
      %2720 = vmatpush1.msra.mxu0 0.0
      %2721 = vmatprep.subr.mxu0 0.0
      %2722 = vmatpush1.msra.mxu0 0.0
      %2723 = vmatprep.subr.mxu0 0.0
      %2724 = vmatpush1.msra.mxu0 0.0
      %2725 = vmatprep.subr.mxu0 0.0
      %2726 = vmatpush1.msra.mxu0 0.0
      %2727 = vmatprep.subr.mxu0 0.0
      %2728 = vmatpush1.msra.mxu0 0.0
      %2729 = vmatprep.subr.mxu0 0.0
      %2730 = vmatpush1.msra.mxu0 0.0
      %2731 = vmatprep.subr.mxu0 0.0
      %2732 = vmatpush1.msra.mxu0 0.0
      %2733 = vmatprep.subr.mxu0 0.0
      %2734 = vmatpush1.msra.mxu0 0.0
      %2735 = vmatprep.subr.mxu0 0.0
      %2736 = vmatpush1.msra.mxu0 0.0
      %2737 = vmatprep.subr.mxu0 0.0
      %2738 = vmatpush1.msra.mxu0 0.0
      %2739 = vmatprep.subr.mxu0 0.0
      %2740 = vmatpush1.msra.mxu0 0.0
      %2741 = vmatprep.subr.mxu0 0.0
      %2742 = vmatpush1.msra.mxu0 0.0
      %2743 = vmatprep.subr.mxu0 0.0
      %2744 = vmatpush1.msra.mxu0 0.0
      %2745 = vmatprep.subr.mxu0 0.0
      %2746 = vmatpush1.msra.mxu0 0.0
      %2747 = vmatprep.subr.mxu0 0.0
      %2748 = vmatpush1.msra.mxu0 0.0
      %2749 = vmatprep.subr.mxu0 0.0
      %2750 = vmatpush1.msra.mxu0 0.0
      %2751 = vmatprep.subr.mxu0 0.0
      %2752 = vmatpush1.msra.mxu0 0.0
      %2753 = vmatprep.subr.mxu0 0.0
      %2754 = vmatpush1.msra.mxu0 0.0
      %2755 = vmatprep.mubr.f32.mxu0 0.0
      %2756 = vmatmul.mubr.f32.gmra.mrb[0].mxu0 %v2593
      %v2757 = vpop.f32.mrb[0].mxu0
      %v2758 = vadd.f32 0.0, %v2757
      %v2759 = vpop.f32.mrb[0].mxu0
      %2760 = vmatprep.mubr.f32.mxu0 0.0
      %2761 = vmatmul.mubr.f32.gmra.mrb[0].mxu0 %v2596
      %v2762 = vpop.f32.mrb[0].mxu0
      %v2763 = vadd.f32 0.0, %v2762
      %v2764 = vpop.f32.mrb[0].mxu0
      %2765 = vmatprep.mubr.f32.mxu0 0.0
      %2766 = vmatmul.mubr.f32.gmra.mrb[0].mxu0 %v2599
      %v2767 = vpop.f32.mrb[0].mxu0
      %v2768 = vadd.f32 0.0, %v2767
      %v2769 = vpop.f32.mrb[0].mxu0
      %2770 = vmatprep.mubr.f32.mxu0 0.0
      %2771 = vmatmul.mubr.f32.gmra.mrb[0].mxu0 %v2602
      %v2772 = vpop.f32.mrb[0].mxu0
      %v2773 = vadd.f32 0.0, %v2772
      %v2774 = vpop.f32.mrb[0].mxu0
      %2775 = vmatprep.mubr.f32.mxu0 0.0
      %2776 = vmatmul.mubr.f32.gmra.mrb[0].mxu0 %v2605
      %v2777 = vpop.f32.mrb[0].mxu0
      %v2778 = vadd.f32 0.0, %v2777
      %v2779 = vpop.f32.mrb[0].mxu0
      %2780 = vmatprep.mubr.f32.mxu0 0.0
      %2781 = vmatmul.mubr.f32.gmra.mrb[0].mxu0 %v2608
      %v2782 = vpop.f32.mrb[0].mxu0
      %v2783 = vadd.f32 0.0, %v2782
      %v2784 = vpop.f32.mrb[0].mxu0
      %2785 = vmatprep.mubr.f32.mxu0 0.0
      %2786 = vmatmul.mubr.f32.gmra.mrb[0].mxu0 %v2611
      %v2787 = vpop.f32.mrb[0].mxu0
      %v2788 = vadd.f32 0.0, %v2787
      %v2789 = vpop.f32.mrb[0].mxu0
      %2790 = vmatprep.mubr.f32.mxu0 0.0
      %2791 = vmatmul.mubr.f32.gmra.mrb[0].mxu0 %v2614
      %v2792 = vpop.f32.mrb[0].mxu0
      %v2793 = vadd.f32 0.0, %v2792
      %v2794 = vpop.f32.mrb[0].mxu0
      %2795 = vmatprep.mubr.f32.mxu0 0.0
      %2796 = vmatmul.mubr.f32.gmra.mrb[0].mxu0 %v2617
      %v2797 = vpop.f32.mrb[0].mxu0
      %v2798 = vadd.f32 0.0, %v2797
      %v2799 = vpop.f32.mrb[0].mxu0
      %2800 = vmatprep.mubr.f32.mxu0 0.0
      %2801 = vmatmul.mubr.f32.gmra.mrb[0].mxu0 %v2620
      %v2802 = vpop.f32.mrb[0].mxu0
      %v2803 = vadd.f32 0.0, %v2802
      %v2804 = vpop.f32.mrb[0].mxu0
      %2805 = vmatprep.mubr.f32.mxu0 0.0
      %2806 = vmatmul.mubr.f32.gmra.mrb[0].mxu0 %v2623
      %v2807 = vpop.f32.mrb[0].mxu0
      %v2808 = vadd.f32 0.0, %v2807
      %v2809 = vpop.f32.mrb[0].mxu0
      %2810 = vmatprep.mubr.f32.mxu0 0.0
      %2811 = vmatmul.mubr.f32.gmra.mrb[0].mxu0 %v2626
      %v2812 = vpop.f32.mrb[0].mxu0
      %v2813 = vadd.f32 0.0, %v2812
      %v2814 = vpop.f32.mrb[0].mxu0
      %2815 = vmatprep.mubr.f32.mxu0 0.0
      %2816 = vmatmul.mubr.f32.gmra.mrb[0].mxu0 %v2629
      %v2817 = vpop.f32.mrb[0].mxu0
      %v2818 = vadd.f32 0.0, %v2817
      %v2819 = vpop.f32.mrb[0].mxu0
      %2820 = vmatprep.mubr.f32.mxu0 0.0
      %2821 = vmatmul.mubr.f32.gmra.mrb[0].mxu0 %v2632
      %v2822 = vpop.f32.mrb[0].mxu0
      %v2823 = vadd.f32 0.0, %v2822
      %v2824 = vpop.f32.mrb[0].mxu0
      %2825 = vmatprep.mubr.f32.mxu0 0.0
      %2826 = vmatmul.mubr.f32.gmra.mrb[0].mxu0 %v2635
      %v2827 = vpop.f32.mrb[0].mxu0
      %v2828 = vadd.f32 0.0, %v2827
      %v2829 = vpop.f32.mrb[0].mxu0
      %2830 = vmatprep.mubr.f32.mxu0 0.0
      %2831 = vmatmul.mubr.f32.gmra.mrb[0].mxu0 %v2638
      %v2832 = vpop.f32.mrb[0].mxu0
      %v2833 = vadd.f32 0.0, %v2832
      %v2834 = vpop.f32.mrb[0].mxu0
      %2835 = vmatprep.mubr.f32.mxu0 0.0
      %2836 = vmatmul.mubr.f32.gmra.mrb[0].mxu0 %v2641
      %v2837 = vpop.f32.mrb[0].mxu0
      %v2838 = vadd.f32 0.0, %v2837
      %v2839 = vpop.f32.mrb[0].mxu0
      %2840 = vmatprep.mubr.f32.mxu0 0.0
      %2841 = vmatmul.mubr.f32.gmra.mrb[0].mxu0 %v2644
      %v2842 = vpop.f32.mrb[0].mxu0
      %v2843 = vadd.f32 0.0, %v2842
      %v2844 = vpop.f32.mrb[0].mxu0
      %2845 = vmatprep.mubr.f32.mxu0 0.0
      %2846 = vmatmul.mubr.f32.gmra.mrb[0].mxu0 %v2647
      %v2847 = vpop.f32.mrb[0].mxu0
      %v2848 = vadd.f32 0.0, %v2847
      %v2849 = vpop.f32.mrb[0].mxu0
      %2850 = vmatprep.mubr.f32.mxu0 0.0
      %2851 = vmatmul.mubr.f32.gmra.mrb[0].mxu0 %v2650
      %v2852 = vpop.f32.mrb[0].mxu0
      %v2853 = vadd.f32 0.0, %v2852
      %v2854 = vpop.f32.mrb[0].mxu0
      %2855 = vmatprep.mubr.f32.mxu0 0.0
      %2856 = vmatmul.mubr.f32.gmra.mrb[0].mxu0 %v2653
      %v2857 = vpop.f32.mrb[0].mxu0
      %v2858 = vadd.f32 0.0, %v2857
      %v2859 = vpop.f32.mrb[0].mxu0
      %2860 = vmatprep.mubr.f32.mxu0 0.0
      %2861 = vmatmul.mubr.f32.gmra.mrb[0].mxu0 %v2656
      %v2862 = vpop.f32.mrb[0].mxu0
      %v2863 = vadd.f32 0.0, %v2862
      %v2864 = vpop.f32.mrb[0].mxu0
      %2865 = vmatprep.mubr.f32.mxu0 0.0
      %2866 = vmatmul.mubr.f32.gmra.mrb[0].mxu0 %v2659
      %v2867 = vpop.f32.mrb[0].mxu0
      %v2868 = vadd.f32 0.0, %v2867
      %v2869 = vpop.f32.mrb[0].mxu0
      %2870 = vmatprep.mubr.f32.mxu0 0.0
      %2871 = vmatmul.mubr.f32.gmra.mrb[0].mxu0 %v2662
      %v2872 = vpop.f32.mrb[0].mxu0
      %v2873 = vadd.f32 0.0, %v2872
      %v2874 = vpop.f32.mrb[0].mxu0
      %2875 = vmatprep.mubr.f32.mxu0 0.0
      %2876 = vmatmul.mubr.f32.gmra.mrb[0].mxu0 %v2665
      %v2877 = vpop.f32.mrb[0].mxu0
      %v2878 = vadd.f32 0.0, %v2877
      %v2879 = vpop.f32.mrb[0].mxu0
      %2880 = vmatprep.mubr.f32.mxu0 0.0
      %2881 = vmatmul.mubr.f32.gmra.mrb[0].mxu0 %v2668
      %v2882 = vpop.f32.mrb[0].mxu0
      %v2883 = vadd.f32 0.0, %v2882
      %v2884 = vpop.f32.mrb[0].mxu0
      %2885 = vmatprep.mubr.f32.mxu0 0.0
      %2886 = vmatmul.mubr.f32.gmra.mrb[0].mxu0 %v2671
      %v2887 = vpop.f32.mrb[0].mxu0
      %v2888 = vadd.f32 0.0, %v2887
      %v2889 = vpop.f32.mrb[0].mxu0
      %2890 = vmatprep.mubr.f32.mxu0 0.0
      %2891 = vmatmul.mubr.f32.gmra.mrb[0].mxu0 %v2674
      %v2892 = vpop.f32.mrb[0].mxu0
      %v2893 = vadd.f32 0.0, %v2892
      %v2894 = vpop.f32.mrb[0].mxu0
      %2895 = vmatprep.mubr.f32.mxu0 0.0
      %2896 = vmatmul.mubr.f32.gmra.mrb[0].mxu0 %v2677
      %v2897 = vpop.f32.mrb[0].mxu0
      %v2898 = vadd.f32 0.0, %v2897
      %v2899 = vpop.f32.mrb[0].mxu0
      %2900 = vmatprep.mubr.f32.mxu0 0.0
      %2901 = vmatmul.mubr.f32.gmra.mrb[0].mxu0 %v2680
      %v2902 = vpop.f32.mrb[0].mxu0
      %v2903 = vadd.f32 0.0, %v2902
      %v2904 = vpop.f32.mrb[0].mxu0
      %2905 = vmatprep.mubr.f32.mxu0 0.0
      %2906 = vmatmul.mubr.f32.gmra.mrb[0].mxu0 %v2683
      %v2907 = vpop.f32.mrb[0].mxu0
      %v2908 = vadd.f32 0.0, %v2907
      %v2909 = vpop.f32.mrb[0].mxu0
      %2910 = vmatprep.mubr.f32.mxu0 0.0
      %2911 = vmatmul.mubr.f32.gmra.mrb[0].mxu0 %v2686
      %v2912 = vpop.f32.mrb[0].mxu0
      %v2913 = vadd.f32 0.0, %v2912
      %v2914 = vpop.f32.mrb[0].mxu0
      %2915 = vdwg.mxu0
      %v2916 = vadd.f32 %v2525, %v2758
      %v2917 = vadd.f32 %v2526, %v2763
      %v2918 = vadd.f32 %v2527, %v2768
      %v2919 = vadd.f32 %v2528, %v2773
      %v2920 = vadd.f32 %v2529, %v2778
      %v2921 = vadd.f32 %v2530, %v2783
      %v2922 = vadd.f32 %v2531, %v2788
      %v2923 = vadd.f32 %v2532, %v2793
      %v2924 = vadd.f32 %v2533, %v2798
      %v2925 = vadd.f32 %v2534, %v2803
      %v2926 = vadd.f32 %v2535, %v2808
      %v2927 = vadd.f32 %v2536, %v2813
      %v2928 = vadd.f32 %v2537, %v2818
      %v2929 = vadd.f32 %v2538, %v2823
      %v2930 = vadd.f32 %v2539, %v2828
      %v2931 = vadd.f32 %v2540, %v2833
      %v2932 = vadd.f32 %v2541, %v2838
      %v2933 = vadd.f32 %v2542, %v2843
      %v2934 = vadd.f32 %v2543, %v2848
      %v2935 = vadd.f32 %v2544, %v2853
      %v2936 = vadd.f32 %v2545, %v2858
      %v2937 = vadd.f32 %v2546, %v2863
      %v2938 = vadd.f32 %v2547, %v2868
      %v2939 = vadd.f32 %v2548, %v2873
      %v2940 = vadd.f32 %v2549, %v2878
      %v2941 = vadd.f32 %v2550, %v2883
      %v2942 = vadd.f32 %v2551, %v2888
      %v2943 = vadd.f32 %v2552, %v2893
      %v2944 = vadd.f32 %v2553, %v2898
      %v2945 = vadd.f32 %v2554, %v2903
      %v2946 = vadd.f32 %v2555, %v2908
      %v2947 = vadd.f32 %v2556, %v2913
      %v2948 = vld [vmem:[%s2557 + $0x1] sm:$0xff]
      %v2949 = vld [vmem:[%s2557 + $0x9] sm:$0xff]
      %v2950 = vld [vmem:[%s2557 + $0x19] sm:$0xff]
      %v2951 = vld [vmem:[%s2557 + $0x21] sm:$0xff]
      %v2952 = vld [vmem:[%s2557 + $0x31] sm:$0xff]
      %v2953 = vld [vmem:[%s2557 + $0x39] sm:$0xff]
      %v2954 = vld [vmem:[%s2557 + $0x49] sm:$0xff]
      %v2955 = vld [vmem:[%s2557 + $0x51] sm:$0xff]
      %v2956 = vld [vmem:[%s2557 + $0x61] sm:$0xff]
      %v2957 = vld [vmem:[%s2557 + $0x69] sm:$0xff]
      %v2958 = vld [vmem:[%s2557 + $0x79] sm:$0xff]
      %v2959 = vld [vmem:[%s2557 + $0x81] sm:$0xff]
      %v2960 = vld [vmem:[%s2557 + $0x91] sm:$0xff]
      %v2961 = vld [vmem:[%s2557 + $0x99] sm:$0xff]
      %v2962 = vld [vmem:[%s2557 + $0xa9] sm:$0xff]
      %v2963 = vld [vmem:[%s2557 + $0xb1] sm:$0xff]
      %v2964 = vld [vmem:[%s2557 + $0xc1] sm:$0xff]
      %v2965 = vld [vmem:[%s2557 + $0xc9] sm:$0xff]
      %v2966 = vld [vmem:[%s2557 + $0xd9] sm:$0xff]
      %v2967 = vld [vmem:[%s2557 + $0xe1] sm:$0xff]
      %v2968 = vld [vmem:[%s2557 + $0xf1] sm:$0xff]
      %v2969 = vld [vmem:[%s2557 + $0xf9] sm:$0xff]
      %v2970 = vld [vmem:[%s2557 + $0x109] sm:$0xff]
      %v2971 = vld [vmem:[%s2557 + $0x111] sm:$0xff]
      %v2972 = vld [vmem:[%s2557 + $0x121] sm:$0xff]
      %v2973 = vld [vmem:[%s2557 + $0x129] sm:$0xff]
      %v2974 = vld [vmem:[%s2557 + $0x139] sm:$0xff]
      %v2975 = vld [vmem:[%s2557 + $0x141] sm:$0xff]
      %v2976 = vld [vmem:[%s2557 + $0x151] sm:$0xff]
      %v2977 = vld [vmem:[%s2557 + $0x159] sm:$0xff]
      %v2978 = vld [vmem:[%s2557 + $0x169] sm:$0xff]
      %v2979 = vld [vmem:[%s2557 + $0x171] sm:$0xff]
      %s2980 = scalar_lea.vmem %s1, 28
      %v2981 = vld [vmem:[%s2980] sm:$0xf]
      %v2983 = vsel %vm346, %v2948, 0
      %v2986 = vsel %vm346, %v2949, 0
      %v2989 = vsel %vm346, %v2950, 0
      %v2992 = vsel %vm346, %v2951, 0
      %v2995 = vsel %vm346, %v2952, 0
      %v2998 = vsel %vm346, %v2953, 0
      %v3001 = vsel %vm346, %v2954, 0
      %v3004 = vsel %vm346, %v2955, 0
      %v3007 = vsel %vm346, %v2956, 0
      %v3010 = vsel %vm346, %v2957, 0
      %v3013 = vsel %vm346, %v2958, 0
      %v3016 = vsel %vm346, %v2959, 0
      %v3019 = vsel %vm346, %v2960, 0
      %v3022 = vsel %vm346, %v2961, 0
      %v3025 = vsel %vm346, %v2962, 0
      %v3028 = vsel %vm346, %v2963, 0
      %v3031 = vsel %vm346, %v2964, 0
      %v3034 = vsel %vm346, %v2965, 0
      %v3037 = vsel %vm346, %v2966, 0
      %v3040 = vsel %vm346, %v2967, 0
      %v3043 = vsel %vm346, %v2968, 0
      %v3046 = vsel %vm346, %v2969, 0
      %v3049 = vsel %vm346, %v2970, 0
      %v3052 = vsel %vm346, %v2971, 0
      %v3055 = vsel %vm346, %v2972, 0
      %v3058 = vsel %vm346, %v2973, 0
      %v3061 = vsel %vm346, %v2974, 0
      %v3064 = vsel %vm346, %v2975, 0
      %v3067 = vsel %vm346, %v2976, 0
      %v3070 = vsel %vm346, %v2977, 0
      %v3073 = vsel %vm346, %v2978, 0
      %v3076 = vsel %vm346, %v2979, 0
      %v3079 = vsel %vm443, %v2981, 0
      %3081 = vmatprep.subr.mxu0 0.0
      %3082 = vmatpush1.msra.mxu0 %v3079
      %3083 = vmatprep.subr.mxu0 0.0
      %3084 = vmatpush1.msra.mxu0 0.0
      %3085 = vmatprep.subr.mxu0 0.0
      %3086 = vmatpush1.msra.mxu0 0.0
      %3087 = vmatprep.subr.mxu0 0.0
      %3088 = vmatpush1.msra.mxu0 0.0
      %3089 = vmatprep.subr.mxu0 0.0
      %3090 = vmatpush1.msra.mxu0 0.0
      %3091 = vmatprep.subr.mxu0 0.0
      %3092 = vmatpush1.msra.mxu0 0.0
      %3093 = vmatprep.subr.mxu0 0.0
      %3094 = vmatpush1.msra.mxu0 0.0
      %3095 = vmatprep.subr.mxu0 0.0
      %3096 = vmatpush1.msra.mxu0 0.0
      %3097 = vmatprep.subr.mxu0 0.0
      %3098 = vmatpush1.msra.mxu0 0.0
      %3099 = vmatprep.subr.mxu0 0.0
      %3100 = vmatpush1.msra.mxu0 0.0
      %3101 = vmatprep.subr.mxu0 0.0
      %3102 = vmatpush1.msra.mxu0 0.0
      %3103 = vmatprep.subr.mxu0 0.0
      %3104 = vmatpush1.msra.mxu0 0.0
      %3105 = vmatprep.subr.mxu0 0.0
      %3106 = vmatpush1.msra.mxu0 0.0
      %3107 = vmatprep.subr.mxu0 0.0
      %3108 = vmatpush1.msra.mxu0 0.0
      %3109 = vmatprep.subr.mxu0 0.0
      %3110 = vmatpush1.msra.mxu0 0.0
      %3111 = vmatprep.subr.mxu0 0.0
      %3112 = vmatpush1.msra.mxu0 0.0
      %3113 = vmatprep.subr.mxu0 0.0
      %3114 = vmatpush1.msra.mxu0 0.0
      %3115 = vmatprep.subr.mxu0 0.0
      %3116 = vmatpush1.msra.mxu0 0.0
      %3117 = vmatprep.subr.mxu0 0.0
      %3118 = vmatpush1.msra.mxu0 0.0
      %3119 = vmatprep.subr.mxu0 0.0
      %3120 = vmatpush1.msra.mxu0 0.0
      %3121 = vmatprep.subr.mxu0 0.0
      %3122 = vmatpush1.msra.mxu0 0.0
      %3123 = vmatprep.subr.mxu0 0.0
      %3124 = vmatpush1.msra.mxu0 0.0
      %3125 = vmatprep.subr.mxu0 0.0
      %3126 = vmatpush1.msra.mxu0 0.0
      %3127 = vmatprep.subr.mxu0 0.0
      %3128 = vmatpush1.msra.mxu0 0.0
      %3129 = vmatprep.subr.mxu0 0.0
      %3130 = vmatpush1.msra.mxu0 0.0
      %3131 = vmatprep.subr.mxu0 0.0
      %3132 = vmatpush1.msra.mxu0 0.0
      %3133 = vmatprep.subr.mxu0 0.0
      %3134 = vmatpush1.msra.mxu0 0.0
      %3135 = vmatprep.subr.mxu0 0.0
      %3136 = vmatpush1.msra.mxu0 0.0
      %3137 = vmatprep.subr.mxu0 0.0
      %3138 = vmatpush1.msra.mxu0 0.0
      %3139 = vmatprep.subr.mxu0 0.0
      %3140 = vmatpush1.msra.mxu0 0.0
      %3141 = vmatprep.subr.mxu0 0.0
      %3142 = vmatpush1.msra.mxu0 0.0
      %3143 = vmatprep.subr.mxu0 0.0
      %3144 = vmatpush1.msra.mxu0 0.0
      %3145 = vmatprep.mubr.f32.mxu0 0.0
      %3146 = vmatmul.mubr.f32.gmra.mrb[0].mxu0 %v2983
      %v3147 = vpop.f32.mrb[0].mxu0
      %v3148 = vadd.f32 0.0, %v3147
      %v3149 = vpop.f32.mrb[0].mxu0
      %3150 = vmatprep.mubr.f32.mxu0 0.0
      %3151 = vmatmul.mubr.f32.gmra.mrb[0].mxu0 %v2986
      %v3152 = vpop.f32.mrb[0].mxu0
      %v3153 = vadd.f32 0.0, %v3152
      %v3154 = vpop.f32.mrb[0].mxu0
      %3155 = vmatprep.mubr.f32.mxu0 0.0
      %3156 = vmatmul.mubr.f32.gmra.mrb[0].mxu0 %v2989
      %v3157 = vpop.f32.mrb[0].mxu0
      %v3158 = vadd.f32 0.0, %v3157
      %v3159 = vpop.f32.mrb[0].mxu0
      %3160 = vmatprep.mubr.f32.mxu0 0.0
      %3161 = vmatmul.mubr.f32.gmra.mrb[0].mxu0 %v2992
      %v3162 = vpop.f32.mrb[0].mxu0
      %v3163 = vadd.f32 0.0, %v3162
      %v3164 = vpop.f32.mrb[0].mxu0
      %3165 = vmatprep.mubr.f32.mxu0 0.0
      %3166 = vmatmul.mubr.f32.gmra.mrb[0].mxu0 %v2995
      %v3167 = vpop.f32.mrb[0].mxu0
      %v3168 = vadd.f32 0.0, %v3167
      %v3169 = vpop.f32.mrb[0].mxu0
      %3170 = vmatprep.mubr.f32.mxu0 0.0
      %3171 = vmatmul.mubr.f32.gmra.mrb[0].mxu0 %v2998
      %v3172 = vpop.f32.mrb[0].mxu0
      %v3173 = vadd.f32 0.0, %v3172
      %v3174 = vpop.f32.mrb[0].mxu0
      %3175 = vmatprep.mubr.f32.mxu0 0.0
      %3176 = vmatmul.mubr.f32.gmra.mrb[0].mxu0 %v3001
      %v3177 = vpop.f32.mrb[0].mxu0
      %v3178 = vadd.f32 0.0, %v3177
      %v3179 = vpop.f32.mrb[0].mxu0
      %3180 = vmatprep.mubr.f32.mxu0 0.0
      %3181 = vmatmul.mubr.f32.gmra.mrb[0].mxu0 %v3004
      %v3182 = vpop.f32.mrb[0].mxu0
      %v3183 = vadd.f32 0.0, %v3182
      %v3184 = vpop.f32.mrb[0].mxu0
      %3185 = vmatprep.mubr.f32.mxu0 0.0
      %3186 = vmatmul.mubr.f32.gmra.mrb[0].mxu0 %v3007
      %v3187 = vpop.f32.mrb[0].mxu0
      %v3188 = vadd.f32 0.0, %v3187
      %v3189 = vpop.f32.mrb[0].mxu0
      %3190 = vmatprep.mubr.f32.mxu0 0.0
      %3191 = vmatmul.mubr.f32.gmra.mrb[0].mxu0 %v3010
      %v3192 = vpop.f32.mrb[0].mxu0
      %v3193 = vadd.f32 0.0, %v3192
      %v3194 = vpop.f32.mrb[0].mxu0
      %3195 = vmatprep.mubr.f32.mxu0 0.0
      %3196 = vmatmul.mubr.f32.gmra.mrb[0].mxu0 %v3013
      %v3197 = vpop.f32.mrb[0].mxu0
      %v3198 = vadd.f32 0.0, %v3197
      %v3199 = vpop.f32.mrb[0].mxu0
      %3200 = vmatprep.mubr.f32.mxu0 0.0
      %3201 = vmatmul.mubr.f32.gmra.mrb[0].mxu0 %v3016
      %v3202 = vpop.f32.mrb[0].mxu0
      %v3203 = vadd.f32 0.0, %v3202
      %v3204 = vpop.f32.mrb[0].mxu0
      %3205 = vmatprep.mubr.f32.mxu0 0.0
      %3206 = vmatmul.mubr.f32.gmra.mrb[0].mxu0 %v3019
      %v3207 = vpop.f32.mrb[0].mxu0
      %v3208 = vadd.f32 0.0, %v3207
      %v3209 = vpop.f32.mrb[0].mxu0
      %3210 = vmatprep.mubr.f32.mxu0 0.0
      %3211 = vmatmul.mubr.f32.gmra.mrb[0].mxu0 %v3022
      %v3212 = vpop.f32.mrb[0].mxu0
      %v3213 = vadd.f32 0.0, %v3212
      %v3214 = vpop.f32.mrb[0].mxu0
      %3215 = vmatprep.mubr.f32.mxu0 0.0
      %3216 = vmatmul.mubr.f32.gmra.mrb[0].mxu0 %v3025
      %v3217 = vpop.f32.mrb[0].mxu0
      %v3218 = vadd.f32 0.0, %v3217
      %v3219 = vpop.f32.mrb[0].mxu0
      %3220 = vmatprep.mubr.f32.mxu0 0.0
      %3221 = vmatmul.mubr.f32.gmra.mrb[0].mxu0 %v3028
      %v3222 = vpop.f32.mrb[0].mxu0
      %v3223 = vadd.f32 0.0, %v3222
      %v3224 = vpop.f32.mrb[0].mxu0
      %3225 = vmatprep.mubr.f32.mxu0 0.0
      %3226 = vmatmul.mubr.f32.gmra.mrb[0].mxu0 %v3031
      %v3227 = vpop.f32.mrb[0].mxu0
      %v3228 = vadd.f32 0.0, %v3227
      %v3229 = vpop.f32.mrb[0].mxu0
      %3230 = vmatprep.mubr.f32.mxu0 0.0
      %3231 = vmatmul.mubr.f32.gmra.mrb[0].mxu0 %v3034
      %v3232 = vpop.f32.mrb[0].mxu0
      %v3233 = vadd.f32 0.0, %v3232
      %v3234 = vpop.f32.mrb[0].mxu0
      %3235 = vmatprep.mubr.f32.mxu0 0.0
      %3236 = vmatmul.mubr.f32.gmra.mrb[0].mxu0 %v3037
      %v3237 = vpop.f32.mrb[0].mxu0
      %v3238 = vadd.f32 0.0, %v3237
      %v3239 = vpop.f32.mrb[0].mxu0
      %3240 = vmatprep.mubr.f32.mxu0 0.0
      %3241 = vmatmul.mubr.f32.gmra.mrb[0].mxu0 %v3040
      %v3242 = vpop.f32.mrb[0].mxu0
      %v3243 = vadd.f32 0.0, %v3242
      %v3244 = vpop.f32.mrb[0].mxu0
      %3245 = vmatprep.mubr.f32.mxu0 0.0
      %3246 = vmatmul.mubr.f32.gmra.mrb[0].mxu0 %v3043
      %v3247 = vpop.f32.mrb[0].mxu0
      %v3248 = vadd.f32 0.0, %v3247
      %v3249 = vpop.f32.mrb[0].mxu0
      %3250 = vmatprep.mubr.f32.mxu0 0.0
      %3251 = vmatmul.mubr.f32.gmra.mrb[0].mxu0 %v3046
      %v3252 = vpop.f32.mrb[0].mxu0
      %v3253 = vadd.f32 0.0, %v3252
      %v3254 = vpop.f32.mrb[0].mxu0
      %3255 = vmatprep.mubr.f32.mxu0 0.0
      %3256 = vmatmul.mubr.f32.gmra.mrb[0].mxu0 %v3049
      %v3257 = vpop.f32.mrb[0].mxu0
      %v3258 = vadd.f32 0.0, %v3257
      %v3259 = vpop.f32.mrb[0].mxu0
      %3260 = vmatprep.mubr.f32.mxu0 0.0
      %3261 = vmatmul.mubr.f32.gmra.mrb[0].mxu0 %v3052
      %v3262 = vpop.f32.mrb[0].mxu0
      %v3263 = vadd.f32 0.0, %v3262
      %v3264 = vpop.f32.mrb[0].mxu0
      %3265 = vmatprep.mubr.f32.mxu0 0.0
      %3266 = vmatmul.mubr.f32.gmra.mrb[0].mxu0 %v3055
      %v3267 = vpop.f32.mrb[0].mxu0
      %v3268 = vadd.f32 0.0, %v3267
      %v3269 = vpop.f32.mrb[0].mxu0
      %3270 = vmatprep.mubr.f32.mxu0 0.0
      %3271 = vmatmul.mubr.f32.gmra.mrb[0].mxu0 %v3058
      %v3272 = vpop.f32.mrb[0].mxu0
      %v3273 = vadd.f32 0.0, %v3272
      %v3274 = vpop.f32.mrb[0].mxu0
      %3275 = vmatprep.mubr.f32.mxu0 0.0
      %3276 = vmatmul.mubr.f32.gmra.mrb[0].mxu0 %v3061
      %v3277 = vpop.f32.mrb[0].mxu0
      %v3278 = vadd.f32 0.0, %v3277
      %v3279 = vpop.f32.mrb[0].mxu0
      %3280 = vmatprep.mubr.f32.mxu0 0.0
      %3281 = vmatmul.mubr.f32.gmra.mrb[0].mxu0 %v3064
      %v3282 = vpop.f32.mrb[0].mxu0
      %v3283 = vadd.f32 0.0, %v3282
      %v3284 = vpop.f32.mrb[0].mxu0
      %3285 = vmatprep.mubr.f32.mxu0 0.0
      %3286 = vmatmul.mubr.f32.gmra.mrb[0].mxu0 %v3067
      %v3287 = vpop.f32.mrb[0].mxu0
      %v3288 = vadd.f32 0.0, %v3287
      %v3289 = vpop.f32.mrb[0].mxu0
      %3290 = vmatprep.mubr.f32.mxu0 0.0
      %3291 = vmatmul.mubr.f32.gmra.mrb[0].mxu0 %v3070
      %v3292 = vpop.f32.mrb[0].mxu0
      %v3293 = vadd.f32 0.0, %v3292
      %v3294 = vpop.f32.mrb[0].mxu0
      %3295 = vmatprep.mubr.f32.mxu0 0.0
      %3296 = vmatmul.mubr.f32.gmra.mrb[0].mxu0 %v3073
      %v3297 = vpop.f32.mrb[0].mxu0
      %v3298 = vadd.f32 0.0, %v3297
      %v3299 = vpop.f32.mrb[0].mxu0
      %3300 = vmatprep.mubr.f32.mxu0 0.0
      %3301 = vmatmul.mubr.f32.gmra.mrb[0].mxu0 %v3076
      %v3302 = vpop.f32.mrb[0].mxu0
      %v3303 = vadd.f32 0.0, %v3302
      %v3304 = vpop.f32.mrb[0].mxu0
      %3305 = vdwg.mxu0
      %v3306 = vadd.f32 %v2916, %v3148
      %v3307 = vadd.f32 %v2917, %v3153
      %v3308 = vadd.f32 %v2918, %v3158
      %v3309 = vadd.f32 %v2919, %v3163
      %v3310 = vadd.f32 %v2920, %v3168
      %v3311 = vadd.f32 %v2921, %v3173
      %v3312 = vadd.f32 %v2922, %v3178
      %v3313 = vadd.f32 %v2923, %v3183
      %v3314 = vadd.f32 %v2924, %v3188
      %v3315 = vadd.f32 %v2925, %v3193
      %v3316 = vadd.f32 %v2926, %v3198
      %v3317 = vadd.f32 %v2927, %v3203
      %v3318 = vadd.f32 %v2928, %v3208
      %v3319 = vadd.f32 %v2929, %v3213
      %v3320 = vadd.f32 %v2930, %v3218
      %v3321 = vadd.f32 %v2931, %v3223
      %v3322 = vadd.f32 %v2932, %v3228
      %v3323 = vadd.f32 %v2933, %v3233
      %v3324 = vadd.f32 %v2934, %v3238
      %v3325 = vadd.f32 %v2935, %v3243
      %v3326 = vadd.f32 %v2936, %v3248
      %v3327 = vadd.f32 %v2937, %v3253
      %v3328 = vadd.f32 %v2938, %v3258
      %v3329 = vadd.f32 %v2939, %v3263
      %v3330 = vadd.f32 %v2940, %v3268
      %v3331 = vadd.f32 %v2941, %v3273
      %v3332 = vadd.f32 %v2942, %v3278
      %v3333 = vadd.f32 %v2943, %v3283
      %v3334 = vadd.f32 %v2944, %v3288
      %v3335 = vadd.f32 %v2945, %v3293
      %v3336 = vadd.f32 %v2946, %v3298
      %v3337 = vadd.f32 %v2947, %v3303
      %v3338 = vld [vmem:[%s2557 + $0x2] sm:$0xff]
      %v3339 = vld [vmem:[%s2557 + $0xa] sm:$0xff]
      %v3340 = vld [vmem:[%s2557 + $0x1a] sm:$0xff]
      %v3341 = vld [vmem:[%s2557 + $0x22] sm:$0xff]
      %v3342 = vld [vmem:[%s2557 + $0x32] sm:$0xff]
      %v3343 = vld [vmem:[%s2557 + $0x3a] sm:$0xff]
      %v3344 = vld [vmem:[%s2557 + $0x4a] sm:$0xff]
      %v3345 = vld [vmem:[%s2557 + $0x52] sm:$0xff]
      %v3346 = vld [vmem:[%s2557 + $0x62] sm:$0xff]
      %v3347 = vld [vmem:[%s2557 + $0x6a] sm:$0xff]
      %v3348 = vld [vmem:[%s2557 + $0x7a] sm:$0xff]
      %v3349 = vld [vmem:[%s2557 + $0x82] sm:$0xff]
      %v3350 = vld [vmem:[%s2557 + $0x92] sm:$0xff]
      %v3351 = vld [vmem:[%s2557 + $0x9a] sm:$0xff]
      %v3352 = vld [vmem:[%s2557 + $0xaa] sm:$0xff]
      %v3353 = vld [vmem:[%s2557 + $0xb2] sm:$0xff]
      %v3354 = vld [vmem:[%s2557 + $0xc2] sm:$0xff]
      %v3355 = vld [vmem:[%s2557 + $0xca] sm:$0xff]
      %v3356 = vld [vmem:[%s2557 + $0xda] sm:$0xff]
      %v3357 = vld [vmem:[%s2557 + $0xe2] sm:$0xff]
      %v3358 = vld [vmem:[%s2557 + $0xf2] sm:$0xff]
      %v3359 = vld [vmem:[%s2557 + $0xfa] sm:$0xff]
      %v3360 = vld [vmem:[%s2557 + $0x10a] sm:$0xff]
      %v3361 = vld [vmem:[%s2557 + $0x112] sm:$0xff]
      %v3362 = vld [vmem:[%s2557 + $0x122] sm:$0xff]
      %v3363 = vld [vmem:[%s2557 + $0x12a] sm:$0xff]
      %v3364 = vld [vmem:[%s2557 + $0x13a] sm:$0xff]
      %v3365 = vld [vmem:[%s2557 + $0x142] sm:$0xff]
      %v3366 = vld [vmem:[%s2557 + $0x152] sm:$0xff]
      %v3367 = vld [vmem:[%s2557 + $0x15a] sm:$0xff]
      %v3368 = vld [vmem:[%s2557 + $0x16a] sm:$0xff]
      %v3369 = vld [vmem:[%s2557 + $0x172] sm:$0xff]
      %s3370 = scalar_lea.vmem %s1, 32
      %v3371 = vld [vmem:[%s3370] sm:$0xf]
      %v3373 = vsel %vm346, %v3338, 0
      %v3376 = vsel %vm346, %v3339, 0
      %v3379 = vsel %vm346, %v3340, 0
      %v3382 = vsel %vm346, %v3341, 0
      %v3385 = vsel %vm346, %v3342, 0
      %v3388 = vsel %vm346, %v3343, 0
      %v3391 = vsel %vm346, %v3344, 0
      %v3394 = vsel %vm346, %v3345, 0
      %v3397 = vsel %vm346, %v3346, 0
      %v3400 = vsel %vm346, %v3347, 0
      %v3403 = vsel %vm346, %v3348, 0
      %v3406 = vsel %vm346, %v3349, 0
      %v3409 = vsel %vm346, %v3350, 0
      %v3412 = vsel %vm346, %v3351, 0
      %v3415 = vsel %vm346, %v3352, 0
      %v3418 = vsel %vm346, %v3353, 0
      %v3421 = vsel %vm346, %v3354, 0
      %v3424 = vsel %vm346, %v3355, 0
      %v3427 = vsel %vm346, %v3356, 0
      %v3430 = vsel %vm346, %v3357, 0
      %v3433 = vsel %vm346, %v3358, 0
      %v3436 = vsel %vm346, %v3359, 0
      %v3439 = vsel %vm346, %v3360, 0
      %v3442 = vsel %vm346, %v3361, 0
      %v3445 = vsel %vm346, %v3362, 0
      %v3448 = vsel %vm346, %v3363, 0
      %v3451 = vsel %vm346, %v3364, 0
      %v3454 = vsel %vm346, %v3365, 0
      %v3457 = vsel %vm346, %v3366, 0
      %v3460 = vsel %vm346, %v3367, 0
      %v3463 = vsel %vm346, %v3368, 0
      %v3466 = vsel %vm346, %v3369, 0
      %v3469 = vsel %vm443, %v3371, 0
      %3471 = vmatprep.subr.mxu0 0.0
      %3472 = vmatpush1.msra.mxu0 %v3469
      %3473 = vmatprep.subr.mxu0 0.0
      %3474 = vmatpush1.msra.mxu0 0.0
      %3475 = vmatprep.subr.mxu0 0.0
      %3476 = vmatpush1.msra.mxu0 0.0
      %3477 = vmatprep.subr.mxu0 0.0
      %3478 = vmatpush1.msra.mxu0 0.0
      %3479 = vmatprep.subr.mxu0 0.0
      %3480 = vmatpush1.msra.mxu0 0.0
      %3481 = vmatprep.subr.mxu0 0.0
      %3482 = vmatpush1.msra.mxu0 0.0
      %3483 = vmatprep.subr.mxu0 0.0
      %3484 = vmatpush1.msra.mxu0 0.0
      %3485 = vmatprep.subr.mxu0 0.0
      %3486 = vmatpush1.msra.mxu0 0.0
      %3487 = vmatprep.subr.mxu0 0.0
      %3488 = vmatpush1.msra.mxu0 0.0
      %3489 = vmatprep.subr.mxu0 0.0
      %3490 = vmatpush1.msra.mxu0 0.0
      %3491 = vmatprep.subr.mxu0 0.0
      %3492 = vmatpush1.msra.mxu0 0.0
      %3493 = vmatprep.subr.mxu0 0.0
      %3494 = vmatpush1.msra.mxu0 0.0
      %3495 = vmatprep.subr.mxu0 0.0
      %3496 = vmatpush1.msra.mxu0 0.0
      %3497 = vmatprep.subr.mxu0 0.0
      %3498 = vmatpush1.msra.mxu0 0.0
      %3499 = vmatprep.subr.mxu0 0.0
      %3500 = vmatpush1.msra.mxu0 0.0
      %3501 = vmatprep.subr.mxu0 0.0
      %3502 = vmatpush1.msra.mxu0 0.0
      %3503 = vmatprep.subr.mxu0 0.0
      %3504 = vmatpush1.msra.mxu0 0.0
      %3505 = vmatprep.subr.mxu0 0.0
      %3506 = vmatpush1.msra.mxu0 0.0
      %3507 = vmatprep.subr.mxu0 0.0
      %3508 = vmatpush1.msra.mxu0 0.0
      %3509 = vmatprep.subr.mxu0 0.0
      %3510 = vmatpush1.msra.mxu0 0.0
      %3511 = vmatprep.subr.mxu0 0.0
      %3512 = vmatpush1.msra.mxu0 0.0
      %3513 = vmatprep.subr.mxu0 0.0
      %3514 = vmatpush1.msra.mxu0 0.0
      %3515 = vmatprep.subr.mxu0 0.0
      %3516 = vmatpush1.msra.mxu0 0.0
      %3517 = vmatprep.subr.mxu0 0.0
      %3518 = vmatpush1.msra.mxu0 0.0
      %3519 = vmatprep.subr.mxu0 0.0
      %3520 = vmatpush1.msra.mxu0 0.0
      %3521 = vmatprep.subr.mxu0 0.0
      %3522 = vmatpush1.msra.mxu0 0.0
      %3523 = vmatprep.subr.mxu0 0.0
      %3524 = vmatpush1.msra.mxu0 0.0
      %3525 = vmatprep.subr.mxu0 0.0
      %3526 = vmatpush1.msra.mxu0 0.0
      %3527 = vmatprep.subr.mxu0 0.0
      %3528 = vmatpush1.msra.mxu0 0.0
      %3529 = vmatprep.subr.mxu0 0.0
      %3530 = vmatpush1.msra.mxu0 0.0
      %3531 = vmatprep.subr.mxu0 0.0
      %3532 = vmatpush1.msra.mxu0 0.0
      %3533 = vmatprep.subr.mxu0 0.0
      %3534 = vmatpush1.msra.mxu0 0.0
      %3535 = vmatprep.mubr.f32.mxu0 0.0
      %3536 = vmatmul.mubr.f32.gmra.mrb[0].mxu0 %v3373
      %v3537 = vpop.f32.mrb[0].mxu0
      %v3538 = vadd.f32 0.0, %v3537
      %v3539 = vpop.f32.mrb[0].mxu0
      %3540 = vmatprep.mubr.f32.mxu0 0.0
      %3541 = vmatmul.mubr.f32.gmra.mrb[0].mxu0 %v3376
      %v3542 = vpop.f32.mrb[0].mxu0
      %v3543 = vadd.f32 0.0, %v3542
      %v3544 = vpop.f32.mrb[0].mxu0
      %3545 = vmatprep.mubr.f32.mxu0 0.0
      %3546 = vmatmul.mubr.f32.gmra.mrb[0].mxu0 %v3379
      %v3547 = vpop.f32.mrb[0].mxu0
      %v3548 = vadd.f32 0.0, %v3547
      %v3549 = vpop.f32.mrb[0].mxu0
      %3550 = vmatprep.mubr.f32.mxu0 0.0
      %3551 = vmatmul.mubr.f32.gmra.mrb[0].mxu0 %v3382
      %v3552 = vpop.f32.mrb[0].mxu0
      %v3553 = vadd.f32 0.0, %v3552
      %v3554 = vpop.f32.mrb[0].mxu0
      %3555 = vmatprep.mubr.f32.mxu0 0.0
      %3556 = vmatmul.mubr.f32.gmra.mrb[0].mxu0 %v3385
      %v3557 = vpop.f32.mrb[0].mxu0
      %v3558 = vadd.f32 0.0, %v3557
      %v3559 = vpop.f32.mrb[0].mxu0
      %3560 = vmatprep.mubr.f32.mxu0 0.0
      %3561 = vmatmul.mubr.f32.gmra.mrb[0].mxu0 %v3388
      %v3562 = vpop.f32.mrb[0].mxu0
      %v3563 = vadd.f32 0.0, %v3562
      %v3564 = vpop.f32.mrb[0].mxu0
      %3565 = vmatprep.mubr.f32.mxu0 0.0
      %3566 = vmatmul.mubr.f32.gmra.mrb[0].mxu0 %v3391
      %v3567 = vpop.f32.mrb[0].mxu0
      %v3568 = vadd.f32 0.0, %v3567
      %v3569 = vpop.f32.mrb[0].mxu0
      %3570 = vmatprep.mubr.f32.mxu0 0.0
      %3571 = vmatmul.mubr.f32.gmra.mrb[0].mxu0 %v3394
      %v3572 = vpop.f32.mrb[0].mxu0
      %v3573 = vadd.f32 0.0, %v3572
      %v3574 = vpop.f32.mrb[0].mxu0
      %3575 = vmatprep.mubr.f32.mxu0 0.0
      %3576 = vmatmul.mubr.f32.gmra.mrb[0].mxu0 %v3397
      %v3577 = vpop.f32.mrb[0].mxu0
      %v3578 = vadd.f32 0.0, %v3577
      %v3579 = vpop.f32.mrb[0].mxu0
      %3580 = vmatprep.mubr.f32.mxu0 0.0
      %3581 = vmatmul.mubr.f32.gmra.mrb[0].mxu0 %v3400
      %v3582 = vpop.f32.mrb[0].mxu0
      %v3583 = vadd.f32 0.0, %v3582
      %v3584 = vpop.f32.mrb[0].mxu0
      %3585 = vmatprep.mubr.f32.mxu0 0.0
      %3586 = vmatmul.mubr.f32.gmra.mrb[0].mxu0 %v3403
      %v3587 = vpop.f32.mrb[0].mxu0
      %v3588 = vadd.f32 0.0, %v3587
      %v3589 = vpop.f32.mrb[0].mxu0
      %3590 = vmatprep.mubr.f32.mxu0 0.0
      %3591 = vmatmul.mubr.f32.gmra.mrb[0].mxu0 %v3406
      %v3592 = vpop.f32.mrb[0].mxu0
      %v3593 = vadd.f32 0.0, %v3592
      %v3594 = vpop.f32.mrb[0].mxu0
      %3595 = vmatprep.mubr.f32.mxu0 0.0
      %3596 = vmatmul.mubr.f32.gmra.mrb[0].mxu0 %v3409
      %v3597 = vpop.f32.mrb[0].mxu0
      %v3598 = vadd.f32 0.0, %v3597
      %v3599 = vpop.f32.mrb[0].mxu0
      %3600 = vmatprep.mubr.f32.mxu0 0.0
      %3601 = vmatmul.mubr.f32.gmra.mrb[0].mxu0 %v3412
      %v3602 = vpop.f32.mrb[0].mxu0
      %v3603 = vadd.f32 0.0, %v3602
      %v3604 = vpop.f32.mrb[0].mxu0
      %3605 = vmatprep.mubr.f32.mxu0 0.0
      %3606 = vmatmul.mubr.f32.gmra.mrb[0].mxu0 %v3415
      %v3607 = vpop.f32.mrb[0].mxu0
      %v3608 = vadd.f32 0.0, %v3607
      %v3609 = vpop.f32.mrb[0].mxu0
      %3610 = vmatprep.mubr.f32.mxu0 0.0
      %3611 = vmatmul.mubr.f32.gmra.mrb[0].mxu0 %v3418
      %v3612 = vpop.f32.mrb[0].mxu0
      %v3613 = vadd.f32 0.0, %v3612
      %v3614 = vpop.f32.mrb[0].mxu0
      %3615 = vmatprep.mubr.f32.mxu0 0.0
      %3616 = vmatmul.mubr.f32.gmra.mrb[0].mxu0 %v3421
      %v3617 = vpop.f32.mrb[0].mxu0
      %v3618 = vadd.f32 0.0, %v3617
      %v3619 = vpop.f32.mrb[0].mxu0
      %3620 = vmatprep.mubr.f32.mxu0 0.0
      %3621 = vmatmul.mubr.f32.gmra.mrb[0].mxu0 %v3424
      %v3622 = vpop.f32.mrb[0].mxu0
      %v3623 = vadd.f32 0.0, %v3622
      %v3624 = vpop.f32.mrb[0].mxu0
      %3625 = vmatprep.mubr.f32.mxu0 0.0
      %3626 = vmatmul.mubr.f32.gmra.mrb[0].mxu0 %v3427
      %v3627 = vpop.f32.mrb[0].mxu0
      %v3628 = vadd.f32 0.0, %v3627
      %v3629 = vpop.f32.mrb[0].mxu0
      %3630 = vmatprep.mubr.f32.mxu0 0.0
      %3631 = vmatmul.mubr.f32.gmra.mrb[0].mxu0 %v3430
      %v3632 = vpop.f32.mrb[0].mxu0
      %v3633 = vadd.f32 0.0, %v3632
      %v3634 = vpop.f32.mrb[0].mxu0
      %3635 = vmatprep.mubr.f32.mxu0 0.0
      %3636 = vmatmul.mubr.f32.gmra.mrb[0].mxu0 %v3433
      %v3637 = vpop.f32.mrb[0].mxu0
      %v3638 = vadd.f32 0.0, %v3637
      %v3639 = vpop.f32.mrb[0].mxu0
      %3640 = vmatprep.mubr.f32.mxu0 0.0
      %3641 = vmatmul.mubr.f32.gmra.mrb[0].mxu0 %v3436
      %v3642 = vpop.f32.mrb[0].mxu0
      %v3643 = vadd.f32 0.0, %v3642
      %v3644 = vpop.f32.mrb[0].mxu0
      %3645 = vmatprep.mubr.f32.mxu0 0.0
      %3646 = vmatmul.mubr.f32.gmra.mrb[0].mxu0 %v3439
      %v3647 = vpop.f32.mrb[0].mxu0
      %v3648 = vadd.f32 0.0, %v3647
      %v3649 = vpop.f32.mrb[0].mxu0
      %3650 = vmatprep.mubr.f32.mxu0 0.0
      %3651 = vmatmul.mubr.f32.gmra.mrb[0].mxu0 %v3442
      %v3652 = vpop.f32.mrb[0].mxu0
      %v3653 = vadd.f32 0.0, %v3652
      %v3654 = vpop.f32.mrb[0].mxu0
      %3655 = vmatprep.mubr.f32.mxu0 0.0
      %3656 = vmatmul.mubr.f32.gmra.mrb[0].mxu0 %v3445
      %v3657 = vpop.f32.mrb[0].mxu0
      %v3658 = vadd.f32 0.0, %v3657
      %v3659 = vpop.f32.mrb[0].mxu0
      %3660 = vmatprep.mubr.f32.mxu0 0.0
      %3661 = vmatmul.mubr.f32.gmra.mrb[0].mxu0 %v3448
      %v3662 = vpop.f32.mrb[0].mxu0
      %v3663 = vadd.f32 0.0, %v3662
      %v3664 = vpop.f32.mrb[0].mxu0
      %3665 = vmatprep.mubr.f32.mxu0 0.0
      %3666 = vmatmul.mubr.f32.gmra.mrb[0].mxu0 %v3451
      %v3667 = vpop.f32.mrb[0].mxu0
      %v3668 = vadd.f32 0.0, %v3667
      %v3669 = vpop.f32.mrb[0].mxu0
      %3670 = vmatprep.mubr.f32.mxu0 0.0
      %3671 = vmatmul.mubr.f32.gmra.mrb[0].mxu0 %v3454
      %v3672 = vpop.f32.mrb[0].mxu0
      %v3673 = vadd.f32 0.0, %v3672
      %v3674 = vpop.f32.mrb[0].mxu0
      %3675 = vmatprep.mubr.f32.mxu0 0.0
      %3676 = vmatmul.mubr.f32.gmra.mrb[0].mxu0 %v3457
      %v3677 = vpop.f32.mrb[0].mxu0
      %v3678 = vadd.f32 0.0, %v3677
      %v3679 = vpop.f32.mrb[0].mxu0
      %3680 = vmatprep.mubr.f32.mxu0 0.0
      %3681 = vmatmul.mubr.f32.gmra.mrb[0].mxu0 %v3460
      %v3682 = vpop.f32.mrb[0].mxu0
      %v3683 = vadd.f32 0.0, %v3682
      %v3684 = vpop.f32.mrb[0].mxu0
      %3685 = vmatprep.mubr.f32.mxu0 0.0
      %3686 = vmatmul.mubr.f32.gmra.mrb[0].mxu0 %v3463
      %v3687 = vpop.f32.mrb[0].mxu0
      %v3688 = vadd.f32 0.0, %v3687
      %v3689 = vpop.f32.mrb[0].mxu0
      %3690 = vmatprep.mubr.f32.mxu0 0.0
      %3691 = vmatmul.mubr.f32.gmra.mrb[0].mxu0 %v3466
      %v3692 = vpop.f32.mrb[0].mxu0
      %v3693 = vadd.f32 0.0, %v3692
      %v3694 = vpop.f32.mrb[0].mxu0
      %3695 = vdwg.mxu0
      %v3696 = vadd.f32 %v3306, %v3538
      %v3697 = vadd.f32 %v3307, %v3543
      %v3698 = vadd.f32 %v3308, %v3548
      %v3699 = vadd.f32 %v3309, %v3553
      %v3700 = vadd.f32 %v3310, %v3558
      %v3701 = vadd.f32 %v3311, %v3563
      %v3702 = vadd.f32 %v3312, %v3568
      %v3703 = vadd.f32 %v3313, %v3573
      %v3704 = vadd.f32 %v3314, %v3578
      %v3705 = vadd.f32 %v3315, %v3583
      %v3706 = vadd.f32 %v3316, %v3588
      %v3707 = vadd.f32 %v3317, %v3593
      %v3708 = vadd.f32 %v3318, %v3598
      %v3709 = vadd.f32 %v3319, %v3603
      %v3710 = vadd.f32 %v3320, %v3608
      %v3711 = vadd.f32 %v3321, %v3613
      %v3712 = vadd.f32 %v3322, %v3618
      %v3713 = vadd.f32 %v3323, %v3623
      %v3714 = vadd.f32 %v3324, %v3628
      %v3715 = vadd.f32 %v3325, %v3633
      %v3716 = vadd.f32 %v3326, %v3638
      %v3717 = vadd.f32 %v3327, %v3643
      %v3718 = vadd.f32 %v3328, %v3648
      %v3719 = vadd.f32 %v3329, %v3653
      %v3720 = vadd.f32 %v3330, %v3658
      %v3721 = vadd.f32 %v3331, %v3663
      %v3722 = vadd.f32 %v3332, %v3668
      %v3723 = vadd.f32 %v3333, %v3673
      %v3724 = vadd.f32 %v3334, %v3678
      %v3725 = vadd.f32 %v3335, %v3683
      %v3726 = vadd.f32 %v3336, %v3688
      %v3727 = vadd.f32 %v3337, %v3693
      %v3728 = vld [vmem:[%s3] sm:$0x1]
      %v3730 = vlaneseq
      %v3731 = vshrl.u32 %v3730, 7
      %v3732 = vsub.s32 0, %v3731
      %v3733 = vrot.slane %v3728, %v3732
      %v3735 = vmul.f32 %v3696, %v3733
      %v3736 = vmul.f32 %v3697, %v3733
      %v3737 = vmul.f32 %v3698, %v3733
      %v3738 = vmul.f32 %v3699, %v3733
      %v3739 = vmul.f32 %v3700, %v3733
      %v3740 = vmul.f32 %v3701, %v3733
      %v3741 = vmul.f32 %v3702, %v3733
      %v3742 = vmul.f32 %v3703, %v3733
      %v3743 = vmul.f32 %v3704, %v3733
      %v3744 = vmul.f32 %v3705, %v3733
      %v3745 = vmul.f32 %v3706, %v3733
      %v3746 = vmul.f32 %v3707, %v3733
      %v3747 = vmul.f32 %v3708, %v3733
      %v3748 = vmul.f32 %v3709, %v3733
      %v3749 = vmul.f32 %v3710, %v3733
      %v3750 = vmul.f32 %v3711, %v3733
      %v3751 = vmul.f32 %v3712, %v3733
      %v3752 = vmul.f32 %v3713, %v3733
      %v3753 = vmul.f32 %v3714, %v3733
      %v3754 = vmul.f32 %v3715, %v3733
      %v3755 = vmul.f32 %v3716, %v3733
      %v3756 = vmul.f32 %v3717, %v3733
      %v3757 = vmul.f32 %v3718, %v3733
      %v3758 = vmul.f32 %v3719, %v3733
      %v3759 = vmul.f32 %v3720, %v3733
      %v3760 = vmul.f32 %v3721, %v3733
      %v3761 = vmul.f32 %v3722, %v3733
      %v3762 = vmul.f32 %v3723, %v3733
      %v3763 = vmul.f32 %v3724, %v3733
      %v3764 = vmul.f32 %v3725, %v3733
      %v3765 = vmul.f32 %v3726, %v3733
      %v3766 = vmul.f32 %v3727, %v3733
      %v3767 = vld [vmem:[%s4] sm:$0x1]
      %v3769 = vlaneseq
      %v3770 = vshrl.u32 %v3769, 7
      %v3771 = vsub.s32 0, %v3770
      %v3772 = vrot.slane %v3767, %v3771
      %v3774 = vadd.f32 %v3735, %v3772
      %v3775 = vadd.f32 %v3736, %v3772
      %v3776 = vadd.f32 %v3737, %v3772
      %v3777 = vadd.f32 %v3738, %v3772
      %v3778 = vadd.f32 %v3739, %v3772
      %v3779 = vadd.f32 %v3740, %v3772
      %v3780 = vadd.f32 %v3741, %v3772
      %v3781 = vadd.f32 %v3742, %v3772
      %v3782 = vadd.f32 %v3743, %v3772
      %v3783 = vadd.f32 %v3744, %v3772
      %v3784 = vadd.f32 %v3745, %v3772
      %v3785 = vadd.f32 %v3746, %v3772
      %v3786 = vadd.f32 %v3747, %v3772
      %v3787 = vadd.f32 %v3748, %v3772
      %v3788 = vadd.f32 %v3749, %v3772
      %v3789 = vadd.f32 %v3750, %v3772
      %v3790 = vadd.f32 %v3751, %v3772
      %v3791 = vadd.f32 %v3752, %v3772
      %v3792 = vadd.f32 %v3753, %v3772
      %v3793 = vadd.f32 %v3754, %v3772
      %v3794 = vadd.f32 %v3755, %v3772
      %v3795 = vadd.f32 %v3756, %v3772
      %v3796 = vadd.f32 %v3757, %v3772
      %v3797 = vadd.f32 %v3758, %v3772
      %v3798 = vadd.f32 %v3759, %v3772
      %v3799 = vadd.f32 %v3760, %v3772
      %v3800 = vadd.f32 %v3761, %v3772
      %v3801 = vadd.f32 %v3762, %v3772
      %v3802 = vadd.f32 %v3763, %v3772
      %v3803 = vadd.f32 %v3764, %v3772
      %v3804 = vadd.f32 %v3765, %v3772
      %v3805 = vadd.f32 %v3766, %v3772
      %v3806 = vmax.f32 %v3774, 0.0
      %v3807 = vmax.f32 %v3775, 0.0
      %v3808 = vmax.f32 %v3776, 0.0
      %v3809 = vmax.f32 %v3777, 0.0
      %v3810 = vmax.f32 %v3778, 0.0
      %v3811 = vmax.f32 %v3779, 0.0
      %v3812 = vmax.f32 %v3780, 0.0
      %v3813 = vmax.f32 %v3781, 0.0
      %v3814 = vmax.f32 %v3782, 0.0
      %v3815 = vmax.f32 %v3783, 0.0
      %v3816 = vmax.f32 %v3784, 0.0
      %v3817 = vmax.f32 %v3785, 0.0
      %v3818 = vmax.f32 %v3786, 0.0
      %v3819 = vmax.f32 %v3787, 0.0
      %v3820 = vmax.f32 %v3788, 0.0
      %v3821 = vmax.f32 %v3789, 0.0
      %v3822 = vmax.f32 %v3790, 0.0
      %v3823 = vmax.f32 %v3791, 0.0
      %v3824 = vmax.f32 %v3792, 0.0
      %v3825 = vmax.f32 %v3793, 0.0
      %v3826 = vmax.f32 %v3794, 0.0
      %v3827 = vmax.f32 %v3795, 0.0
      %v3828 = vmax.f32 %v3796, 0.0
      %v3829 = vmax.f32 %v3797, 0.0
      %v3830 = vmax.f32 %v3798, 0.0
      %v3831 = vmax.f32 %v3799, 0.0
      %v3832 = vmax.f32 %v3800, 0.0
      %v3833 = vmax.f32 %v3801, 0.0
      %v3834 = vmax.f32 %v3802, 0.0
      %v3835 = vmax.f32 %v3803, 0.0
      %v3836 = vmax.f32 %v3804, 0.0
      %v3837 = vmax.f32 %v3805, 0.0
      %3838 = vst.msk [vmem:[#allocation2] sm:$0xff] %vm346, 0.0
      %3839 = vst.msk [vmem:[#allocation2 + $0x8] sm:$0xff] %vm346, 0.0
      %vm3840 = vcmask 25600
      %3841 = vst.msk [vmem:[#allocation2 + $0x10] sm:$0x3] %vm3840, 0.0
      %3842 = vst.msk [vmem:[#allocation2 + $0x18] sm:$0xff] %vm346, 0.0
      %3843 = vst.msk [vmem:[#allocation2 + $0x20] sm:$0xff] %vm346, 0.0
      %3844 = vst.msk [vmem:[#allocation2 + $0x28] sm:$0x3] %vm3840, 0.0
      %3845 = vst.msk [vmem:[#allocation2 + $0x30] sm:$0xff] %vm346, 0.0
      %3846 = vst.msk [vmem:[#allocation2 + $0x38] sm:$0xff] %vm346, 0.0
      %3847 = vst.msk [vmem:[#allocation2 + $0x40] sm:$0x3] %vm3840, 0.0
      %3848 = vst.msk [vmem:[#allocation2 + $0x48] sm:$0xff] %vm346, 0.0
      %3849 = vst.msk [vmem:[#allocation2 + $0x50] sm:$0xff] %vm346, 0.0
      %3850 = vst.msk [vmem:[#allocation2 + $0x58] sm:$0x3] %vm3840, 0.0
      %3851 = vst.msk [vmem:[#allocation2 + $0x60] sm:$0xff] %vm346, 0.0
      %3852 = vst.msk [vmem:[#allocation2 + $0x68] sm:$0xff] %vm346, 0.0
      %3853 = vst.msk [vmem:[#allocation2 + $0x70] sm:$0x3] %vm3840, 0.0
      %3854 = vst.msk [vmem:[#allocation2 + $0x78] sm:$0xff] %vm346, 0.0
      %3855 = vst.msk [vmem:[#allocation2 + $0x80] sm:$0xff] %vm346, 0.0
      %3856 = vst.msk [vmem:[#allocation2 + $0x88] sm:$0x3] %vm3840, 0.0
      %3857 = vst.msk [vmem:[#allocation2 + $0x90] sm:$0xff] %vm346, 0.0
      %3858 = vst.msk [vmem:[#allocation2 + $0x98] sm:$0xff] %vm346, 0.0
      %3859 = vst.msk [vmem:[#allocation2 + $0xa0] sm:$0x3] %vm3840, 0.0
      %3860 = vst.msk [vmem:[#allocation2 + $0xa8] sm:$0xff] %vm346, 0.0
      %3861 = vst.msk [vmem:[#allocation2 + $0xb0] sm:$0xff] %vm346, 0.0
      %3862 = vst.msk [vmem:[#allocation2 + $0xb8] sm:$0x3] %vm3840, 0.0
      %3863 = vst.msk [vmem:[#allocation2 + $0xc0] sm:$0xff] %vm346, 0.0
      %3864 = vst.msk [vmem:[#allocation2 + $0xc8] sm:$0xff] %vm346, 0.0
      %3865 = vst.msk [vmem:[#allocation2 + $0xd0] sm:$0x3] %vm3840, 0.0
      %3866 = vst.msk [vmem:[#allocation2 + $0xd8] sm:$0xff] %vm346, 0.0
      %3867 = vst.msk [vmem:[#allocation2 + $0xe0] sm:$0xff] %vm346, 0.0
      %3868 = vst.msk [vmem:[#allocation2 + $0xe8] sm:$0x3] %vm3840, 0.0
      %3869 = vst.msk [vmem:[#allocation2 + $0xf0] sm:$0xff] %vm346, 0.0
      %3870 = vst.msk [vmem:[#allocation2 + $0xf8] sm:$0xff] %vm346, 0.0
      %3871 = vst.msk [vmem:[#allocation2 + $0x100] sm:$0x3] %vm3840, 0.0
      %3872 = vst.msk [vmem:[#allocation2 + $0x108] sm:$0xff] %vm346, 0.0
      %3873 = vst.msk [vmem:[#allocation2 + $0x110] sm:$0xff] %vm346, 0.0
      %3874 = vst.msk [vmem:[#allocation2 + $0x118] sm:$0x3] %vm3840, 0.0
      %3875 = vst.msk [vmem:[#allocation2 + $0x120] sm:$0xff] %vm346, 0.0
      %3876 = vst.msk [vmem:[#allocation2 + $0x128] sm:$0xff] %vm346, 0.0
      %3877 = vst.msk [vmem:[#allocation2 + $0x130] sm:$0x3] %vm3840, 0.0
      %3878 = vst.msk [vmem:[#allocation2 + $0x138] sm:$0xff] %vm346, 0.0
      %3879 = vst.msk [vmem:[#allocation2 + $0x140] sm:$0xff] %vm346, 0.0
      %3880 = vst.msk [vmem:[#allocation2 + $0x148] sm:$0x3] %vm3840, 0.0
      %3881 = vst.msk [vmem:[#allocation2 + $0x150] sm:$0xff] %vm346, 0.0
      %3882 = vst.msk [vmem:[#allocation2 + $0x158] sm:$0xff] %vm346, 0.0
      %3883 = vst.msk [vmem:[#allocation2 + $0x160] sm:$0x3] %vm3840, 0.0
      %3884 = vst.msk [vmem:[#allocation2 + $0x168] sm:$0xff] %vm346, 0.0
      %3885 = vst.msk [vmem:[#allocation2 + $0x170] sm:$0xff] %vm346, 0.0
      %3886 = vst.msk [vmem:[#allocation2 + $0x178] sm:$0x3] %vm3840, 0.0
      %3887 = vst.msk [vmem:[#allocation2 + $0x180] sm:$0xff] %vm346, 0.0
      %3888 = vst.msk [vmem:[#allocation2 + $0x188] sm:$0xff] %vm346, 0.0
      %3889 = vst.msk [vmem:[#allocation2 + $0x190] sm:$0x3] %vm3840, 0.0
      %3890 = vst.msk [vmem:[#allocation2 + $0x198] sm:$0xff] %vm346, 0.0
      %3891 = vst.msk [vmem:[#allocation2 + $0x1a0] sm:$0xff] %vm346, 0.0
      %3892 = vst.msk [vmem:[#allocation2 + $0x1a8] sm:$0x3] %vm3840, 0.0
      %s3893 = scalar_lea.vmem [#allocation2], 24
      %3894 = vst.msk [vmem:[%s3893 + $0x1] sm:$0xff] %vm346, %v3806
      %3895 = vst.msk [vmem:[%s3893 + $0x9] sm:$0xff] %vm346, %v3807
      %3896 = vst.msk [vmem:[%s3893 + $0x19] sm:$0xff] %vm346, %v3808
      %3897 = vst.msk [vmem:[%s3893 + $0x21] sm:$0xff] %vm346, %v3809
      %3898 = vst.msk [vmem:[%s3893 + $0x31] sm:$0xff] %vm346, %v3810
      %3899 = vst.msk [vmem:[%s3893 + $0x39] sm:$0xff] %vm346, %v3811
      %3900 = vst.msk [vmem:[%s3893 + $0x49] sm:$0xff] %vm346, %v3812
      %3901 = vst.msk [vmem:[%s3893 + $0x51] sm:$0xff] %vm346, %v3813
      %3902 = vst.msk [vmem:[%s3893 + $0x61] sm:$0xff] %vm346, %v3814
      %3903 = vst.msk [vmem:[%s3893 + $0x69] sm:$0xff] %vm346, %v3815
      %3904 = vst.msk [vmem:[%s3893 + $0x79] sm:$0xff] %vm346, %v3816
      %3905 = vst.msk [vmem:[%s3893 + $0x81] sm:$0xff] %vm346, %v3817
      %3906 = vst.msk [vmem:[%s3893 + $0x91] sm:$0xff] %vm346, %v3818
      %3907 = vst.msk [vmem:[%s3893 + $0x99] sm:$0xff] %vm346, %v3819
      %3908 = vst.msk [vmem:[%s3893 + $0xa9] sm:$0xff] %vm346, %v3820
      %3909 = vst.msk [vmem:[%s3893 + $0xb1] sm:$0xff] %vm346, %v3821
      %3910 = vst.msk [vmem:[%s3893 + $0xc1] sm:$0xff] %vm346, %v3822
      %3911 = vst.msk [vmem:[%s3893 + $0xc9] sm:$0xff] %vm346, %v3823
      %3912 = vst.msk [vmem:[%s3893 + $0xd9] sm:$0xff] %vm346, %v3824
      %3913 = vst.msk [vmem:[%s3893 + $0xe1] sm:$0xff] %vm346, %v3825
      %3914 = vst.msk [vmem:[%s3893 + $0xf1] sm:$0xff] %vm346, %v3826
      %3915 = vst.msk [vmem:[%s3893 + $0xf9] sm:$0xff] %vm346, %v3827
      %3916 = vst.msk [vmem:[%s3893 + $0x109] sm:$0xff] %vm346, %v3828
      %3917 = vst.msk [vmem:[%s3893 + $0x111] sm:$0xff] %vm346, %v3829
      %3918 = vst.msk [vmem:[%s3893 + $0x121] sm:$0xff] %vm346, %v3830
      %3919 = vst.msk [vmem:[%s3893 + $0x129] sm:$0xff] %vm346, %v3831
      %3920 = vst.msk [vmem:[%s3893 + $0x139] sm:$0xff] %vm346, %v3832
      %3921 = vst.msk [vmem:[%s3893 + $0x141] sm:$0xff] %vm346, %v3833
      %3922 = vst.msk [vmem:[%s3893 + $0x151] sm:$0xff] %vm346, %v3834
      %3923 = vst.msk [vmem:[%s3893 + $0x159] sm:$0xff] %vm346, %v3835
      %3924 = vst.msk [vmem:[%s3893 + $0x169] sm:$0xff] %vm346, %v3836
      %3925 = vst.msk [vmem:[%s3893 + $0x171] sm:$0xff] %vm346, %v3837
      %v3926 = vld [vmem:[#allocation2] sm:$0xff]
      %v3927 = vld [vmem:[#allocation2 + $0x8] sm:$0xff]
      %v3928 = vld [vmem:[#allocation2 + $0x18] sm:$0xff]
      %v3929 = vld [vmem:[#allocation2 + $0x20] sm:$0xff]
      %v3930 = vld [vmem:[#allocation2 + $0x30] sm:$0xff]
      %v3931 = vld [vmem:[#allocation2 + $0x38] sm:$0xff]
      %v3932 = vld [vmem:[#allocation2 + $0x48] sm:$0xff]
      %v3933 = vld [vmem:[#allocation2 + $0x50] sm:$0xff]
      %v3934 = vld [vmem:[#allocation2 + $0x60] sm:$0xff]
      %v3935 = vld [vmem:[#allocation2 + $0x68] sm:$0xff]
      %v3936 = vld [vmem:[#allocation2 + $0x78] sm:$0xff]
      %v3937 = vld [vmem:[#allocation2 + $0x80] sm:$0xff]
      %v3938 = vld [vmem:[#allocation2 + $0x90] sm:$0xff]
      %v3939 = vld [vmem:[#allocation2 + $0x98] sm:$0xff]
      %v3940 = vld [vmem:[#allocation2 + $0xa8] sm:$0xff]
      %v3941 = vld [vmem:[#allocation2 + $0xb0] sm:$0xff]
      %v3942 = vld [vmem:[#allocation2 + $0xc0] sm:$0xff]
      %v3943 = vld [vmem:[#allocation2 + $0xc8] sm:$0xff]
      %v3944 = vld [vmem:[#allocation2 + $0xd8] sm:$0xff]
      %v3945 = vld [vmem:[#allocation2 + $0xe0] sm:$0xff]
      %v3946 = vld [vmem:[#allocation2 + $0xf0] sm:$0xff]
      %v3947 = vld [vmem:[#allocation2 + $0xf8] sm:$0xff]
      %v3948 = vld [vmem:[#allocation2 + $0x108] sm:$0xff]
      %v3949 = vld [vmem:[#allocation2 + $0x110] sm:$0xff]
      %v3950 = vld [vmem:[#allocation2 + $0x120] sm:$0xff]
      %v3951 = vld [vmem:[#allocation2 + $0x128] sm:$0xff]
      %v3952 = vld [vmem:[#allocation2 + $0x138] sm:$0xff]
      %v3953 = vld [vmem:[#allocation2 + $0x140] sm:$0xff]
      %v3954 = vld [vmem:[#allocation2 + $0x150] sm:$0xff]
      %v3955 = vld [vmem:[#allocation2 + $0x158] sm:$0xff]
      %v3956 = vld [vmem:[#allocation2 + $0x168] sm:$0xff]
      %v3957 = vld [vmem:[#allocation2 + $0x170] sm:$0xff]
      %v3958 = vld [vmem:[%s2] sm:$0xf]
      %v3959 = vld [vmem:[#allocation2 + $0x1] sm:$0xff]
      %v3960 = vld [vmem:[#allocation2 + $0x9] sm:$0xff]
      %v3961 = vld [vmem:[#allocation2 + $0x19] sm:$0xff]
      %v3962 = vld [vmem:[#allocation2 + $0x21] sm:$0xff]
      %v3963 = vld [vmem:[#allocation2 + $0x31] sm:$0xff]
      %v3964 = vld [vmem:[#allocation2 + $0x39] sm:$0xff]
      %v3965 = vld [vmem:[#allocation2 + $0x49] sm:$0xff]
      %v3966 = vld [vmem:[#allocation2 + $0x51] sm:$0xff]
      %v3967 = vld [vmem:[#allocation2 + $0x61] sm:$0xff]
      %v3968 = vld [vmem:[#allocation2 + $0x69] sm:$0xff]
      %v3969 = vld [vmem:[#allocation2 + $0x79] sm:$0xff]
      %v3970 = vld [vmem:[#allocation2 + $0x81] sm:$0xff]
      %v3971 = vld [vmem:[#allocation2 + $0x91] sm:$0xff]
      %v3972 = vld [vmem:[#allocation2 + $0x99] sm:$0xff]
      %v3973 = vld [vmem:[#allocation2 + $0xa9] sm:$0xff]
      %v3974 = vld [vmem:[#allocation2 + $0xb1] sm:$0xff]
      %v3975 = vld [vmem:[#allocation2 + $0xc1] sm:$0xff]
      %v3976 = vld [vmem:[#allocation2 + $0xc9] sm:$0xff]
      %v3977 = vld [vmem:[#allocation2 + $0xd9] sm:$0xff]
      %v3978 = vld [vmem:[#allocation2 + $0xe1] sm:$0xff]
      %v3979 = vld [vmem:[#allocation2 + $0xf1] sm:$0xff]
      %v3980 = vld [vmem:[#allocation2 + $0xf9] sm:$0xff]
      %v3981 = vld [vmem:[#allocation2 + $0x109] sm:$0xff]
      %v3982 = vld [vmem:[#allocation2 + $0x111] sm:$0xff]
      %v3983 = vld [vmem:[#allocation2 + $0x121] sm:$0xff]
      %v3984 = vld [vmem:[#allocation2 + $0x129] sm:$0xff]
      %v3985 = vld [vmem:[#allocation2 + $0x139] sm:$0xff]
      %v3986 = vld [vmem:[#allocation2 + $0x141] sm:$0xff]
      %v3987 = vld [vmem:[#allocation2 + $0x151] sm:$0xff]
      %v3988 = vld [vmem:[#allocation2 + $0x159] sm:$0xff]
      %v3989 = vld [vmem:[#allocation2 + $0x169] sm:$0xff]
      %v3990 = vld [vmem:[#allocation2 + $0x171] sm:$0xff]
      %s3991 = scalar_lea.vmem %s2, 4
      %v3992 = vld [vmem:[%s3991] sm:$0xf]
      %v3994 = vsel %vm346, %v3992, 0
      %v3997 = vsel %vm346, %v3959, 0
      %v4000 = vsel %vm346, %v3960, 0
      %v4003 = vsel %vm346, %v3961, 0
      %v4006 = vsel %vm346, %v3962, 0
      %v4009 = vsel %vm346, %v3963, 0
      %v4012 = vsel %vm346, %v3964, 0
      %v4015 = vsel %vm346, %v3965, 0
      %v4018 = vsel %vm346, %v3966, 0
      %v4021 = vsel %vm346, %v3967, 0
      %v4024 = vsel %vm346, %v3968, 0
      %v4027 = vsel %vm346, %v3969, 0
      %v4030 = vsel %vm346, %v3970, 0
      %v4033 = vsel %vm346, %v3971, 0
      %v4036 = vsel %vm346, %v3972, 0
      %v4039 = vsel %vm346, %v3973, 0
      %v4042 = vsel %vm346, %v3974, 0
      %v4045 = vsel %vm346, %v3975, 0
      %v4048 = vsel %vm346, %v3976, 0
      %v4051 = vsel %vm346, %v3977, 0
      %v4054 = vsel %vm346, %v3978, 0
      %v4057 = vsel %vm346, %v3979, 0
      %v4060 = vsel %vm346, %v3980, 0
      %v4063 = vsel %vm346, %v3981, 0
      %v4066 = vsel %vm346, %v3982, 0
      %v4069 = vsel %vm346, %v3983, 0
      %v4072 = vsel %vm346, %v3984, 0
      %v4075 = vsel %vm346, %v3985, 0
      %v4078 = vsel %vm346, %v3986, 0
      %v4081 = vsel %vm346, %v3987, 0
      %v4084 = vsel %vm346, %v3988, 0
      %v4087 = vsel %vm346, %v3989, 0
      %v4090 = vsel %vm346, %v3990, 0
      %4092 = vmatprep.subr.mxu0 0.0
      %4093 = vmatpush1.xpose.msra.mxu0 %v3997
      %4094 = vmatprep.subr.mxu0 0.0
      %4095 = vmatpush1.xpose.msra.mxu0 %v4000
      %4096 = vmatprep.subr.mxu0 0.0
      %4097 = vmatpush1.xpose.msra.mxu0 %v4003
      %4098 = vmatprep.subr.mxu0 0.0
      %4099 = vmatpush1.xpose.msra.mxu0 %v4006
      %4100 = vmatprep.subr.mxu0 0.0
      %4101 = vmatpush1.xpose.msra.mxu0 %v4009
      %4102 = vmatprep.subr.mxu0 0.0
      %4103 = vmatpush1.xpose.msra.mxu0 %v4012
      %4104 = vmatprep.subr.mxu0 0.0
      %4105 = vmatpush1.xpose.msra.mxu0 %v4015
      %4106 = vmatprep.subr.mxu0 0.0
      %4107 = vmatpush1.xpose.msra.mxu0 %v4018
      %4108 = vmatprep.subr.mxu0 0.0
      %4109 = vmatpush1.xpose.msra.mxu0 %v4021
      %4110 = vmatprep.subr.mxu0 0.0
      %4111 = vmatpush1.xpose.msra.mxu0 %v4024
      %4112 = vmatprep.subr.mxu0 0.0
      %4113 = vmatpush1.xpose.msra.mxu0 %v4027
      %4114 = vmatprep.subr.mxu0 0.0
      %4115 = vmatpush1.xpose.msra.mxu0 %v4030
      %4116 = vmatprep.subr.mxu0 0.0
      %4117 = vmatpush1.xpose.msra.mxu0 %v4033
      %4118 = vmatprep.subr.mxu0 0.0
      %4119 = vmatpush1.xpose.msra.mxu0 %v4036
      %4120 = vmatprep.subr.mxu0 0.0
      %4121 = vmatpush1.xpose.msra.mxu0 %v4039
      %4122 = vmatprep.subr.mxu0 0.0
      %4123 = vmatpush1.xpose.msra.mxu0 %v4042
      %4124 = vmatprep.subr.mxu0 0.0
      %4125 = vmatpush1.xpose.msra.mxu0 %v4045
      %4126 = vmatprep.subr.mxu0 0.0
      %4127 = vmatpush1.xpose.msra.mxu0 %v4048
      %4128 = vmatprep.subr.mxu0 0.0
      %4129 = vmatpush1.xpose.msra.mxu0 %v4051
      %4130 = vmatprep.subr.mxu0 0.0
      %4131 = vmatpush1.xpose.msra.mxu0 %v4054
      %4132 = vmatprep.subr.mxu0 0.0
      %4133 = vmatpush1.xpose.msra.mxu0 %v4057
      %4134 = vmatprep.subr.mxu0 0.0
      %4135 = vmatpush1.xpose.msra.mxu0 %v4060
      %4136 = vmatprep.subr.mxu0 0.0
      %4137 = vmatpush1.xpose.msra.mxu0 %v4063
      %4138 = vmatprep.subr.mxu0 0.0
      %4139 = vmatpush1.xpose.msra.mxu0 %v4066
      %4140 = vmatprep.subr.mxu0 0.0
      %4141 = vmatpush1.xpose.msra.mxu0 %v4069
      %4142 = vmatprep.subr.mxu0 0.0
      %4143 = vmatpush1.xpose.msra.mxu0 %v4072
      %4144 = vmatprep.subr.mxu0 0.0
      %4145 = vmatpush1.xpose.msra.mxu0 %v4075
      %4146 = vmatprep.subr.mxu0 0.0
      %4147 = vmatpush1.xpose.msra.mxu0 %v4078
      %4148 = vmatprep.subr.mxu0 0.0
      %4149 = vmatpush1.xpose.msra.mxu0 %v4081
      %4150 = vmatprep.subr.mxu0 0.0
      %4151 = vmatpush1.xpose.msra.mxu0 %v4084
      %4152 = vmatprep.subr.mxu0 0.0
      %4153 = vmatpush1.xpose.msra.mxu0 %v4087
      %4154 = vmatprep.subr.mxu0 0.0
      %4155 = vmatpush1.xpose.msra.mxu0 %v4090
      %4156 = vmatprep.mubr.f32.mxu0 0.0
      %4157 = vmatmul.mubr.f32.gmra.mrb[0].mxu0 %v3994
      %v4158 = vpop.f32.mrb[0].mxu0
      %v4159 = vadd.f32 0.0, %v4158
      %v4160 = vpop.f32.mrb[0].mxu0
      %v4161 = vadd.f32 0.0, %v4160
      %4162 = vdwg.mxu0
      %v4164 = vsel %vm346, %v3958, 0
      %v4167 = vsel %vm346, %v3926, 0
      %v4170 = vsel %vm346, %v3927, 0
      %v4173 = vsel %vm346, %v3928, 0
      %v4176 = vsel %vm346, %v3929, 0
      %v4179 = vsel %vm346, %v3930, 0
      %v4182 = vsel %vm346, %v3931, 0
      %v4185 = vsel %vm346, %v3932, 0
      %v4188 = vsel %vm346, %v3933, 0
      %v4191 = vsel %vm346, %v3934, 0
      %v4194 = vsel %vm346, %v3935, 0
      %v4197 = vsel %vm346, %v3936, 0
      %v4200 = vsel %vm346, %v3937, 0
      %v4203 = vsel %vm346, %v3938, 0
      %v4206 = vsel %vm346, %v3939, 0
      %v4209 = vsel %vm346, %v3940, 0
      %v4212 = vsel %vm346, %v3941, 0
      %v4215 = vsel %vm346, %v3942, 0
      %v4218 = vsel %vm346, %v3943, 0
      %v4221 = vsel %vm346, %v3944, 0
      %v4224 = vsel %vm346, %v3945, 0
      %v4227 = vsel %vm346, %v3946, 0
      %v4230 = vsel %vm346, %v3947, 0
      %v4233 = vsel %vm346, %v3948, 0
      %v4236 = vsel %vm346, %v3949, 0
      %v4239 = vsel %vm346, %v3950, 0
      %v4242 = vsel %vm346, %v3951, 0
      %v4245 = vsel %vm346, %v3952, 0
      %v4248 = vsel %vm346, %v3953, 0
      %v4251 = vsel %vm346, %v3954, 0
      %v4254 = vsel %vm346, %v3955, 0
      %v4257 = vsel %vm346, %v3956, 0
      %v4260 = vsel %vm346, %v3957, 0
      %4262 = vmatprep.subr.mxu0 0.0
      %4263 = vmatpush1.xpose.msra.mxu0 %v4167
      %4264 = vmatprep.subr.mxu0 0.0
      %4265 = vmatpush1.xpose.msra.mxu0 %v4170
      %4266 = vmatprep.subr.mxu0 0.0
      %4267 = vmatpush1.xpose.msra.mxu0 %v4173
      %4268 = vmatprep.subr.mxu0 0.0
      %4269 = vmatpush1.xpose.msra.mxu0 %v4176
      %4270 = vmatprep.subr.mxu0 0.0
      %4271 = vmatpush1.xpose.msra.mxu0 %v4179
      %4272 = vmatprep.subr.mxu0 0.0
      %4273 = vmatpush1.xpose.msra.mxu0 %v4182
      %4274 = vmatprep.subr.mxu0 0.0
      %4275 = vmatpush1.xpose.msra.mxu0 %v4185
      %4276 = vmatprep.subr.mxu0 0.0
      %4277 = vmatpush1.xpose.msra.mxu0 %v4188
      %4278 = vmatprep.subr.mxu0 0.0
      %4279 = vmatpush1.xpose.msra.mxu0 %v4191
      %4280 = vmatprep.subr.mxu0 0.0
      %4281 = vmatpush1.xpose.msra.mxu0 %v4194
      %4282 = vmatprep.subr.mxu0 0.0
      %4283 = vmatpush1.xpose.msra.mxu0 %v4197
      %4284 = vmatprep.subr.mxu0 0.0
      %4285 = vmatpush1.xpose.msra.mxu0 %v4200
      %4286 = vmatprep.subr.mxu0 0.0
      %4287 = vmatpush1.xpose.msra.mxu0 %v4203
      %4288 = vmatprep.subr.mxu0 0.0
      %4289 = vmatpush1.xpose.msra.mxu0 %v4206
      %4290 = vmatprep.subr.mxu0 0.0
      %4291 = vmatpush1.xpose.msra.mxu0 %v4209
      %4292 = vmatprep.subr.mxu0 0.0
      %4293 = vmatpush1.xpose.msra.mxu0 %v4212
      %4294 = vmatprep.subr.mxu0 0.0
      %4295 = vmatpush1.xpose.msra.mxu0 %v4215
      %4296 = vmatprep.subr.mxu0 0.0
      %4297 = vmatpush1.xpose.msra.mxu0 %v4218
      %4298 = vmatprep.subr.mxu0 0.0
      %4299 = vmatpush1.xpose.msra.mxu0 %v4221
      %4300 = vmatprep.subr.mxu0 0.0
      %4301 = vmatpush1.xpose.msra.mxu0 %v4224
      %4302 = vmatprep.subr.mxu0 0.0
      %4303 = vmatpush1.xpose.msra.mxu0 %v4227
      %4304 = vmatprep.subr.mxu0 0.0
      %4305 = vmatpush1.xpose.msra.mxu0 %v4230
      %4306 = vmatprep.subr.mxu0 0.0
      %4307 = vmatpush1.xpose.msra.mxu0 %v4233
      %4308 = vmatprep.subr.mxu0 0.0
      %4309 = vmatpush1.xpose.msra.mxu0 %v4236
      %4310 = vmatprep.subr.mxu0 0.0
      %4311 = vmatpush1.xpose.msra.mxu0 %v4239
      %4312 = vmatprep.subr.mxu0 0.0
      %4313 = vmatpush1.xpose.msra.mxu0 %v4242
      %4314 = vmatprep.subr.mxu0 0.0
      %4315 = vmatpush1.xpose.msra.mxu0 %v4245
      %4316 = vmatprep.subr.mxu0 0.0
      %4317 = vmatpush1.xpose.msra.mxu0 %v4248
      %4318 = vmatprep.subr.mxu0 0.0
      %4319 = vmatpush1.xpose.msra.mxu0 %v4251
      %4320 = vmatprep.subr.mxu0 0.0
      %4321 = vmatpush1.xpose.msra.mxu0 %v4254
      %4322 = vmatprep.subr.mxu0 0.0
      %4323 = vmatpush1.xpose.msra.mxu0 %v4257
      %4324 = vmatprep.subr.mxu0 0.0
      %4325 = vmatpush1.xpose.msra.mxu0 %v4260
      %4326 = vmatprep.mubr.f32.mxu0 0.0
      %4327 = vmatmul.mubr.f32.gmra.mrb[0].mxu0 %v4164
      %v4328 = vpop.f32.mrb[0].mxu0
      %v4329 = vadd.f32 %v4159, %v4328
      %v4330 = vpop.f32.mrb[0].mxu0
      %v4331 = vadd.f32 %v4161, %v4330
      %4332 = vdwg.mxu0
      %v4333 = vld [vmem:[#allocation2 + $0x2] sm:$0xff]
      %v4334 = vld [vmem:[#allocation2 + $0xa] sm:$0xff]
      %v4335 = vld [vmem:[#allocation2 + $0x1a] sm:$0xff]
      %v4336 = vld [vmem:[#allocation2 + $0x22] sm:$0xff]
      %v4337 = vld [vmem:[#allocation2 + $0x32] sm:$0xff]
      %v4338 = vld [vmem:[#allocation2 + $0x3a] sm:$0xff]
      %v4339 = vld [vmem:[#allocation2 + $0x4a] sm:$0xff]
      %v4340 = vld [vmem:[#allocation2 + $0x52] sm:$0xff]
      %v4341 = vld [vmem:[#allocation2 + $0x62] sm:$0xff]
      %v4342 = vld [vmem:[#allocation2 + $0x6a] sm:$0xff]
      %v4343 = vld [vmem:[#allocation2 + $0x7a] sm:$0xff]
      %v4344 = vld [vmem:[#allocation2 + $0x82] sm:$0xff]
      %v4345 = vld [vmem:[#allocation2 + $0x92] sm:$0xff]
      %v4346 = vld [vmem:[#allocation2 + $0x9a] sm:$0xff]
      %v4347 = vld [vmem:[#allocation2 + $0xaa] sm:$0xff]
      %v4348 = vld [vmem:[#allocation2 + $0xb2] sm:$0xff]
      %v4349 = vld [vmem:[#allocation2 + $0xc2] sm:$0xff]
      %v4350 = vld [vmem:[#allocation2 + $0xca] sm:$0xff]
      %v4351 = vld [vmem:[#allocation2 + $0xda] sm:$0xff]
      %v4352 = vld [vmem:[#allocation2 + $0xe2] sm:$0xff]
      %v4353 = vld [vmem:[#allocation2 + $0xf2] sm:$0xff]
      %v4354 = vld [vmem:[#allocation2 + $0xfa] sm:$0xff]
      %v4355 = vld [vmem:[#allocation2 + $0x10a] sm:$0xff]
      %v4356 = vld [vmem:[#allocation2 + $0x112] sm:$0xff]
      %v4357 = vld [vmem:[#allocation2 + $0x122] sm:$0xff]
      %v4358 = vld [vmem:[#allocation2 + $0x12a] sm:$0xff]
      %v4359 = vld [vmem:[#allocation2 + $0x13a] sm:$0xff]
      %v4360 = vld [vmem:[#allocation2 + $0x142] sm:$0xff]
      %v4361 = vld [vmem:[#allocation2 + $0x152] sm:$0xff]
      %v4362 = vld [vmem:[#allocation2 + $0x15a] sm:$0xff]
      %v4363 = vld [vmem:[#allocation2 + $0x16a] sm:$0xff]
      %v4364 = vld [vmem:[#allocation2 + $0x172] sm:$0xff]
      %s4365 = scalar_lea.vmem %s2, 8
      %v4366 = vld [vmem:[%s4365] sm:$0xf]
      %v4368 = vsel %vm346, %v4366, 0
      %v4371 = vsel %vm346, %v4333, 0
      %v4374 = vsel %vm346, %v4334, 0
      %v4377 = vsel %vm346, %v4335, 0
      %v4380 = vsel %vm346, %v4336, 0
      %v4383 = vsel %vm346, %v4337, 0
      %v4386 = vsel %vm346, %v4338, 0
      %v4389 = vsel %vm346, %v4339, 0
      %v4392 = vsel %vm346, %v4340, 0
      %v4395 = vsel %vm346, %v4341, 0
      %v4398 = vsel %vm346, %v4342, 0
      %v4401 = vsel %vm346, %v4343, 0
      %v4404 = vsel %vm346, %v4344, 0
      %v4407 = vsel %vm346, %v4345, 0
      %v4410 = vsel %vm346, %v4346, 0
      %v4413 = vsel %vm346, %v4347, 0
      %v4416 = vsel %vm346, %v4348, 0
      %v4419 = vsel %vm346, %v4349, 0
      %v4422 = vsel %vm346, %v4350, 0
      %v4425 = vsel %vm346, %v4351, 0
      %v4428 = vsel %vm346, %v4352, 0
      %v4431 = vsel %vm346, %v4353, 0
      %v4434 = vsel %vm346, %v4354, 0
      %v4437 = vsel %vm346, %v4355, 0
      %v4440 = vsel %vm346, %v4356, 0
      %v4443 = vsel %vm346, %v4357, 0
      %v4446 = vsel %vm346, %v4358, 0
      %v4449 = vsel %vm346, %v4359, 0
      %v4452 = vsel %vm346, %v4360, 0
      %v4455 = vsel %vm346, %v4361, 0
      %v4458 = vsel %vm346, %v4362, 0
      %v4461 = vsel %vm346, %v4363, 0
      %v4464 = vsel %vm346, %v4364, 0
      %4466 = vmatprep.subr.mxu0 0.0
      %4467 = vmatpush1.xpose.msra.mxu0 %v4371
      %4468 = vmatprep.subr.mxu0 0.0
      %4469 = vmatpush1.xpose.msra.mxu0 %v4374
      %4470 = vmatprep.subr.mxu0 0.0
      %4471 = vmatpush1.xpose.msra.mxu0 %v4377
      %4472 = vmatprep.subr.mxu0 0.0
      %4473 = vmatpush1.xpose.msra.mxu0 %v4380
      %4474 = vmatprep.subr.mxu0 0.0
      %4475 = vmatpush1.xpose.msra.mxu0 %v4383
      %4476 = vmatprep.subr.mxu0 0.0
      %4477 = vmatpush1.xpose.msra.mxu0 %v4386
      %4478 = vmatprep.subr.mxu0 0.0
      %4479 = vmatpush1.xpose.msra.mxu0 %v4389
      %4480 = vmatprep.subr.mxu0 0.0
      %4481 = vmatpush1.xpose.msra.mxu0 %v4392
      %4482 = vmatprep.subr.mxu0 0.0
      %4483 = vmatpush1.xpose.msra.mxu0 %v4395
      %4484 = vmatprep.subr.mxu0 0.0
      %4485 = vmatpush1.xpose.msra.mxu0 %v4398
      %4486 = vmatprep.subr.mxu0 0.0
      %4487 = vmatpush1.xpose.msra.mxu0 %v4401
      %4488 = vmatprep.subr.mxu0 0.0
      %4489 = vmatpush1.xpose.msra.mxu0 %v4404
      %4490 = vmatprep.subr.mxu0 0.0
      %4491 = vmatpush1.xpose.msra.mxu0 %v4407
      %4492 = vmatprep.subr.mxu0 0.0
      %4493 = vmatpush1.xpose.msra.mxu0 %v4410
      %4494 = vmatprep.subr.mxu0 0.0
      %4495 = vmatpush1.xpose.msra.mxu0 %v4413
      %4496 = vmatprep.subr.mxu0 0.0
      %4497 = vmatpush1.xpose.msra.mxu0 %v4416
      %4498 = vmatprep.subr.mxu0 0.0
      %4499 = vmatpush1.xpose.msra.mxu0 %v4419
      %4500 = vmatprep.subr.mxu0 0.0
      %4501 = vmatpush1.xpose.msra.mxu0 %v4422
      %4502 = vmatprep.subr.mxu0 0.0
      %4503 = vmatpush1.xpose.msra.mxu0 %v4425
      %4504 = vmatprep.subr.mxu0 0.0
      %4505 = vmatpush1.xpose.msra.mxu0 %v4428
      %4506 = vmatprep.subr.mxu0 0.0
      %4507 = vmatpush1.xpose.msra.mxu0 %v4431
      %4508 = vmatprep.subr.mxu0 0.0
      %4509 = vmatpush1.xpose.msra.mxu0 %v4434
      %4510 = vmatprep.subr.mxu0 0.0
      %4511 = vmatpush1.xpose.msra.mxu0 %v4437
      %4512 = vmatprep.subr.mxu0 0.0
      %4513 = vmatpush1.xpose.msra.mxu0 %v4440
      %4514 = vmatprep.subr.mxu0 0.0
      %4515 = vmatpush1.xpose.msra.mxu0 %v4443
      %4516 = vmatprep.subr.mxu0 0.0
      %4517 = vmatpush1.xpose.msra.mxu0 %v4446
      %4518 = vmatprep.subr.mxu0 0.0
      %4519 = vmatpush1.xpose.msra.mxu0 %v4449
      %4520 = vmatprep.subr.mxu0 0.0
      %4521 = vmatpush1.xpose.msra.mxu0 %v4452
      %4522 = vmatprep.subr.mxu0 0.0
      %4523 = vmatpush1.xpose.msra.mxu0 %v4455
      %4524 = vmatprep.subr.mxu0 0.0
      %4525 = vmatpush1.xpose.msra.mxu0 %v4458
      %4526 = vmatprep.subr.mxu0 0.0
      %4527 = vmatpush1.xpose.msra.mxu0 %v4461
      %4528 = vmatprep.subr.mxu0 0.0
      %4529 = vmatpush1.xpose.msra.mxu0 %v4464
      %4530 = vmatprep.mubr.f32.mxu0 0.0
      %4531 = vmatmul.mubr.f32.gmra.mrb[0].mxu0 %v4368
      %v4532 = vpop.f32.mrb[0].mxu0
      %v4533 = vadd.f32 0.0, %v4532
      %v4534 = vpop.f32.mrb[0].mxu0
      %v4535 = vadd.f32 0.0, %v4534
      %4536 = vdwg.mxu0
      %v4537 = vadd.f32 %v4329, %v4533
      %v4538 = vadd.f32 %v4331, %v4535
      %v4539 = vld [vmem:[%s3893] sm:$0xff]
      %v4540 = vld [vmem:[%s3893 + $0x8] sm:$0xff]
      %v4541 = vld [vmem:[%s3893 + $0x18] sm:$0xff]
      %v4542 = vld [vmem:[%s3893 + $0x20] sm:$0xff]
      %v4543 = vld [vmem:[%s3893 + $0x30] sm:$0xff]
      %v4544 = vld [vmem:[%s3893 + $0x38] sm:$0xff]
      %v4545 = vld [vmem:[%s3893 + $0x48] sm:$0xff]
      %v4546 = vld [vmem:[%s3893 + $0x50] sm:$0xff]
      %v4547 = vld [vmem:[%s3893 + $0x60] sm:$0xff]
      %v4548 = vld [vmem:[%s3893 + $0x68] sm:$0xff]
      %v4549 = vld [vmem:[%s3893 + $0x78] sm:$0xff]
      %v4550 = vld [vmem:[%s3893 + $0x80] sm:$0xff]
      %v4551 = vld [vmem:[%s3893 + $0x90] sm:$0xff]
      %v4552 = vld [vmem:[%s3893 + $0x98] sm:$0xff]
      %v4553 = vld [vmem:[%s3893 + $0xa8] sm:$0xff]
      %v4554 = vld [vmem:[%s3893 + $0xb0] sm:$0xff]
      %v4555 = vld [vmem:[%s3893 + $0xc0] sm:$0xff]
      %v4556 = vld [vmem:[%s3893 + $0xc8] sm:$0xff]
      %v4557 = vld [vmem:[%s3893 + $0xd8] sm:$0xff]
      %v4558 = vld [vmem:[%s3893 + $0xe0] sm:$0xff]
      %v4559 = vld [vmem:[%s3893 + $0xf0] sm:$0xff]
      %v4560 = vld [vmem:[%s3893 + $0xf8] sm:$0xff]
      %v4561 = vld [vmem:[%s3893 + $0x108] sm:$0xff]
      %v4562 = vld [vmem:[%s3893 + $0x110] sm:$0xff]
      %v4563 = vld [vmem:[%s3893 + $0x120] sm:$0xff]
      %v4564 = vld [vmem:[%s3893 + $0x128] sm:$0xff]
      %v4565 = vld [vmem:[%s3893 + $0x138] sm:$0xff]
      %v4566 = vld [vmem:[%s3893 + $0x140] sm:$0xff]
      %v4567 = vld [vmem:[%s3893 + $0x150] sm:$0xff]
      %v4568 = vld [vmem:[%s3893 + $0x158] sm:$0xff]
      %v4569 = vld [vmem:[%s3893 + $0x168] sm:$0xff]
      %v4570 = vld [vmem:[%s3893 + $0x170] sm:$0xff]
      %s4571 = scalar_lea.vmem %s2, 12
      %v4572 = vld [vmem:[%s4571] sm:$0xf]
      %v4574 = vsel %vm346, %v4572, 0
      %v4577 = vsel %vm346, %v4539, 0
      %v4580 = vsel %vm346, %v4540, 0
      %v4583 = vsel %vm346, %v4541, 0
      %v4586 = vsel %vm346, %v4542, 0
      %v4589 = vsel %vm346, %v4543, 0
      %v4592 = vsel %vm346, %v4544, 0
      %v4595 = vsel %vm346, %v4545, 0
      %v4598 = vsel %vm346, %v4546, 0
      %v4601 = vsel %vm346, %v4547, 0
      %v4604 = vsel %vm346, %v4548, 0
      %v4607 = vsel %vm346, %v4549, 0
      %v4610 = vsel %vm346, %v4550, 0
      %v4613 = vsel %vm346, %v4551, 0
      %v4616 = vsel %vm346, %v4552, 0
      %v4619 = vsel %vm346, %v4553, 0
      %v4622 = vsel %vm346, %v4554, 0
      %v4625 = vsel %vm346, %v4555, 0
      %v4628 = vsel %vm346, %v4556, 0
      %v4631 = vsel %vm346, %v4557, 0
      %v4634 = vsel %vm346, %v4558, 0
      %v4637 = vsel %vm346, %v4559, 0
      %v4640 = vsel %vm346, %v4560, 0
      %v4643 = vsel %vm346, %v4561, 0
      %v4646 = vsel %vm346, %v4562, 0
      %v4649 = vsel %vm346, %v4563, 0
      %v4652 = vsel %vm346, %v4564, 0
      %v4655 = vsel %vm346, %v4565, 0
      %v4658 = vsel %vm346, %v4566, 0
      %v4661 = vsel %vm346, %v4567, 0
      %v4664 = vsel %vm346, %v4568, 0
      %v4667 = vsel %vm346, %v4569, 0
      %v4670 = vsel %vm346, %v4570, 0
      %4672 = vmatprep.subr.mxu0 0.0
      %4673 = vmatpush1.xpose.msra.mxu0 %v4577
      %4674 = vmatprep.subr.mxu0 0.0
      %4675 = vmatpush1.xpose.msra.mxu0 %v4580
      %4676 = vmatprep.subr.mxu0 0.0
      %4677 = vmatpush1.xpose.msra.mxu0 %v4583
      %4678 = vmatprep.subr.mxu0 0.0
      %4679 = vmatpush1.xpose.msra.mxu0 %v4586
      %4680 = vmatprep.subr.mxu0 0.0
      %4681 = vmatpush1.xpose.msra.mxu0 %v4589
      %4682 = vmatprep.subr.mxu0 0.0
      %4683 = vmatpush1.xpose.msra.mxu0 %v4592
      %4684 = vmatprep.subr.mxu0 0.0
      %4685 = vmatpush1.xpose.msra.mxu0 %v4595
      %4686 = vmatprep.subr.mxu0 0.0
      %4687 = vmatpush1.xpose.msra.mxu0 %v4598
      %4688 = vmatprep.subr.mxu0 0.0
      %4689 = vmatpush1.xpose.msra.mxu0 %v4601
      %4690 = vmatprep.subr.mxu0 0.0
      %4691 = vmatpush1.xpose.msra.mxu0 %v4604
      %4692 = vmatprep.subr.mxu0 0.0
      %4693 = vmatpush1.xpose.msra.mxu0 %v4607
      %4694 = vmatprep.subr.mxu0 0.0
      %4695 = vmatpush1.xpose.msra.mxu0 %v4610
      %4696 = vmatprep.subr.mxu0 0.0
      %4697 = vmatpush1.xpose.msra.mxu0 %v4613
      %4698 = vmatprep.subr.mxu0 0.0
      %4699 = vmatpush1.xpose.msra.mxu0 %v4616
      %4700 = vmatprep.subr.mxu0 0.0
      %4701 = vmatpush1.xpose.msra.mxu0 %v4619
      %4702 = vmatprep.subr.mxu0 0.0
      %4703 = vmatpush1.xpose.msra.mxu0 %v4622
      %4704 = vmatprep.subr.mxu0 0.0
      %4705 = vmatpush1.xpose.msra.mxu0 %v4625
      %4706 = vmatprep.subr.mxu0 0.0
      %4707 = vmatpush1.xpose.msra.mxu0 %v4628
      %4708 = vmatprep.subr.mxu0 0.0
      %4709 = vmatpush1.xpose.msra.mxu0 %v4631
      %4710 = vmatprep.subr.mxu0 0.0
      %4711 = vmatpush1.xpose.msra.mxu0 %v4634
      %4712 = vmatprep.subr.mxu0 0.0
      %4713 = vmatpush1.xpose.msra.mxu0 %v4637
      %4714 = vmatprep.subr.mxu0 0.0
      %4715 = vmatpush1.xpose.msra.mxu0 %v4640
      %4716 = vmatprep.subr.mxu0 0.0
      %4717 = vmatpush1.xpose.msra.mxu0 %v4643
      %4718 = vmatprep.subr.mxu0 0.0
      %4719 = vmatpush1.xpose.msra.mxu0 %v4646
      %4720 = vmatprep.subr.mxu0 0.0
      %4721 = vmatpush1.xpose.msra.mxu0 %v4649
      %4722 = vmatprep.subr.mxu0 0.0
      %4723 = vmatpush1.xpose.msra.mxu0 %v4652
      %4724 = vmatprep.subr.mxu0 0.0
      %4725 = vmatpush1.xpose.msra.mxu0 %v4655
      %4726 = vmatprep.subr.mxu0 0.0
      %4727 = vmatpush1.xpose.msra.mxu0 %v4658
      %4728 = vmatprep.subr.mxu0 0.0
      %4729 = vmatpush1.xpose.msra.mxu0 %v4661
      %4730 = vmatprep.subr.mxu0 0.0
      %4731 = vmatpush1.xpose.msra.mxu0 %v4664
      %4732 = vmatprep.subr.mxu0 0.0
      %4733 = vmatpush1.xpose.msra.mxu0 %v4667
      %4734 = vmatprep.subr.mxu0 0.0
      %4735 = vmatpush1.xpose.msra.mxu0 %v4670
      %4736 = vmatprep.mubr.f32.mxu0 0.0
      %4737 = vmatmul.mubr.f32.gmra.mrb[0].mxu0 %v4574
      %v4738 = vpop.f32.mrb[0].mxu0
      %v4739 = vadd.f32 0.0, %v4738
      %v4740 = vpop.f32.mrb[0].mxu0
      %v4741 = vadd.f32 0.0, %v4740
      %4742 = vdwg.mxu0
      %v4743 = vadd.f32 %v4537, %v4739
      %v4744 = vadd.f32 %v4538, %v4741
      %v4745 = vld [vmem:[%s3893 + $0x1] sm:$0xff]
      %v4746 = vld [vmem:[%s3893 + $0x9] sm:$0xff]
      %v4747 = vld [vmem:[%s3893 + $0x19] sm:$0xff]
      %v4748 = vld [vmem:[%s3893 + $0x21] sm:$0xff]
      %v4749 = vld [vmem:[%s3893 + $0x31] sm:$0xff]
      %v4750 = vld [vmem:[%s3893 + $0x39] sm:$0xff]
      %v4751 = vld [vmem:[%s3893 + $0x49] sm:$0xff]
      %v4752 = vld [vmem:[%s3893 + $0x51] sm:$0xff]
      %v4753 = vld [vmem:[%s3893 + $0x61] sm:$0xff]
      %v4754 = vld [vmem:[%s3893 + $0x69] sm:$0xff]
      %v4755 = vld [vmem:[%s3893 + $0x79] sm:$0xff]
      %v4756 = vld [vmem:[%s3893 + $0x81] sm:$0xff]
      %v4757 = vld [vmem:[%s3893 + $0x91] sm:$0xff]
      %v4758 = vld [vmem:[%s3893 + $0x99] sm:$0xff]
      %v4759 = vld [vmem:[%s3893 + $0xa9] sm:$0xff]
      %v4760 = vld [vmem:[%s3893 + $0xb1] sm:$0xff]
      %v4761 = vld [vmem:[%s3893 + $0xc1] sm:$0xff]
      %v4762 = vld [vmem:[%s3893 + $0xc9] sm:$0xff]
      %v4763 = vld [vmem:[%s3893 + $0xd9] sm:$0xff]
      %v4764 = vld [vmem:[%s3893 + $0xe1] sm:$0xff]
      %v4765 = vld [vmem:[%s3893 + $0xf1] sm:$0xff]
      %v4766 = vld [vmem:[%s3893 + $0xf9] sm:$0xff]
      %v4767 = vld [vmem:[%s3893 + $0x109] sm:$0xff]
      %v4768 = vld [vmem:[%s3893 + $0x111] sm:$0xff]
      %v4769 = vld [vmem:[%s3893 + $0x121] sm:$0xff]
      %v4770 = vld [vmem:[%s3893 + $0x129] sm:$0xff]
      %v4771 = vld [vmem:[%s3893 + $0x139] sm:$0xff]
      %v4772 = vld [vmem:[%s3893 + $0x141] sm:$0xff]
      %v4773 = vld [vmem:[%s3893 + $0x151] sm:$0xff]
      %v4774 = vld [vmem:[%s3893 + $0x159] sm:$0xff]
      %v4775 = vld [vmem:[%s3893 + $0x169] sm:$0xff]
      %v4776 = vld [vmem:[%s3893 + $0x171] sm:$0xff]
      %s4777 = scalar_lea.vmem %s2, 16
      %v4778 = vld [vmem:[%s4777] sm:$0xf]
      %v4780 = vsel %vm346, %v4778, 0
      %v4783 = vsel %vm346, %v4745, 0
      %v4786 = vsel %vm346, %v4746, 0
      %v4789 = vsel %vm346, %v4747, 0
      %v4792 = vsel %vm346, %v4748, 0
      %v4795 = vsel %vm346, %v4749, 0
      %v4798 = vsel %vm346, %v4750, 0
      %v4801 = vsel %vm346, %v4751, 0
      %v4804 = vsel %vm346, %v4752, 0
      %v4807 = vsel %vm346, %v4753, 0
      %v4810 = vsel %vm346, %v4754, 0
      %v4813 = vsel %vm346, %v4755, 0
      %v4816 = vsel %vm346, %v4756, 0
      %v4819 = vsel %vm346, %v4757, 0
      %v4822 = vsel %vm346, %v4758, 0
      %v4825 = vsel %vm346, %v4759, 0
      %v4828 = vsel %vm346, %v4760, 0
      %v4831 = vsel %vm346, %v4761, 0
      %v4834 = vsel %vm346, %v4762, 0
      %v4837 = vsel %vm346, %v4763, 0
      %v4840 = vsel %vm346, %v4764, 0
      %v4843 = vsel %vm346, %v4765, 0
      %v4846 = vsel %vm346, %v4766, 0
      %v4849 = vsel %vm346, %v4767, 0
      %v4852 = vsel %vm346, %v4768, 0
      %v4855 = vsel %vm346, %v4769, 0
      %v4858 = vsel %vm346, %v4770, 0
      %v4861 = vsel %vm346, %v4771, 0
      %v4864 = vsel %vm346, %v4772, 0
      %v4867 = vsel %vm346, %v4773, 0
      %v4870 = vsel %vm346, %v4774, 0
      %v4873 = vsel %vm346, %v4775, 0
      %v4876 = vsel %vm346, %v4776, 0
      %4878 = vmatprep.subr.mxu0 0.0
      %4879 = vmatpush1.xpose.msra.mxu0 %v4783
      %4880 = vmatprep.subr.mxu0 0.0
      %4881 = vmatpush1.xpose.msra.mxu0 %v4786
      %4882 = vmatprep.subr.mxu0 0.0
      %4883 = vmatpush1.xpose.msra.mxu0 %v4789
      %4884 = vmatprep.subr.mxu0 0.0
      %4885 = vmatpush1.xpose.msra.mxu0 %v4792
      %4886 = vmatprep.subr.mxu0 0.0
      %4887 = vmatpush1.xpose.msra.mxu0 %v4795
      %4888 = vmatprep.subr.mxu0 0.0
      %4889 = vmatpush1.xpose.msra.mxu0 %v4798
      %4890 = vmatprep.subr.mxu0 0.0
      %4891 = vmatpush1.xpose.msra.mxu0 %v4801
      %4892 = vmatprep.subr.mxu0 0.0
      %4893 = vmatpush1.xpose.msra.mxu0 %v4804
      %4894 = vmatprep.subr.mxu0 0.0
      %4895 = vmatpush1.xpose.msra.mxu0 %v4807
      %4896 = vmatprep.subr.mxu0 0.0
      %4897 = vmatpush1.xpose.msra.mxu0 %v4810
      %4898 = vmatprep.subr.mxu0 0.0
      %4899 = vmatpush1.xpose.msra.mxu0 %v4813
      %4900 = vmatprep.subr.mxu0 0.0
      %4901 = vmatpush1.xpose.msra.mxu0 %v4816
      %4902 = vmatprep.subr.mxu0 0.0
      %4903 = vmatpush1.xpose.msra.mxu0 %v4819
      %4904 = vmatprep.subr.mxu0 0.0
      %4905 = vmatpush1.xpose.msra.mxu0 %v4822
      %4906 = vmatprep.subr.mxu0 0.0
      %4907 = vmatpush1.xpose.msra.mxu0 %v4825
      %4908 = vmatprep.subr.mxu0 0.0
      %4909 = vmatpush1.xpose.msra.mxu0 %v4828
      %4910 = vmatprep.subr.mxu0 0.0
      %4911 = vmatpush1.xpose.msra.mxu0 %v4831
      %4912 = vmatprep.subr.mxu0 0.0
      %4913 = vmatpush1.xpose.msra.mxu0 %v4834
      %4914 = vmatprep.subr.mxu0 0.0
      %4915 = vmatpush1.xpose.msra.mxu0 %v4837
      %4916 = vmatprep.subr.mxu0 0.0
      %4917 = vmatpush1.xpose.msra.mxu0 %v4840
      %4918 = vmatprep.subr.mxu0 0.0
      %4919 = vmatpush1.xpose.msra.mxu0 %v4843
      %4920 = vmatprep.subr.mxu0 0.0
      %4921 = vmatpush1.xpose.msra.mxu0 %v4846
      %4922 = vmatprep.subr.mxu0 0.0
      %4923 = vmatpush1.xpose.msra.mxu0 %v4849
      %4924 = vmatprep.subr.mxu0 0.0
      %4925 = vmatpush1.xpose.msra.mxu0 %v4852
      %4926 = vmatprep.subr.mxu0 0.0
      %4927 = vmatpush1.xpose.msra.mxu0 %v4855
      %4928 = vmatprep.subr.mxu0 0.0
      %4929 = vmatpush1.xpose.msra.mxu0 %v4858
      %4930 = vmatprep.subr.mxu0 0.0
      %4931 = vmatpush1.xpose.msra.mxu0 %v4861
      %4932 = vmatprep.subr.mxu0 0.0
      %4933 = vmatpush1.xpose.msra.mxu0 %v4864
      %4934 = vmatprep.subr.mxu0 0.0
      %4935 = vmatpush1.xpose.msra.mxu0 %v4867
      %4936 = vmatprep.subr.mxu0 0.0
      %4937 = vmatpush1.xpose.msra.mxu0 %v4870
      %4938 = vmatprep.subr.mxu0 0.0
      %4939 = vmatpush1.xpose.msra.mxu0 %v4873
      %4940 = vmatprep.subr.mxu0 0.0
      %4941 = vmatpush1.xpose.msra.mxu0 %v4876
      %4942 = vmatprep.mubr.f32.mxu0 0.0
      %4943 = vmatmul.mubr.f32.gmra.mrb[0].mxu0 %v4780
      %v4944 = vpop.f32.mrb[0].mxu0
      %v4945 = vadd.f32 0.0, %v4944
      %v4946 = vpop.f32.mrb[0].mxu0
      %v4947 = vadd.f32 0.0, %v4946
      %4948 = vdwg.mxu0
      %v4949 = vadd.f32 %v4743, %v4945
      %v4950 = vadd.f32 %v4744, %v4947
      %v4951 = vld [vmem:[%s3893 + $0x2] sm:$0xff]
      %v4952 = vld [vmem:[%s3893 + $0xa] sm:$0xff]
      %v4953 = vld [vmem:[%s3893 + $0x1a] sm:$0xff]
      %v4954 = vld [vmem:[%s3893 + $0x22] sm:$0xff]
      %v4955 = vld [vmem:[%s3893 + $0x32] sm:$0xff]
      %v4956 = vld [vmem:[%s3893 + $0x3a] sm:$0xff]
      %v4957 = vld [vmem:[%s3893 + $0x4a] sm:$0xff]
      %v4958 = vld [vmem:[%s3893 + $0x52] sm:$0xff]
      %v4959 = vld [vmem:[%s3893 + $0x62] sm:$0xff]
      %v4960 = vld [vmem:[%s3893 + $0x6a] sm:$0xff]
      %v4961 = vld [vmem:[%s3893 + $0x7a] sm:$0xff]
      %v4962 = vld [vmem:[%s3893 + $0x82] sm:$0xff]
      %v4963 = vld [vmem:[%s3893 + $0x92] sm:$0xff]
      %v4964 = vld [vmem:[%s3893 + $0x9a] sm:$0xff]
      %v4965 = vld [vmem:[%s3893 + $0xaa] sm:$0xff]
      %v4966 = vld [vmem:[%s3893 + $0xb2] sm:$0xff]
      %v4967 = vld [vmem:[%s3893 + $0xc2] sm:$0xff]
      %v4968 = vld [vmem:[%s3893 + $0xca] sm:$0xff]
      %v4969 = vld [vmem:[%s3893 + $0xda] sm:$0xff]
      %v4970 = vld [vmem:[%s3893 + $0xe2] sm:$0xff]
      %v4971 = vld [vmem:[%s3893 + $0xf2] sm:$0xff]
      %v4972 = vld [vmem:[%s3893 + $0xfa] sm:$0xff]
      %v4973 = vld [vmem:[%s3893 + $0x10a] sm:$0xff]
      %v4974 = vld [vmem:[%s3893 + $0x112] sm:$0xff]
      %v4975 = vld [vmem:[%s3893 + $0x122] sm:$0xff]
      %v4976 = vld [vmem:[%s3893 + $0x12a] sm:$0xff]
      %v4977 = vld [vmem:[%s3893 + $0x13a] sm:$0xff]
      %v4978 = vld [vmem:[%s3893 + $0x142] sm:$0xff]
      %v4979 = vld [vmem:[%s3893 + $0x152] sm:$0xff]
      %v4980 = vld [vmem:[%s3893 + $0x15a] sm:$0xff]
      %v4981 = vld [vmem:[%s3893 + $0x16a] sm:$0xff]
      %v4982 = vld [vmem:[%s3893 + $0x172] sm:$0xff]
      %s4983 = scalar_lea.vmem %s2, 20
      %v4984 = vld [vmem:[%s4983] sm:$0xf]
      %v4986 = vsel %vm346, %v4984, 0
      %v4989 = vsel %vm346, %v4951, 0
      %v4992 = vsel %vm346, %v4952, 0
      %v4995 = vsel %vm346, %v4953, 0
      %v4998 = vsel %vm346, %v4954, 0
      %v5001 = vsel %vm346, %v4955, 0
      %v5004 = vsel %vm346, %v4956, 0
      %v5007 = vsel %vm346, %v4957, 0
      %v5010 = vsel %vm346, %v4958, 0
      %v5013 = vsel %vm346, %v4959, 0
      %v5016 = vsel %vm346, %v4960, 0
      %v5019 = vsel %vm346, %v4961, 0
      %v5022 = vsel %vm346, %v4962, 0
      %v5025 = vsel %vm346, %v4963, 0
      %v5028 = vsel %vm346, %v4964, 0
      %v5031 = vsel %vm346, %v4965, 0
      %v5034 = vsel %vm346, %v4966, 0
      %v5037 = vsel %vm346, %v4967, 0
      %v5040 = vsel %vm346, %v4968, 0
      %v5043 = vsel %vm346, %v4969, 0
      %v5046 = vsel %vm346, %v4970, 0
      %v5049 = vsel %vm346, %v4971, 0
      %v5052 = vsel %vm346, %v4972, 0
      %v5055 = vsel %vm346, %v4973, 0
      %v5058 = vsel %vm346, %v4974, 0
      %v5061 = vsel %vm346, %v4975, 0
      %v5064 = vsel %vm346, %v4976, 0
      %v5067 = vsel %vm346, %v4977, 0
      %v5070 = vsel %vm346, %v4978, 0
      %v5073 = vsel %vm346, %v4979, 0
      %v5076 = vsel %vm346, %v4980, 0
      %v5079 = vsel %vm346, %v4981, 0
      %v5082 = vsel %vm346, %v4982, 0
      %5084 = vmatprep.subr.mxu0 0.0
      %5085 = vmatpush1.xpose.msra.mxu0 %v4989
      %5086 = vmatprep.subr.mxu0 0.0
      %5087 = vmatpush1.xpose.msra.mxu0 %v4992
      %5088 = vmatprep.subr.mxu0 0.0
      %5089 = vmatpush1.xpose.msra.mxu0 %v4995
      %5090 = vmatprep.subr.mxu0 0.0
      %5091 = vmatpush1.xpose.msra.mxu0 %v4998
      %5092 = vmatprep.subr.mxu0 0.0
      %5093 = vmatpush1.xpose.msra.mxu0 %v5001
      %5094 = vmatprep.subr.mxu0 0.0
      %5095 = vmatpush1.xpose.msra.mxu0 %v5004
      %5096 = vmatprep.subr.mxu0 0.0
      %5097 = vmatpush1.xpose.msra.mxu0 %v5007
      %5098 = vmatprep.subr.mxu0 0.0
      %5099 = vmatpush1.xpose.msra.mxu0 %v5010
      %5100 = vmatprep.subr.mxu0 0.0
      %5101 = vmatpush1.xpose.msra.mxu0 %v5013
      %5102 = vmatprep.subr.mxu0 0.0
      %5103 = vmatpush1.xpose.msra.mxu0 %v5016
      %5104 = vmatprep.subr.mxu0 0.0
      %5105 = vmatpush1.xpose.msra.mxu0 %v5019
      %5106 = vmatprep.subr.mxu0 0.0
      %5107 = vmatpush1.xpose.msra.mxu0 %v5022
      %5108 = vmatprep.subr.mxu0 0.0
      %5109 = vmatpush1.xpose.msra.mxu0 %v5025
      %5110 = vmatprep.subr.mxu0 0.0
      %5111 = vmatpush1.xpose.msra.mxu0 %v5028
      %5112 = vmatprep.subr.mxu0 0.0
      %5113 = vmatpush1.xpose.msra.mxu0 %v5031
      %5114 = vmatprep.subr.mxu0 0.0
      %5115 = vmatpush1.xpose.msra.mxu0 %v5034
      %5116 = vmatprep.subr.mxu0 0.0
      %5117 = vmatpush1.xpose.msra.mxu0 %v5037
      %5118 = vmatprep.subr.mxu0 0.0
      %5119 = vmatpush1.xpose.msra.mxu0 %v5040
      %5120 = vmatprep.subr.mxu0 0.0
      %5121 = vmatpush1.xpose.msra.mxu0 %v5043
      %5122 = vmatprep.subr.mxu0 0.0
      %5123 = vmatpush1.xpose.msra.mxu0 %v5046
      %5124 = vmatprep.subr.mxu0 0.0
      %5125 = vmatpush1.xpose.msra.mxu0 %v5049
      %5126 = vmatprep.subr.mxu0 0.0
      %5127 = vmatpush1.xpose.msra.mxu0 %v5052
      %5128 = vmatprep.subr.mxu0 0.0
      %5129 = vmatpush1.xpose.msra.mxu0 %v5055
      %5130 = vmatprep.subr.mxu0 0.0
      %5131 = vmatpush1.xpose.msra.mxu0 %v5058
      %5132 = vmatprep.subr.mxu0 0.0
      %5133 = vmatpush1.xpose.msra.mxu0 %v5061
      %5134 = vmatprep.subr.mxu0 0.0
      %5135 = vmatpush1.xpose.msra.mxu0 %v5064
      %5136 = vmatprep.subr.mxu0 0.0
      %5137 = vmatpush1.xpose.msra.mxu0 %v5067
      %5138 = vmatprep.subr.mxu0 0.0
      %5139 = vmatpush1.xpose.msra.mxu0 %v5070
      %5140 = vmatprep.subr.mxu0 0.0
      %5141 = vmatpush1.xpose.msra.mxu0 %v5073
      %5142 = vmatprep.subr.mxu0 0.0
      %5143 = vmatpush1.xpose.msra.mxu0 %v5076
      %5144 = vmatprep.subr.mxu0 0.0
      %5145 = vmatpush1.xpose.msra.mxu0 %v5079
      %5146 = vmatprep.subr.mxu0 0.0
      %5147 = vmatpush1.xpose.msra.mxu0 %v5082
      %5148 = vmatprep.mubr.f32.mxu0 0.0
      %5149 = vmatmul.mubr.f32.gmra.mrb[0].mxu0 %v4986
      %v5150 = vpop.f32.mrb[0].mxu0
      %v5151 = vadd.f32 0.0, %v5150
      %v5152 = vpop.f32.mrb[0].mxu0
      %v5153 = vadd.f32 0.0, %v5152
      %5154 = vdwg.mxu0
      %v5155 = vadd.f32 %v4949, %v5151
      %v5156 = vadd.f32 %v4950, %v5153
      %s5157 = scalar_lea.vmem [#allocation2], 48
      %v5158 = vld [vmem:[%s5157] sm:$0xff]
      %v5159 = vld [vmem:[%s5157 + $0x8] sm:$0xff]
      %v5160 = vld [vmem:[%s5157 + $0x18] sm:$0xff]
      %v5161 = vld [vmem:[%s5157 + $0x20] sm:$0xff]
      %v5162 = vld [vmem:[%s5157 + $0x30] sm:$0xff]
      %v5163 = vld [vmem:[%s5157 + $0x38] sm:$0xff]
      %v5164 = vld [vmem:[%s5157 + $0x48] sm:$0xff]
      %v5165 = vld [vmem:[%s5157 + $0x50] sm:$0xff]
      %v5166 = vld [vmem:[%s5157 + $0x60] sm:$0xff]
      %v5167 = vld [vmem:[%s5157 + $0x68] sm:$0xff]
      %v5168 = vld [vmem:[%s5157 + $0x78] sm:$0xff]
      %v5169 = vld [vmem:[%s5157 + $0x80] sm:$0xff]
      %v5170 = vld [vmem:[%s5157 + $0x90] sm:$0xff]
      %v5171 = vld [vmem:[%s5157 + $0x98] sm:$0xff]
      %v5172 = vld [vmem:[%s5157 + $0xa8] sm:$0xff]
      %v5173 = vld [vmem:[%s5157 + $0xb0] sm:$0xff]
      %v5174 = vld [vmem:[%s5157 + $0xc0] sm:$0xff]
      %v5175 = vld [vmem:[%s5157 + $0xc8] sm:$0xff]
      %v5176 = vld [vmem:[%s5157 + $0xd8] sm:$0xff]
      %v5177 = vld [vmem:[%s5157 + $0xe0] sm:$0xff]
      %v5178 = vld [vmem:[%s5157 + $0xf0] sm:$0xff]
      %v5179 = vld [vmem:[%s5157 + $0xf8] sm:$0xff]
      %v5180 = vld [vmem:[%s5157 + $0x108] sm:$0xff]
      %v5181 = vld [vmem:[%s5157 + $0x110] sm:$0xff]
      %v5182 = vld [vmem:[%s5157 + $0x120] sm:$0xff]
      %v5183 = vld [vmem:[%s5157 + $0x128] sm:$0xff]
      %v5184 = vld [vmem:[%s5157 + $0x138] sm:$0xff]
      %v5185 = vld [vmem:[%s5157 + $0x140] sm:$0xff]
      %v5186 = vld [vmem:[%s5157 + $0x150] sm:$0xff]
      %v5187 = vld [vmem:[%s5157 + $0x158] sm:$0xff]
      %v5188 = vld [vmem:[%s5157 + $0x168] sm:$0xff]
      %v5189 = vld [vmem:[%s5157 + $0x170] sm:$0xff]
      %s5190 = scalar_lea.vmem %s2, 24
      %v5191 = vld [vmem:[%s5190] sm:$0xf]
      %v5193 = vsel %vm346, %v5191, 0
      %v5196 = vsel %vm346, %v5158, 0
      %v5199 = vsel %vm346, %v5159, 0
      %v5202 = vsel %vm346, %v5160, 0
      %v5205 = vsel %vm346, %v5161, 0
      %v5208 = vsel %vm346, %v5162, 0
      %v5211 = vsel %vm346, %v5163, 0
      %v5214 = vsel %vm346, %v5164, 0
      %v5217 = vsel %vm346, %v5165, 0
      %v5220 = vsel %vm346, %v5166, 0
      %v5223 = vsel %vm346, %v5167, 0
      %v5226 = vsel %vm346, %v5168, 0
      %v5229 = vsel %vm346, %v5169, 0
      %v5232 = vsel %vm346, %v5170, 0
      %v5235 = vsel %vm346, %v5171, 0
      %v5238 = vsel %vm346, %v5172, 0
      %v5241 = vsel %vm346, %v5173, 0
      %v5244 = vsel %vm346, %v5174, 0
      %v5247 = vsel %vm346, %v5175, 0
      %v5250 = vsel %vm346, %v5176, 0
      %v5253 = vsel %vm346, %v5177, 0
      %v5256 = vsel %vm346, %v5178, 0
      %v5259 = vsel %vm346, %v5179, 0
      %v5262 = vsel %vm346, %v5180, 0
      %v5265 = vsel %vm346, %v5181, 0
      %v5268 = vsel %vm346, %v5182, 0
      %v5271 = vsel %vm346, %v5183, 0
      %v5274 = vsel %vm346, %v5184, 0
      %v5277 = vsel %vm346, %v5185, 0
      %v5280 = vsel %vm346, %v5186, 0
      %v5283 = vsel %vm346, %v5187, 0
      %v5286 = vsel %vm346, %v5188, 0
      %v5289 = vsel %vm346, %v5189, 0
      %5291 = vmatprep.subr.mxu0 0.0
      %5292 = vmatpush1.xpose.msra.mxu0 %v5196
      %5293 = vmatprep.subr.mxu0 0.0
      %5294 = vmatpush1.xpose.msra.mxu0 %v5199
      %5295 = vmatprep.subr.mxu0 0.0
      %5296 = vmatpush1.xpose.msra.mxu0 %v5202
      %5297 = vmatprep.subr.mxu0 0.0
      %5298 = vmatpush1.xpose.msra.mxu0 %v5205
      %5299 = vmatprep.subr.mxu0 0.0
      %5300 = vmatpush1.xpose.msra.mxu0 %v5208
      %5301 = vmatprep.subr.mxu0 0.0
      %5302 = vmatpush1.xpose.msra.mxu0 %v5211
      %5303 = vmatprep.subr.mxu0 0.0
      %5304 = vmatpush1.xpose.msra.mxu0 %v5214
      %5305 = vmatprep.subr.mxu0 0.0
      %5306 = vmatpush1.xpose.msra.mxu0 %v5217
      %5307 = vmatprep.subr.mxu0 0.0
      %5308 = vmatpush1.xpose.msra.mxu0 %v5220
      %5309 = vmatprep.subr.mxu0 0.0
      %5310 = vmatpush1.xpose.msra.mxu0 %v5223
      %5311 = vmatprep.subr.mxu0 0.0
      %5312 = vmatpush1.xpose.msra.mxu0 %v5226
      %5313 = vmatprep.subr.mxu0 0.0
      %5314 = vmatpush1.xpose.msra.mxu0 %v5229
      %5315 = vmatprep.subr.mxu0 0.0
      %5316 = vmatpush1.xpose.msra.mxu0 %v5232
      %5317 = vmatprep.subr.mxu0 0.0
      %5318 = vmatpush1.xpose.msra.mxu0 %v5235
      %5319 = vmatprep.subr.mxu0 0.0
      %5320 = vmatpush1.xpose.msra.mxu0 %v5238
      %5321 = vmatprep.subr.mxu0 0.0
      %5322 = vmatpush1.xpose.msra.mxu0 %v5241
      %5323 = vmatprep.subr.mxu0 0.0
      %5324 = vmatpush1.xpose.msra.mxu0 %v5244
      %5325 = vmatprep.subr.mxu0 0.0
      %5326 = vmatpush1.xpose.msra.mxu0 %v5247
      %5327 = vmatprep.subr.mxu0 0.0
      %5328 = vmatpush1.xpose.msra.mxu0 %v5250
      %5329 = vmatprep.subr.mxu0 0.0
      %5330 = vmatpush1.xpose.msra.mxu0 %v5253
      %5331 = vmatprep.subr.mxu0 0.0
      %5332 = vmatpush1.xpose.msra.mxu0 %v5256
      %5333 = vmatprep.subr.mxu0 0.0
      %5334 = vmatpush1.xpose.msra.mxu0 %v5259
      %5335 = vmatprep.subr.mxu0 0.0
      %5336 = vmatpush1.xpose.msra.mxu0 %v5262
      %5337 = vmatprep.subr.mxu0 0.0
      %5338 = vmatpush1.xpose.msra.mxu0 %v5265
      %5339 = vmatprep.subr.mxu0 0.0
      %5340 = vmatpush1.xpose.msra.mxu0 %v5268
      %5341 = vmatprep.subr.mxu0 0.0
      %5342 = vmatpush1.xpose.msra.mxu0 %v5271
      %5343 = vmatprep.subr.mxu0 0.0
      %5344 = vmatpush1.xpose.msra.mxu0 %v5274
      %5345 = vmatprep.subr.mxu0 0.0
      %5346 = vmatpush1.xpose.msra.mxu0 %v5277
      %5347 = vmatprep.subr.mxu0 0.0
      %5348 = vmatpush1.xpose.msra.mxu0 %v5280
      %5349 = vmatprep.subr.mxu0 0.0
      %5350 = vmatpush1.xpose.msra.mxu0 %v5283
      %5351 = vmatprep.subr.mxu0 0.0
      %5352 = vmatpush1.xpose.msra.mxu0 %v5286
      %5353 = vmatprep.subr.mxu0 0.0
      %5354 = vmatpush1.xpose.msra.mxu0 %v5289
      %5355 = vmatprep.mubr.f32.mxu0 0.0
      %5356 = vmatmul.mubr.f32.gmra.mrb[0].mxu0 %v5193
      %v5357 = vpop.f32.mrb[0].mxu0
      %v5358 = vadd.f32 0.0, %v5357
      %v5359 = vpop.f32.mrb[0].mxu0
      %v5360 = vadd.f32 0.0, %v5359
      %5361 = vdwg.mxu0
      %v5362 = vadd.f32 %v5155, %v5358
      %v5363 = vadd.f32 %v5156, %v5360
      %v5364 = vld [vmem:[%s5157 + $0x1] sm:$0xff]
      %v5365 = vld [vmem:[%s5157 + $0x9] sm:$0xff]
      %v5366 = vld [vmem:[%s5157 + $0x19] sm:$0xff]
      %v5367 = vld [vmem:[%s5157 + $0x21] sm:$0xff]
      %v5368 = vld [vmem:[%s5157 + $0x31] sm:$0xff]
      %v5369 = vld [vmem:[%s5157 + $0x39] sm:$0xff]
      %v5370 = vld [vmem:[%s5157 + $0x49] sm:$0xff]
      %v5371 = vld [vmem:[%s5157 + $0x51] sm:$0xff]
      %v5372 = vld [vmem:[%s5157 + $0x61] sm:$0xff]
      %v5373 = vld [vmem:[%s5157 + $0x69] sm:$0xff]
      %v5374 = vld [vmem:[%s5157 + $0x79] sm:$0xff]
      %v5375 = vld [vmem:[%s5157 + $0x81] sm:$0xff]
      %v5376 = vld [vmem:[%s5157 + $0x91] sm:$0xff]
      %v5377 = vld [vmem:[%s5157 + $0x99] sm:$0xff]
      %v5378 = vld [vmem:[%s5157 + $0xa9] sm:$0xff]
      %v5379 = vld [vmem:[%s5157 + $0xb1] sm:$0xff]
      %v5380 = vld [vmem:[%s5157 + $0xc1] sm:$0xff]
      %v5381 = vld [vmem:[%s5157 + $0xc9] sm:$0xff]
      %v5382 = vld [vmem:[%s5157 + $0xd9] sm:$0xff]
      %v5383 = vld [vmem:[%s5157 + $0xe1] sm:$0xff]
      %v5384 = vld [vmem:[%s5157 + $0xf1] sm:$0xff]
      %v5385 = vld [vmem:[%s5157 + $0xf9] sm:$0xff]
      %v5386 = vld [vmem:[%s5157 + $0x109] sm:$0xff]
      %v5387 = vld [vmem:[%s5157 + $0x111] sm:$0xff]
      %v5388 = vld [vmem:[%s5157 + $0x121] sm:$0xff]
      %v5389 = vld [vmem:[%s5157 + $0x129] sm:$0xff]
      %v5390 = vld [vmem:[%s5157 + $0x139] sm:$0xff]
      %v5391 = vld [vmem:[%s5157 + $0x141] sm:$0xff]
      %v5392 = vld [vmem:[%s5157 + $0x151] sm:$0xff]
      %v5393 = vld [vmem:[%s5157 + $0x159] sm:$0xff]
      %v5394 = vld [vmem:[%s5157 + $0x169] sm:$0xff]
      %v5395 = vld [vmem:[%s5157 + $0x171] sm:$0xff]
      %s5396 = scalar_lea.vmem %s2, 28
      %v5397 = vld [vmem:[%s5396] sm:$0xf]
      %v5399 = vsel %vm346, %v5397, 0
      %v5402 = vsel %vm346, %v5364, 0
      %v5405 = vsel %vm346, %v5365, 0
      %v5408 = vsel %vm346, %v5366, 0
      %v5411 = vsel %vm346, %v5367, 0
      %v5414 = vsel %vm346, %v5368, 0
      %v5417 = vsel %vm346, %v5369, 0
      %v5420 = vsel %vm346, %v5370, 0
      %v5423 = vsel %vm346, %v5371, 0
      %v5426 = vsel %vm346, %v5372, 0
      %v5429 = vsel %vm346, %v5373, 0
      %v5432 = vsel %vm346, %v5374, 0
      %v5435 = vsel %vm346, %v5375, 0
      %v5438 = vsel %vm346, %v5376, 0
      %v5441 = vsel %vm346, %v5377, 0
      %v5444 = vsel %vm346, %v5378, 0
      %v5447 = vsel %vm346, %v5379, 0
      %v5450 = vsel %vm346, %v5380, 0
      %v5453 = vsel %vm346, %v5381, 0
      %v5456 = vsel %vm346, %v5382, 0
      %v5459 = vsel %vm346, %v5383, 0
      %v5462 = vsel %vm346, %v5384, 0
      %v5465 = vsel %vm346, %v5385, 0
      %v5468 = vsel %vm346, %v5386, 0
      %v5471 = vsel %vm346, %v5387, 0
      %v5474 = vsel %vm346, %v5388, 0
      %v5477 = vsel %vm346, %v5389, 0
      %v5480 = vsel %vm346, %v5390, 0
      %v5483 = vsel %vm346, %v5391, 0
      %v5486 = vsel %vm346, %v5392, 0
      %v5489 = vsel %vm346, %v5393, 0
      %v5492 = vsel %vm346, %v5394, 0
      %v5495 = vsel %vm346, %v5395, 0
      %5497 = vmatprep.subr.mxu0 0.0
      %5498 = vmatpush1.xpose.msra.mxu0 %v5402
      %5499 = vmatprep.subr.mxu0 0.0
      %5500 = vmatpush1.xpose.msra.mxu0 %v5405
      %5501 = vmatprep.subr.mxu0 0.0
      %5502 = vmatpush1.xpose.msra.mxu0 %v5408
      %5503 = vmatprep.subr.mxu0 0.0
      %5504 = vmatpush1.xpose.msra.mxu0 %v5411
      %5505 = vmatprep.subr.mxu0 0.0
      %5506 = vmatpush1.xpose.msra.mxu0 %v5414
      %5507 = vmatprep.subr.mxu0 0.0
      %5508 = vmatpush1.xpose.msra.mxu0 %v5417
      %5509 = vmatprep.subr.mxu0 0.0
      %5510 = vmatpush1.xpose.msra.mxu0 %v5420
      %5511 = vmatprep.subr.mxu0 0.0
      %5512 = vmatpush1.xpose.msra.mxu0 %v5423
      %5513 = vmatprep.subr.mxu0 0.0
      %5514 = vmatpush1.xpose.msra.mxu0 %v5426
      %5515 = vmatprep.subr.mxu0 0.0
      %5516 = vmatpush1.xpose.msra.mxu0 %v5429
      %5517 = vmatprep.subr.mxu0 0.0
      %5518 = vmatpush1.xpose.msra.mxu0 %v5432
      %5519 = vmatprep.subr.mxu0 0.0
      %5520 = vmatpush1.xpose.msra.mxu0 %v5435
      %5521 = vmatprep.subr.mxu0 0.0
      %5522 = vmatpush1.xpose.msra.mxu0 %v5438
      %5523 = vmatprep.subr.mxu0 0.0
      %5524 = vmatpush1.xpose.msra.mxu0 %v5441
      %5525 = vmatprep.subr.mxu0 0.0
      %5526 = vmatpush1.xpose.msra.mxu0 %v5444
      %5527 = vmatprep.subr.mxu0 0.0
      %5528 = vmatpush1.xpose.msra.mxu0 %v5447
      %5529 = vmatprep.subr.mxu0 0.0
      %5530 = vmatpush1.xpose.msra.mxu0 %v5450
      %5531 = vmatprep.subr.mxu0 0.0
      %5532 = vmatpush1.xpose.msra.mxu0 %v5453
      %5533 = vmatprep.subr.mxu0 0.0
      %5534 = vmatpush1.xpose.msra.mxu0 %v5456
      %5535 = vmatprep.subr.mxu0 0.0
      %5536 = vmatpush1.xpose.msra.mxu0 %v5459
      %5537 = vmatprep.subr.mxu0 0.0
      %5538 = vmatpush1.xpose.msra.mxu0 %v5462
      %5539 = vmatprep.subr.mxu0 0.0
      %5540 = vmatpush1.xpose.msra.mxu0 %v5465
      %5541 = vmatprep.subr.mxu0 0.0
      %5542 = vmatpush1.xpose.msra.mxu0 %v5468
      %5543 = vmatprep.subr.mxu0 0.0
      %5544 = vmatpush1.xpose.msra.mxu0 %v5471
      %5545 = vmatprep.subr.mxu0 0.0
      %5546 = vmatpush1.xpose.msra.mxu0 %v5474
      %5547 = vmatprep.subr.mxu0 0.0
      %5548 = vmatpush1.xpose.msra.mxu0 %v5477
      %5549 = vmatprep.subr.mxu0 0.0
      %5550 = vmatpush1.xpose.msra.mxu0 %v5480
      %5551 = vmatprep.subr.mxu0 0.0
      %5552 = vmatpush1.xpose.msra.mxu0 %v5483
      %5553 = vmatprep.subr.mxu0 0.0
      %5554 = vmatpush1.xpose.msra.mxu0 %v5486
      %5555 = vmatprep.subr.mxu0 0.0
      %5556 = vmatpush1.xpose.msra.mxu0 %v5489
      %5557 = vmatprep.subr.mxu0 0.0
      %5558 = vmatpush1.xpose.msra.mxu0 %v5492
      %5559 = vmatprep.subr.mxu0 0.0
      %5560 = vmatpush1.xpose.msra.mxu0 %v5495
      %5561 = vmatprep.mubr.f32.mxu0 0.0
      %5562 = vmatmul.mubr.f32.gmra.mrb[0].mxu0 %v5399
      %v5563 = vpop.f32.mrb[0].mxu0
      %v5564 = vadd.f32 0.0, %v5563
      %v5565 = vpop.f32.mrb[0].mxu0
      %v5566 = vadd.f32 0.0, %v5565
      %5567 = vdwg.mxu0
      %v5568 = vadd.f32 %v5362, %v5564
      %v5569 = vadd.f32 %v5363, %v5566
      %v5570 = vld [vmem:[%s5157 + $0x2] sm:$0xff]
      %v5571 = vld [vmem:[%s5157 + $0xa] sm:$0xff]
      %v5572 = vld [vmem:[%s5157 + $0x1a] sm:$0xff]
      %v5573 = vld [vmem:[%s5157 + $0x22] sm:$0xff]
      %v5574 = vld [vmem:[%s5157 + $0x32] sm:$0xff]
      %v5575 = vld [vmem:[%s5157 + $0x3a] sm:$0xff]
      %v5576 = vld [vmem:[%s5157 + $0x4a] sm:$0xff]
      %v5577 = vld [vmem:[%s5157 + $0x52] sm:$0xff]
      %v5578 = vld [vmem:[%s5157 + $0x62] sm:$0xff]
      %v5579 = vld [vmem:[%s5157 + $0x6a] sm:$0xff]
      %v5580 = vld [vmem:[%s5157 + $0x7a] sm:$0xff]
      %v5581 = vld [vmem:[%s5157 + $0x82] sm:$0xff]
      %v5582 = vld [vmem:[%s5157 + $0x92] sm:$0xff]
      %v5583 = vld [vmem:[%s5157 + $0x9a] sm:$0xff]
      %v5584 = vld [vmem:[%s5157 + $0xaa] sm:$0xff]
      %v5585 = vld [vmem:[%s5157 + $0xb2] sm:$0xff]
      %v5586 = vld [vmem:[%s5157 + $0xc2] sm:$0xff]
      %v5587 = vld [vmem:[%s5157 + $0xca] sm:$0xff]
      %v5588 = vld [vmem:[%s5157 + $0xda] sm:$0xff]
      %v5589 = vld [vmem:[%s5157 + $0xe2] sm:$0xff]
      %v5590 = vld [vmem:[%s5157 + $0xf2] sm:$0xff]
      %v5591 = vld [vmem:[%s5157 + $0xfa] sm:$0xff]
      %v5592 = vld [vmem:[%s5157 + $0x10a] sm:$0xff]
      %v5593 = vld [vmem:[%s5157 + $0x112] sm:$0xff]
      %v5594 = vld [vmem:[%s5157 + $0x122] sm:$0xff]
      %v5595 = vld [vmem:[%s5157 + $0x12a] sm:$0xff]
      %v5596 = vld [vmem:[%s5157 + $0x13a] sm:$0xff]
      %v5597 = vld [vmem:[%s5157 + $0x142] sm:$0xff]
      %v5598 = vld [vmem:[%s5157 + $0x152] sm:$0xff]
      %v5599 = vld [vmem:[%s5157 + $0x15a] sm:$0xff]
      %v5600 = vld [vmem:[%s5157 + $0x16a] sm:$0xff]
      %v5601 = vld [vmem:[%s5157 + $0x172] sm:$0xff]
      %s5602 = scalar_lea.vmem %s2, 32
      %v5603 = vld [vmem:[%s5602] sm:$0xf]
      %v5605 = vsel %vm346, %v5603, 0
      %v5608 = vsel %vm346, %v5570, 0
      %v5611 = vsel %vm346, %v5571, 0
      %v5614 = vsel %vm346, %v5572, 0
      %v5617 = vsel %vm346, %v5573, 0
      %v5620 = vsel %vm346, %v5574, 0
      %v5623 = vsel %vm346, %v5575, 0
      %v5626 = vsel %vm346, %v5576, 0
      %v5629 = vsel %vm346, %v5577, 0
      %v5632 = vsel %vm346, %v5578, 0
      %v5635 = vsel %vm346, %v5579, 0
      %v5638 = vsel %vm346, %v5580, 0
      %v5641 = vsel %vm346, %v5581, 0
      %v5644 = vsel %vm346, %v5582, 0
      %v5647 = vsel %vm346, %v5583, 0
      %v5650 = vsel %vm346, %v5584, 0
      %v5653 = vsel %vm346, %v5585, 0
      %v5656 = vsel %vm346, %v5586, 0
      %v5659 = vsel %vm346, %v5587, 0
      %v5662 = vsel %vm346, %v5588, 0
      %v5665 = vsel %vm346, %v5589, 0
      %v5668 = vsel %vm346, %v5590, 0
      %v5671 = vsel %vm346, %v5591, 0
      %v5674 = vsel %vm346, %v5592, 0
      %v5677 = vsel %vm346, %v5593, 0
      %v5680 = vsel %vm346, %v5594, 0
      %v5683 = vsel %vm346, %v5595, 0
      %v5686 = vsel %vm346, %v5596, 0
      %v5689 = vsel %vm346, %v5597, 0
      %v5692 = vsel %vm346, %v5598, 0
      %v5695 = vsel %vm346, %v5599, 0
      %v5698 = vsel %vm346, %v5600, 0
      %v5701 = vsel %vm346, %v5601, 0
      %5703 = vmatprep.subr.mxu0 0.0
      %5704 = vmatpush1.xpose.msra.mxu0 %v5608
      %5705 = vmatprep.subr.mxu0 0.0
      %5706 = vmatpush1.xpose.msra.mxu0 %v5611
      %5707 = vmatprep.subr.mxu0 0.0
      %5708 = vmatpush1.xpose.msra.mxu0 %v5614
      %5709 = vmatprep.subr.mxu0 0.0
      %5710 = vmatpush1.xpose.msra.mxu0 %v5617
      %5711 = vmatprep.subr.mxu0 0.0
      %5712 = vmatpush1.xpose.msra.mxu0 %v5620
      %5713 = vmatprep.subr.mxu0 0.0
      %5714 = vmatpush1.xpose.msra.mxu0 %v5623
      %5715 = vmatprep.subr.mxu0 0.0
      %5716 = vmatpush1.xpose.msra.mxu0 %v5626
      %5717 = vmatprep.subr.mxu0 0.0
      %5718 = vmatpush1.xpose.msra.mxu0 %v5629
      %5719 = vmatprep.subr.mxu0 0.0
      %5720 = vmatpush1.xpose.msra.mxu0 %v5632
      %5721 = vmatprep.subr.mxu0 0.0
      %5722 = vmatpush1.xpose.msra.mxu0 %v5635
      %5723 = vmatprep.subr.mxu0 0.0
      %5724 = vmatpush1.xpose.msra.mxu0 %v5638
      %5725 = vmatprep.subr.mxu0 0.0
      %5726 = vmatpush1.xpose.msra.mxu0 %v5641
      %5727 = vmatprep.subr.mxu0 0.0
      %5728 = vmatpush1.xpose.msra.mxu0 %v5644
      %5729 = vmatprep.subr.mxu0 0.0
      %5730 = vmatpush1.xpose.msra.mxu0 %v5647
      %5731 = vmatprep.subr.mxu0 0.0
      %5732 = vmatpush1.xpose.msra.mxu0 %v5650
      %5733 = vmatprep.subr.mxu0 0.0
      %5734 = vmatpush1.xpose.msra.mxu0 %v5653
      %5735 = vmatprep.subr.mxu0 0.0
      %5736 = vmatpush1.xpose.msra.mxu0 %v5656
      %5737 = vmatprep.subr.mxu0 0.0
      %5738 = vmatpush1.xpose.msra.mxu0 %v5659
      %5739 = vmatprep.subr.mxu0 0.0
      %5740 = vmatpush1.xpose.msra.mxu0 %v5662
      %5741 = vmatprep.subr.mxu0 0.0
      %5742 = vmatpush1.xpose.msra.mxu0 %v5665
      %5743 = vmatprep.subr.mxu0 0.0
      %5744 = vmatpush1.xpose.msra.mxu0 %v5668
      %5745 = vmatprep.subr.mxu0 0.0
      %5746 = vmatpush1.xpose.msra.mxu0 %v5671
      %5747 = vmatprep.subr.mxu0 0.0
      %5748 = vmatpush1.xpose.msra.mxu0 %v5674
      %5749 = vmatprep.subr.mxu0 0.0
      %5750 = vmatpush1.xpose.msra.mxu0 %v5677
      %5751 = vmatprep.subr.mxu0 0.0
      %5752 = vmatpush1.xpose.msra.mxu0 %v5680
      %5753 = vmatprep.subr.mxu0 0.0
      %5754 = vmatpush1.xpose.msra.mxu0 %v5683
      %5755 = vmatprep.subr.mxu0 0.0
      %5756 = vmatpush1.xpose.msra.mxu0 %v5686
      %5757 = vmatprep.subr.mxu0 0.0
      %5758 = vmatpush1.xpose.msra.mxu0 %v5689
      %5759 = vmatprep.subr.mxu0 0.0
      %5760 = vmatpush1.xpose.msra.mxu0 %v5692
      %5761 = vmatprep.subr.mxu0 0.0
      %5762 = vmatpush1.xpose.msra.mxu0 %v5695
      %5763 = vmatprep.subr.mxu0 0.0
      %5764 = vmatpush1.xpose.msra.mxu0 %v5698
      %5765 = vmatprep.subr.mxu0 0.0
      %5766 = vmatpush1.xpose.msra.mxu0 %v5701
      %5767 = vmatprep.mubr.f32.mxu0 0.0
      %5768 = vmatmul.mubr.f32.gmra.mrb[0].mxu0 %v5605
      %v5769 = vpop.f32.mrb[0].mxu0
      %v5770 = vadd.f32 0.0, %v5769
      %v5771 = vpop.f32.mrb[0].mxu0
      %v5772 = vadd.f32 0.0, %v5771
      %5773 = vdwg.mxu0
      %v5774 = vadd.f32 %v5568, %v5770
      %v5775 = vadd.f32 %v5569, %v5772
      %v5776 = vld [vmem:[%s5] sm:$0xf]
      %5778 = vset.pattern.permute.xlu0 0
      %5779 = vperm.xlu0 %5778, %v5776
      %v5780 = vpop.permute.xlu0 %5779
      %v5782 = vmul.f32 %v5774, %v5780
      %v5783 = vmul.f32 %v5775, %v5780
      %v5784 = vld [vmem:[%s6] sm:$0xf]
      %5786 = vset.pattern.permute.xlu0 0
      %5787 = vperm.xlu0 %5786, %v5784
      %v5788 = vpop.permute.xlu0 %5787
      %v5790 = vadd.f32 %v5782, %v5788
      %v5791 = vadd.f32 %v5783, %v5788
      %v5792 = vmax.f32 %v5790, 0.0
      %v5793 = vmax.f32 %v5791, 0.0
      %v5796 = vcombine.low %v5792, %v5793
      %5798 = vst [vmem:[%s278] sm:$0xff] %v5796
      %p5799 = scmp.lt.s32.totalorder %s18, 1
      %s5800 = scalar_select %p5799, %s18, 1
      %s5801 = smul.addr %s5800, 2
      %s5802 = smul.addr %s5801, 4
      %s5803 = scalar_lea.vmem %s7, %s5802
      // Predicated region
      $region49: #{_forward.1} parent=47 // pred_check
        %p5804 = pneg %p188
      $region50: #{_forward.1} parent=47 // pred_check_branch
        %5806 = sbr.rel (%p5804) target = $region52
      $region51: #{_forward.1} parent=47 // pred_region
        _
      $region52: #{_forward.1} parent=47 // pred_fallthru
        _
    $region48: #{_forward.1} parent=5 // pred_fallthru
      _
    %p5807 = scmp.le.s32.totalorder 2, %s13
    // Predicated region
    $region53: #{_forward.1} parent=5 // pred_check
      %p5808 = pneg %p5807
    $region54: #{_forward.1} parent=5 // pred_check_branch
      %5810 = sbr.rel (%p5808) target = $region56
    $region55: #{_forward.1} parent=5 // pred_region
      %s5811 = ssub.s32 %s13, 2
      // Predicated region
      $region57: #{_forward.1} parent=55 // pred_check
        %p5812 = pneg %p194
      $region58: #{_forward.1} parent=55 // pred_check_branch
        %5814 = sbr.rel (%p5812) target = $region60
      $region59: #{_forward.1} parent=55 // pred_region
        %p5815 = scmp.lt.s32.totalorder %s19, 1
        %s5816 = scalar_select %p5815, %s19, 1
        %s5817 = smul.addr %s5816, 2
        %s5818 = smul.addr %s5817, 4
        %s5819 = scalar_lea.vmem %s7, %s5818
      $region60: #{_forward.1} parent=55 // pred_fallthru
        _
    $region56: #{_forward.1} parent=5 // pred_fallthru
      _
  $region6: #{_forward.1} parent=0 // loop_footer
    %s17 = sadd.s32 1, %s13
  $region7: #{_forward.1} parent=0 // loop_footer_branch
    %12 = sbr.rel target = $region3
  $region8: #{_forward.1} parent=0 // loop_exit
    _

</llo_original>
